<compile_context>
chip_gen: v7x
topology: tpu7x:2x2x1
jax: 0.10.0
libtpu: 0.0.40
codegen_flags: <defaults>
</compile_context>

<pallas_src>
import jax
import jax.numpy as jnp
from jax.experimental import pallas as pl
from jax.experimental.pallas import tpu as pltpu


def _multihead_kernel(
    x_ref,                         # (TB, C)            f32 pooled features
    w_cat_ref,                     # (C, (G+1)*D)       bf16 [w_inst | w_grp...]
    b_cat_ref,                     # (1, (G+1)*D)       f32
    alpha_cat_ref,                 # (1, (G+1)*D)       f32 per-column PReLU alpha
    w_g1_ref, b_g1_ref,            # (D, I) bf16, (1, I) f32
    w_g2_ref, b_g2_ref,            # (I, G) bf16, (1, G) f32
    a_g1_ref, a_g2_ref,            # (1, 1) f32 in SMEM
    bn_scale_ref, bn_shift_ref,    # (1, D), (1, D)     f32 (folded eval BN)
    out_ref,                       # (TB, D)
):
    f32 = jnp.float32
    bf16 = jnp.bfloat16

    D = out_ref.shape[1]
    G = w_cat_ref.shape[1] // D - 1

    x = x_ref[...]                                                  # (TB, C) f32

    # --- instance_fc + all 32 group FCs: one lane-dense bf16 MXU matmul
    fused = jnp.dot(x.astype(bf16), w_cat_ref[...],
                    preferred_element_type=f32) + b_cat_ref[...]    # (TB,(G+1)*D)
    # one PReLU pass over everything (per-column alphas precomputed)
    act = jnp.where(fused >= 0.0, fused, fused * alpha_cat_ref[...])

    inst = act[:, :D]                                               # (TB, D)

    # --- GDN: fc1 -> PReLU -> fc2 -> PReLU -> softmax over groups
    a_g1 = a_g1_ref[0, 0]
    a_g2 = a_g2_ref[0, 0]
    h1 = jnp.dot(inst.astype(bf16), w_g1_ref[...],
                 preferred_element_type=f32) + b_g1_ref[...]        # (TB, I)
    h1 = jnp.where(h1 >= 0.0, h1, h1 * a_g1)
    h2 = jnp.dot(h1.astype(bf16), w_g2_ref[...],
                 preferred_element_type=f32) + b_g2_ref[...]        # (TB, G)
    h2 = jnp.where(h2 >= 0.0, h2, h2 * a_g2)
    m = jnp.max(h2, axis=-1, keepdims=True)
    e = jnp.exp(h2 - m)
    prob = e * pl.reciprocal(jnp.sum(e, axis=-1, keepdims=True), approx=True)

    # --- prob-weighted ensemble of the already-activated group outputs
    ens = jnp.zeros_like(inst)
    for g in range(G):  # static unroll; slices are 128-lane aligned views
        ens = ens + act[:, (g + 1) * D:(g + 2) * D] * prob[:, g:g + 1]
    final = inst + ens                                              # (TB, D)

    # --- bottleneck: BatchNorm1d (eval), folded into scale/shift
    out_ref[...] = (final * bn_scale_ref[...] + bn_shift_ref[...]).astype(out_ref.dtype)


def prepare_params(params, *, eps=1e-5):
    """One-time parameter prep (run at load time, NOT per forward)."""
    f32, bf16 = jnp.float32, jnp.bfloat16
    C, D = params["w_inst"].shape
    G = params["w_grp"].shape[0]
    I = params["w_g1"].shape[1]

    # Stack the G group-FC weights lane-dense and prepend w_inst -> (C, (G+1)*D)
    w_grp_cat = jnp.transpose(params["w_grp"], (1, 0, 2)).reshape(C, G * D)
    w_cat = jnp.concatenate([params["w_inst"], w_grp_cat], axis=1).astype(bf16)
    b_cat = jnp.concatenate(
        [params["b_inst"], params["b_grp"].reshape(G * D)]).reshape(1, (G + 1) * D)
    alpha_cat = jnp.concatenate(
        [jnp.broadcast_to(params["a_inst"], (D,)),
         jnp.repeat(params["a_grp"], D)]).reshape(1, (G + 1) * D)

    # Fold eval-mode BatchNorm1d into scale/shift.
    inv = params["bn_gamma"] * jax.lax.rsqrt(params["bn_var"] + eps)

    return dict(
        w_cat=w_cat,
        b_cat=b_cat.astype(f32),
        alpha_cat=alpha_cat.astype(f32),
        w_g1=params["w_g1"].astype(bf16),
        b_g1=params["b_g1"].reshape(1, I).astype(f32),
        w_g2=params["w_g2"].astype(bf16),
        b_g2=params["b_g2"].reshape(1, G).astype(f32),
        a_g1=params["a_g1"].reshape(1, 1).astype(f32),
        a_g2=params["a_g2"].reshape(1, 1).astype(f32),
        bn_scale=inv.reshape(1, D).astype(f32),
        bn_shift=(params["bn_beta"] - params["bn_mean"] * inv).reshape(1, D).astype(f32),
    )


def multihead_forward(features, prep):
    """Eval-mode MultiHead forward. features: (B, C, H, W) -> (B, D) f32."""
    B, C, H, W = features.shape
    GD1 = prep["w_cat"].shape[1]
    D = prep["bn_scale"].shape[1]
    I = prep["w_g1"].shape[1]
    G = GD1 // D - 1

    # pool_layer (GlobalAvgPool) + flatten(1): memory-bound minor-axis reduce,
    # done by XLA so the kernel's XLU/MXU slots stay free (perf review).
    x = jnp.mean(features.astype(jnp.float32).reshape(B, C, H * W), axis=-1)

    # Pad batch to a sublane multiple; pick the largest tile that still leaves
    # >= 2 grid steps (so both v7x TensorCores get work under "parallel").
    Bp = ((B + 7) // 8) * 8
    if Bp != B:
        x = jnp.pad(x, ((0, Bp - B), (0, 0)))
    cands = [t for t in (128, 64, 32, 16, 8) if Bp % t == 0]
    two_step = [t for t in cands if Bp // t >= 2]
    tile_b = two_step[0] if two_step else cands[0]
    grid = (Bp // tile_b,)

    const2 = lambda i: (0, 0)
    smem_spec = pl.BlockSpec(memory_space=pltpu.MemorySpace.SMEM)

    flops = 2 * Bp * (C * GD1 + D * I + I * G) + 5 * Bp * GD1
    bytes_accessed = (
        4 * Bp * C                                   # pooled activations in
        + 2 * (C * GD1 + D * I + I * G)              # bf16 weights
        + 4 * (3 * GD1 + I + G + 2 * D + 2)          # biases / alphas / BN
        + 4 * Bp * D                                 # output
    )
    cost = pl.CostEstimate(flops=int(flops),
                           transcendentals=int(Bp * (G + 1)),
                           bytes_accessed=int(bytes_accessed))

    out = pl.pallas_call(
        _multihead_kernel,
        out_shape=jax.ShapeDtypeStruct((Bp, D), jnp.float32),
        grid_spec=pl.GridSpec(
            grid=grid,
            in_specs=[
                pl.BlockSpec((tile_b, C), lambda i: (i, 0)),   # pooled x
                pl.BlockSpec((C, GD1), const2),                # w_cat (bf16)
                pl.BlockSpec((1, GD1), const2),                # b_cat
                pl.BlockSpec((1, GD1), const2),                # alpha_cat
                pl.BlockSpec((D, I), const2),                  # w_g1 (bf16)
                pl.BlockSpec((1, I), const2),                  # b_g1
                pl.BlockSpec((I, G), const2),                  # w_g2 (bf16)
                pl.BlockSpec((1, G), const2),                  # b_g2
                smem_spec,                                     # a_g1 scalar
                smem_spec,                                     # a_g2 scalar
                pl.BlockSpec((1, D), const2),                  # bn_scale
                pl.BlockSpec((1, D), const2),                  # bn_shift
            ],
            out_specs=pl.BlockSpec((tile_b, D), lambda i: (i, 0)),
        ),
        compiler_params=pltpu.CompilerParams(
            dimension_semantics=("parallel",),
            vmem_limit_bytes=32 * 1024 * 1024,
        ),
        cost_estimate=cost,
    )(
        x,
        prep["w_cat"], prep["b_cat"], prep["alpha_cat"],
        prep["w_g1"], prep["b_g1"],
        prep["w_g2"], prep["b_g2"],
        prep["a_g1"], prep["a_g2"],
        prep["bn_scale"], prep["bn_shift"],
    )
    return out[:B]


def multihead_ref(features, params, *, eps=1e-5):
    """Pure-JAX f32 reference with identical semantics (torch eval forward)."""
    B, C, H, W = features.shape
    x = features.reshape(B, C, H * W).mean(axis=-1)

    prelu = lambda h, a: jnp.where(h >= 0, h, h * a)
    inst = prelu(x @ params["w_inst"] + params["b_inst"], params["a_inst"])
    h1 = prelu(inst @ params["w_g1"] + params["b_g1"], params["a_g1"])
    h2 = prelu(h1 @ params["w_g2"] + params["b_g2"], params["a_g2"])
    prob = jax.nn.softmax(h2, axis=1)

    v = jnp.einsum("bc,gcd->gbd", x, params["w_grp"]) + params["b_grp"][:, None, :]
    v = jnp.where(v >= 0, v, v * params["a_grp"][:, None, None])
    ens = jnp.einsum("gbd,bg->bd", v, prob)
    final = inst + ens

    inv = params["bn_gamma"] / jnp.sqrt(params["bn_var"] + eps)
    return (final - params["bn_mean"]) * inv + params["bn_beta"]


if __name__ == "__main__":
    # Small but lane/sublane-friendly shapes consistent with the module:
    #   feat_dim (= feature_dim = backbone_fc_dim) = 128, groups = 32,
    #   GDN intermediate = 256, spatial 16x16, batch 16.
    B, C, H, W = 16, 128, 16, 16
    D, I, G = C, 256, 32

    k = jax.random.split(jax.random.PRNGKey(0), 14)
    lin = lambda key, fan_in, shape: jax.random.normal(key, shape, jnp.float32) / jnp.sqrt(
        jnp.float32(fan_in)
    )
    params = dict(
        w_inst=lin(k[0], C, (C, D)),
        b_inst=0.01 * jax.random.normal(k[1], (D,), jnp.float32),
        a_inst=jnp.array(0.25, jnp.float32),
        w_g1=lin(k[2], D, (D, I)),
        b_g1=0.01 * jax.random.normal(k[3], (I,), jnp.float32),
        a_g1=jnp.array(0.2, jnp.float32),
        w_g2=lin(k[4], I, (I, G)),
        b_g2=0.01 * jax.random.normal(k[5], (G,), jnp.float32),
        a_g2=jnp.array(0.3, jnp.float32),
        w_grp=lin(k[6], C, (G, C, D)),
        b_grp=0.01 * jax.random.normal(k[7], (G, D), jnp.float32),
        a_grp=jax.random.uniform(k[8], (G,), jnp.float32, 0.1, 0.4),
        bn_gamma=jax.random.uniform(k[9], (D,), jnp.float32, 0.5, 1.5),
        bn_beta=0.1 * jax.random.normal(k[10], (D,), jnp.float32),
        bn_mean=0.1 * jax.random.normal(k[11], (D,), jnp.float32),
        bn_var=jax.random.uniform(k[12], (D,), jnp.float32, 0.5, 1.5),
    )
    features = jax.random.normal(k[13], (B, C, H, W), jnp.float32)

    # One-time parameter prep (hoisted off the per-forward path).
    prep = prepare_params(params)
    fwd = jax.jit(multihead_forward)

    out = jax.block_until_ready(fwd(features, prep))
    ref = jax.block_until_ready(multihead_ref(features, params))
    assert out.shape == (B, D)
    assert out.dtype == jnp.float32
    err = float(jnp.max(jnp.abs(out - ref)))
    assert bool(jnp.allclose(out, ref, atol=1e-2, rtol=1e-2)), err

    # Ragged batch (not a multiple of the tile) exercises the padding path.
    B2 = 6
    feats2 = features[:B2]
    out2 = jax.block_until_ready(fwd(feats2, prep))
    ref2 = multihead_ref(feats2, params)
    assert out2.shape == (B2, D)
    assert bool(jnp.allclose(out2, ref2, atol=1e-2, rtol=1e-2)), float(
        jnp.max(jnp.abs(out2 - ref2))
    )

    print("KERNEL_OK")
</pallas_src>

<mosaic_0001>
module attributes {stable_mosaic.version = 11 : i64} {
  func.func @_multihead_kernel(%arg0: i32, %arg1: memref<8x128xf32, #tpu.memory_space<vmem>>, %arg2: memref<128x4224xbf16, #tpu.memory_space<vmem>>, %arg3: memref<1x4224xf32, #tpu.memory_space<vmem>>, %arg4: memref<1x4224xf32, #tpu.memory_space<vmem>>, %arg5: memref<128x256xbf16, #tpu.memory_space<vmem>>, %arg6: memref<1x256xf32, #tpu.memory_space<vmem>>, %arg7: memref<256x32xbf16, #tpu.memory_space<vmem>>, %arg8: memref<1x32xf32, #tpu.memory_space<vmem>>, %arg9: memref<1x1xf32, #tpu.memory_space<smem>>, %arg10: memref<1x1xf32, #tpu.memory_space<smem>>, %arg11: memref<1x128xf32, #tpu.memory_space<vmem>>, %arg12: memref<1x128xf32, #tpu.memory_space<vmem>>, %arg13: memref<8x128xf32, #tpu.memory_space<vmem>>) attributes {dimension_semantics = [#tpu.dimension_semantics<parallel>], iteration_bounds = array<i64: 2>, scalar_prefetch = 0 : i64, scratch_operands = 0 : i64, tpu.core_type = #tpu.core_type<tc>, window_params = [{transform_indices = @transform_0, window_bounds = array<i64: 8, 128>}, {pipeline_mode = #tpu.pipeline_mode<synchronous>, transform_indices = @transform_1, window_bounds = array<i64: 128, 4224>}, {pipeline_mode = #tpu.pipeline_mode<synchronous>, transform_indices = @transform_2, window_bounds = array<i64: 1, 4224>}, {pipeline_mode = #tpu.pipeline_mode<synchronous>, transform_indices = @transform_3, window_bounds = array<i64: 1, 4224>}, {pipeline_mode = #tpu.pipeline_mode<synchronous>, transform_indices = @transform_4, window_bounds = array<i64: 128, 256>}, {pipeline_mode = #tpu.pipeline_mode<synchronous>, transform_indices = @transform_5, window_bounds = array<i64: 1, 256>}, {pipeline_mode = #tpu.pipeline_mode<synchronous>, transform_indices = @transform_6, window_bounds = array<i64: 256, 32>}, {pipeline_mode = #tpu.pipeline_mode<synchronous>, transform_indices = @transform_7, window_bounds = array<i64: 1, 32>}, {transform_indices = @transform_8, window_bounds = array<i64: 1, 1>}, {transform_indices = @transform_9, window_bounds = array<i64: 1, 1>}, {pipeline_mode = #tpu.pipeline_mode<synchronous>, transform_indices = @transform_10, window_bounds = array<i64: 1, 128>}, {pipeline_mode = #tpu.pipeline_mode<synchronous>, transform_indices = @transform_11, window_bounds = array<i64: 1, 128>}, {transform_indices = @transform_12, window_bounds = array<i64: 8, 128>}]} {
    %c0 = arith.constant 0 : index
    %c0_0 = arith.constant 0 : index
    %0 = vector.load %arg1[%c0, %c0_0] : memref<8x128xf32, #tpu.memory_space<vmem>>, vector<8x128xf32>
    %1 = arith.truncf %0 : vector<8x128xf32> to vector<8x128xbf16>
    %c0_1 = arith.constant 0 : index
    %c0_2 = arith.constant 0 : index
    %2 = vector.load %arg2[%c0_1, %c0_2] : memref<128x4224xbf16, #tpu.memory_space<vmem>>, vector<128x4224xbf16>
    %cst = arith.constant dense<0.000000e+00> : vector<8x4224xf32>
    %3 = tpu.matmul %1, %2, %cst {dimension_numbers = #tpu.dot_dimension_numbers<[1], [0], [0], [1], [0, 0, 1, 1], [], []>} : vector<8x128xbf16>, vector<128x4224xbf16>, vector<8x4224xf32> -> vector<8x4224xf32>
    %c0_3 = arith.constant 0 : index
    %c0_4 = arith.constant 0 : index
    %4 = vector.load %arg3[%c0_3, %c0_4] : memref<1x4224xf32, #tpu.memory_space<vmem>>, vector<1x4224xf32>
    %5 = vector.broadcast %4 : vector<1x4224xf32> to vector<8x4224xf32>
    %6 = arith.addf %3, %5 : vector<8x4224xf32>
    %cst_5 = arith.constant 0.000000e+00 : f32
    %7 = vector.broadcast %cst_5 : f32 to vector<8x4224xf32>
    %8 = arith.cmpf oge, %6, %7 : vector<8x4224xf32>
    %c0_6 = arith.constant 0 : index
    %c0_7 = arith.constant 0 : index
    %9 = vector.load %arg4[%c0_6, %c0_7] : memref<1x4224xf32, #tpu.memory_space<vmem>>, vector<1x4224xf32>
    %10 = vector.broadcast %9 : vector<1x4224xf32> to vector<8x4224xf32>
    %11 = arith.mulf %6, %10 : vector<8x4224xf32>
    %12 = arith.select %8, %6, %11 : vector<8x4224xi1>, vector<8x4224xf32>
    %13 = vector.extract_strided_slice %12 {offsets = [0, 0], sizes = [8, 128], strides = [1, 1]} : vector<8x4224xf32> to vector<8x128xf32>
    %c0_8 = arith.constant 0 : index
    %c0_9 = arith.constant 0 : index
    %14 = memref.load %arg9[%c0_8, %c0_9] : memref<1x1xf32, #tpu.memory_space<smem>>
    %c0_10 = arith.constant 0 : index
    %c0_11 = arith.constant 0 : index
    %15 = memref.load %arg10[%c0_10, %c0_11] : memref<1x1xf32, #tpu.memory_space<smem>>
    %16 = arith.truncf %13 : vector<8x128xf32> to vector<8x128xbf16>
    %c0_12 = arith.constant 0 : index
    %c0_13 = arith.constant 0 : index
    %17 = vector.load %arg5[%c0_12, %c0_13] : memref<128x256xbf16, #tpu.memory_space<vmem>>, vector<128x256xbf16>
    %cst_14 = arith.constant dense<0.000000e+00> : vector<8x256xf32>
    %18 = tpu.matmul %16, %17, %cst_14 {dimension_numbers = #tpu.dot_dimension_numbers<[1], [0], [0], [1], [0, 0, 1, 1], [], []>} : vector<8x128xbf16>, vector<128x256xbf16>, vector<8x256xf32> -> vector<8x256xf32>
    %c0_15 = arith.constant 0 : index
    %c0_16 = arith.constant 0 : index
    %19 = vector.load %arg6[%c0_15, %c0_16] : memref<1x256xf32, #tpu.memory_space<vmem>>, vector<1x256xf32>
    %20 = vector.broadcast %19 : vector<1x256xf32> to vector<8x256xf32>
    %21 = arith.addf %18, %20 : vector<8x256xf32>
    %cst_17 = arith.constant 0.000000e+00 : f32
    %22 = vector.broadcast %cst_17 : f32 to vector<8x256xf32>
    %23 = arith.cmpf oge, %21, %22 : vector<8x256xf32>
    %24 = vector.broadcast %14 : f32 to vector<8x256xf32>
    %25 = arith.mulf %21, %24 : vector<8x256xf32>
    %26 = arith.select %23, %21, %25 : vector<8x256xi1>, vector<8x256xf32>
    %27 = arith.truncf %26 : vector<8x256xf32> to vector<8x256xbf16>
    %c0_18 = arith.constant 0 : index
    %c0_19 = arith.constant 0 : index
    %28 = vector.load %arg7[%c0_18, %c0_19] : memref<256x32xbf16, #tpu.memory_space<vmem>>, vector<256x32xbf16>
    %cst_20 = arith.constant dense<0.000000e+00> : vector<8x32xf32>
    %29 = tpu.matmul %27, %28, %cst_20 {dimension_numbers = #tpu.dot_dimension_numbers<[1], [0], [0], [1], [0, 0, 1, 1], [], []>} : vector<8x256xbf16>, vector<256x32xbf16>, vector<8x32xf32> -> vector<8x32xf32>
    %c0_21 = arith.constant 0 : index
    %c0_22 = arith.constant 0 : index
    %30 = vector.load %arg8[%c0_21, %c0_22] : memref<1x32xf32, #tpu.memory_space<vmem>>, vector<1x32xf32>
    %31 = vector.broadcast %30 : vector<1x32xf32> to vector<8x32xf32>
    %32 = arith.addf %29, %31 : vector<8x32xf32>
    %cst_23 = arith.constant 0.000000e+00 : f32
    %33 = vector.broadcast %cst_23 : f32 to vector<8x32xf32>
    %34 = arith.cmpf oge, %32, %33 : vector<8x32xf32>
    %35 = vector.broadcast %15 : f32 to vector<8x32xf32>
    %36 = arith.mulf %32, %35 : vector<8x32xf32>
    %37 = arith.select %34, %32, %36 : vector<8x32xi1>, vector<8x32xf32>
    %cst_24 = arith.constant dense<0xFF800000> : vector<8xf32>
    %38 = vector.multi_reduction <maximumf>, %37, %cst_24 [1] : vector<8x32xf32> to vector<8xf32>
    %39 = vector.shape_cast %38 : vector<8xf32> to vector<8x1xf32>
    %40 = vector.broadcast %39 : vector<8x1xf32> to vector<8x32xf32>
    %41 = arith.subf %37, %40 : vector<8x32xf32>
    %42 = math.exp %41 : vector<8x32xf32>
    %cst_25 = arith.constant dense<0.000000e+00> : vector<8xf32>
    %43 = vector.multi_reduction <add>, %42, %cst_25 [1] : vector<8x32xf32> to vector<8xf32>
    %44 = vector.shape_cast %43 : vector<8xf32> to vector<8x1xf32>
    %45 = tpu.reciprocal %44 {approx = true} : vector<8x1xf32> -> vector<8x1xf32>
    %46 = vector.broadcast %45 : vector<8x1xf32> to vector<8x32xf32>
    %47 = arith.mulf %42, %46 : vector<8x32xf32>
    %cst_26 = arith.constant 0.000000e+00 : f32
    %48 = vector.broadcast %cst_26 : f32 to vector<8x128xf32>
    %49 = vector.extract_strided_slice %12 {offsets = [0, 128], sizes = [8, 128], strides = [1, 1]} : vector<8x4224xf32> to vector<8x128xf32>
    %50 = vector.extract_strided_slice %47 {offsets = [0, 0], sizes = [8, 1], strides = [1, 1]} : vector<8x32xf32> to vector<8x1xf32>
    %51 = vector.broadcast %50 : vector<8x1xf32> to vector<8x128xf32>
    %52 = arith.mulf %49, %51 : vector<8x128xf32>
    %53 = arith.addf %48, %52 : vector<8x128xf32>
    %54 = vector.extract_strided_slice %12 {offsets = [0, 256], sizes = [8, 128], strides = [1, 1]} : vector<8x4224xf32> to vector<8x128xf32>
    %55 = vector.extract_strided_slice %47 {offsets = [0, 1], sizes = [8, 1], strides = [1, 1]} : vector<8x32xf32> to vector<8x1xf32>
    %56 = vector.broadcast %55 : vector<8x1xf32> to vector<8x128xf32>
    %57 = arith.mulf %54, %56 : vector<8x128xf32>
    %58 = arith.addf %53, %57 : vector<8x128xf32>
    %59 = vector.extract_strided_slice %12 {offsets = [0, 384], sizes = [8, 128], strides = [1, 1]} : vector<8x4224xf32> to vector<8x128xf32>
    %60 = vector.extract_strided_slice %47 {offsets = [0, 2], sizes = [8, 1], strides = [1, 1]} : vector<8x32xf32> to vector<8x1xf32>
    %61 = vector.broadcast %60 : vector<8x1xf32> to vector<8x128xf32>
    %62 = arith.mulf %59, %61 : vector<8x128xf32>
    %63 = arith.addf %58, %62 : vector<8x128xf32>
    %64 = vector.extract_strided_slice %12 {offsets = [0, 512], sizes = [8, 128], strides = [1, 1]} : vector<8x4224xf32> to vector<8x128xf32>
    %65 = vector.extract_strided_slice %47 {offsets = [0, 3], sizes = [8, 1], strides = [1, 1]} : vector<8x32xf32> to vector<8x1xf32>
    %66 = vector.broadcast %65 : vector<8x1xf32> to vector<8x128xf32>
    %67 = arith.mulf %64, %66 : vector<8x128xf32>
    %68 = arith.addf %63, %67 : vector<8x128xf32>
    %69 = vector.extract_strided_slice %12 {offsets = [0, 640], sizes = [8, 128], strides = [1, 1]} : vector<8x4224xf32> to vector<8x128xf32>
    %70 = vector.extract_strided_slice %47 {offsets = [0, 4], sizes = [8, 1], strides = [1, 1]} : vector<8x32xf32> to vector<8x1xf32>
    %71 = vector.broadcast %70 : vector<8x1xf32> to vector<8x128xf32>
    %72 = arith.mulf %69, %71 : vector<8x128xf32>
    %73 = arith.addf %68, %72 : vector<8x128xf32>
    %74 = vector.extract_strided_slice %12 {offsets = [0, 768], sizes = [8, 128], strides = [1, 1]} : vector<8x4224xf32> to vector<8x128xf32>
    %75 = vector.extract_strided_slice %47 {offsets = [0, 5], sizes = [8, 1], strides = [1, 1]} : vector<8x32xf32> to vector<8x1xf32>
    %76 = vector.broadcast %75 : vector<8x1xf32> to vector<8x128xf32>
    %77 = arith.mulf %74, %76 : vector<8x128xf32>
    %78 = arith.addf %73, %77 : vector<8x128xf32>
    %79 = vector.extract_strided_slice %12 {offsets = [0, 896], sizes = [8, 128], strides = [1, 1]} : vector<8x4224xf32> to vector<8x128xf32>
    %80 = vector.extract_strided_slice %47 {offsets = [0, 6], sizes = [8, 1], strides = [1, 1]} : vector<8x32xf32> to vector<8x1xf32>
    %81 = vector.broadcast %80 : vector<8x1xf32> to vector<8x128xf32>
    %82 = arith.mulf %79, %81 : vector<8x128xf32>
    %83 = arith.addf %78, %82 : vector<8x128xf32>
    %84 = vector.extract_strided_slice %12 {offsets = [0, 1024], sizes = [8, 128], strides = [1, 1]} : vector<8x4224xf32> to vector<8x128xf32>
    %85 = vector.extract_strided_slice %47 {offsets = [0, 7], sizes = [8, 1], strides = [1, 1]} : vector<8x32xf32> to vector<8x1xf32>
    %86 = vector.broadcast %85 : vector<8x1xf32> to vector<8x128xf32>
    %87 = arith.mulf %84, %86 : vector<8x128xf32>
    %88 = arith.addf %83, %87 : vector<8x128xf32>
    %89 = vector.extract_strided_slice %12 {offsets = [0, 1152], sizes = [8, 128], strides = [1, 1]} : vector<8x4224xf32> to vector<8x128xf32>
    %90 = vector.extract_strided_slice %47 {offsets = [0, 8], sizes = [8, 1], strides = [1, 1]} : vector<8x32xf32> to vector<8x1xf32>
    %91 = vector.broadcast %90 : vector<8x1xf32> to vector<8x128xf32>
    %92 = arith.mulf %89, %91 : vector<8x128xf32>
    %93 = arith.addf %88, %92 : vector<8x128xf32>
    %94 = vector.extract_strided_slice %12 {offsets = [0, 1280], sizes = [8, 128], strides = [1, 1]} : vector<8x4224xf32> to vector<8x128xf32>
    %95 = vector.extract_strided_slice %47 {offsets = [0, 9], sizes = [8, 1], strides = [1, 1]} : vector<8x32xf32> to vector<8x1xf32>
    %96 = vector.broadcast %95 : vector<8x1xf32> to vector<8x128xf32>
    %97 = arith.mulf %94, %96 : vector<8x128xf32>
    %98 = arith.addf %93, %97 : vector<8x128xf32>
    %99 = vector.extract_strided_slice %12 {offsets = [0, 1408], sizes = [8, 128], strides = [1, 1]} : vector<8x4224xf32> to vector<8x128xf32>
    %100 = vector.extract_strided_slice %47 {offsets = [0, 10], sizes = [8, 1], strides = [1, 1]} : vector<8x32xf32> to vector<8x1xf32>
    %101 = vector.broadcast %100 : vector<8x1xf32> to vector<8x128xf32>
    %102 = arith.mulf %99, %101 : vector<8x128xf32>
    %103 = arith.addf %98, %102 : vector<8x128xf32>
    %104 = vector.extract_strided_slice %12 {offsets = [0, 1536], sizes = [8, 128], strides = [1, 1]} : vector<8x4224xf32> to vector<8x128xf32>
    %105 = vector.extract_strided_slice %47 {offsets = [0, 11], sizes = [8, 1], strides = [1, 1]} : vector<8x32xf32> to vector<8x1xf32>
    %106 = vector.broadcast %105 : vector<8x1xf32> to vector<8x128xf32>
    %107 = arith.mulf %104, %106 : vector<8x128xf32>
    %108 = arith.addf %103, %107 : vector<8x128xf32>
    %109 = vector.extract_strided_slice %12 {offsets = [0, 1664], sizes = [8, 128], strides = [1, 1]} : vector<8x4224xf32> to vector<8x128xf32>
    %110 = vector.extract_strided_slice %47 {offsets = [0, 12], sizes = [8, 1], strides = [1, 1]} : vector<8x32xf32> to vector<8x1xf32>
    %111 = vector.broadcast %110 : vector<8x1xf32> to vector<8x128xf32>
    %112 = arith.mulf %109, %111 : vector<8x128xf32>
    %113 = arith.addf %108, %112 : vector<8x128xf32>
    %114 = vector.extract_strided_slice %12 {offsets = [0, 1792], sizes = [8, 128], strides = [1, 1]} : vector<8x4224xf32> to vector<8x128xf32>
    %115 = vector.extract_strided_slice %47 {offsets = [0, 13], sizes = [8, 1], strides = [1, 1]} : vector<8x32xf32> to vector<8x1xf32>
    %116 = vector.broadcast %115 : vector<8x1xf32> to vector<8x128xf32>
    %117 = arith.mulf %114, %116 : vector<8x128xf32>
    %118 = arith.addf %113, %117 : vector<8x128xf32>
    %119 = vector.extract_strided_slice %12 {offsets = [0, 1920], sizes = [8, 128], strides = [1, 1]} : vector<8x4224xf32> to vector<8x128xf32>
    %120 = vector.extract_strided_slice %47 {offsets = [0, 14], sizes = [8, 1], strides = [1, 1]} : vector<8x32xf32> to vector<8x1xf32>
    %121 = vector.broadcast %120 : vector<8x1xf32> to vector<8x128xf32>
    %122 = arith.mulf %119, %121 : vector<8x128xf32>
    %123 = arith.addf %118, %122 : vector<8x128xf32>
    %124 = vector.extract_strided_slice %12 {offsets = [0, 2048], sizes = [8, 128], strides = [1, 1]} : vector<8x4224xf32> to vector<8x128xf32>
    %125 = vector.extract_strided_slice %47 {offsets = [0, 15], sizes = [8, 1], strides = [1, 1]} : vector<8x32xf32> to vector<8x1xf32>
    %126 = vector.broadcast %125 : vector<8x1xf32> to vector<8x128xf32>
    %127 = arith.mulf %124, %126 : vector<8x128xf32>
    %128 = arith.addf %123, %127 : vector<8x128xf32>
    %129 = vector.extract_strided_slice %12 {offsets = [0, 2176], sizes = [8, 128], strides = [1, 1]} : vector<8x4224xf32> to vector<8x128xf32>
    %130 = vector.extract_strided_slice %47 {offsets = [0, 16], sizes = [8, 1], strides = [1, 1]} : vector<8x32xf32> to vector<8x1xf32>
    %131 = vector.broadcast %130 : vector<8x1xf32> to vector<8x128xf32>
    %132 = arith.mulf %129, %131 : vector<8x128xf32>
    %133 = arith.addf %128, %132 : vector<8x128xf32>
    %134 = vector.extract_strided_slice %12 {offsets = [0, 2304], sizes = [8, 128], strides = [1, 1]} : vector<8x4224xf32> to vector<8x128xf32>
    %135 = vector.extract_strided_slice %47 {offsets = [0, 17], sizes = [8, 1], strides = [1, 1]} : vector<8x32xf32> to vector<8x1xf32>
    %136 = vector.broadcast %135 : vector<8x1xf32> to vector<8x128xf32>
    %137 = arith.mulf %134, %136 : vector<8x128xf32>
    %138 = arith.addf %133, %137 : vector<8x128xf32>
    %139 = vector.extract_strided_slice %12 {offsets = [0, 2432], sizes = [8, 128], strides = [1, 1]} : vector<8x4224xf32> to vector<8x128xf32>
    %140 = vector.extract_strided_slice %47 {offsets = [0, 18], sizes = [8, 1], strides = [1, 1]} : vector<8x32xf32> to vector<8x1xf32>
    %141 = vector.broadcast %140 : vector<8x1xf32> to vector<8x128xf32>
    %142 = arith.mulf %139, %141 : vector<8x128xf32>
    %143 = arith.addf %138, %142 : vector<8x128xf32>
    %144 = vector.extract_strided_slice %12 {offsets = [0, 2560], sizes = [8, 128], strides = [1, 1]} : vector<8x4224xf32> to vector<8x128xf32>
    %145 = vector.extract_strided_slice %47 {offsets = [0, 19], sizes = [8, 1], strides = [1, 1]} : vector<8x32xf32> to vector<8x1xf32>
    %146 = vector.broadcast %145 : vector<8x1xf32> to vector<8x128xf32>
    %147 = arith.mulf %144, %146 : vector<8x128xf32>
    %148 = arith.addf %143, %147 : vector<8x128xf32>
    %149 = vector.extract_strided_slice %12 {offsets = [0, 2688], sizes = [8, 128], strides = [1, 1]} : vector<8x4224xf32> to vector<8x128xf32>
    %150 = vector.extract_strided_slice %47 {offsets = [0, 20], sizes = [8, 1], strides = [1, 1]} : vector<8x32xf32> to vector<8x1xf32>
    %151 = vector.broadcast %150 : vector<8x1xf32> to vector<8x128xf32>
    %152 = arith.mulf %149, %151 : vector<8x128xf32>
    %153 = arith.addf %148, %152 : vector<8x128xf32>
    %154 = vector.extract_strided_slice %12 {offsets = [0, 2816], sizes = [8, 128], strides = [1, 1]} : vector<8x4224xf32> to vector<8x128xf32>
    %155 = vector.extract_strided_slice %47 {offsets = [0, 21], sizes = [8, 1], strides = [1, 1]} : vector<8x32xf32> to vector<8x1xf32>
    %156 = vector.broadcast %155 : vector<8x1xf32> to vector<8x128xf32>
    %157 = arith.mulf %154, %156 : vector<8x128xf32>
    %158 = arith.addf %153, %157 : vector<8x128xf32>
    %159 = vector.extract_strided_slice %12 {offsets = [0, 2944], sizes = [8, 128], strides = [1, 1]} : vector<8x4224xf32> to vector<8x128xf32>
    %160 = vector.extract_strided_slice %47 {offsets = [0, 22], sizes = [8, 1], strides = [1, 1]} : vector<8x32xf32> to vector<8x1xf32>
    %161 = vector.broadcast %160 : vector<8x1xf32> to vector<8x128xf32>
    %162 = arith.mulf %159, %161 : vector<8x128xf32>
    %163 = arith.addf %158, %162 : vector<8x128xf32>
    %164 = vector.extract_strided_slice %12 {offsets = [0, 3072], sizes = [8, 128], strides = [1, 1]} : vector<8x4224xf32> to vector<8x128xf32>
    %165 = vector.extract_strided_slice %47 {offsets = [0, 23], sizes = [8, 1], strides = [1, 1]} : vector<8x32xf32> to vector<8x1xf32>
    %166 = vector.broadcast %165 : vector<8x1xf32> to vector<8x128xf32>
    %167 = arith.mulf %164, %166 : vector<8x128xf32>
    %168 = arith.addf %163, %167 : vector<8x128xf32>
    %169 = vector.extract_strided_slice %12 {offsets = [0, 3200], sizes = [8, 128], strides = [1, 1]} : vector<8x4224xf32> to vector<8x128xf32>
    %170 = vector.extract_strided_slice %47 {offsets = [0, 24], sizes = [8, 1], strides = [1, 1]} : vector<8x32xf32> to vector<8x1xf32>
    %171 = vector.broadcast %170 : vector<8x1xf32> to vector<8x128xf32>
    %172 = arith.mulf %169, %171 : vector<8x128xf32>
    %173 = arith.addf %168, %172 : vector<8x128xf32>
    %174 = vector.extract_strided_slice %12 {offsets = [0, 3328], sizes = [8, 128], strides = [1, 1]} : vector<8x4224xf32> to vector<8x128xf32>
    %175 = vector.extract_strided_slice %47 {offsets = [0, 25], sizes = [8, 1], strides = [1, 1]} : vector<8x32xf32> to vector<8x1xf32>
    %176 = vector.broadcast %175 : vector<8x1xf32> to vector<8x128xf32>
    %177 = arith.mulf %174, %176 : vector<8x128xf32>
    %178 = arith.addf %173, %177 : vector<8x128xf32>
    %179 = vector.extract_strided_slice %12 {offsets = [0, 3456], sizes = [8, 128], strides = [1, 1]} : vector<8x4224xf32> to vector<8x128xf32>
    %180 = vector.extract_strided_slice %47 {offsets = [0, 26], sizes = [8, 1], strides = [1, 1]} : vector<8x32xf32> to vector<8x1xf32>
    %181 = vector.broadcast %180 : vector<8x1xf32> to vector<8x128xf32>
    %182 = arith.mulf %179, %181 : vector<8x128xf32>
    %183 = arith.addf %178, %182 : vector<8x128xf32>
    %184 = vector.extract_strided_slice %12 {offsets = [0, 3584], sizes = [8, 128], strides = [1, 1]} : vector<8x4224xf32> to vector<8x128xf32>
    %185 = vector.extract_strided_slice %47 {offsets = [0, 27], sizes = [8, 1], strides = [1, 1]} : vector<8x32xf32> to vector<8x1xf32>
    %186 = vector.broadcast %185 : vector<8x1xf32> to vector<8x128xf32>
    %187 = arith.mulf %184, %186 : vector<8x128xf32>
    %188 = arith.addf %183, %187 : vector<8x128xf32>
    %189 = vector.extract_strided_slice %12 {offsets = [0, 3712], sizes = [8, 128], strides = [1, 1]} : vector<8x4224xf32> to vector<8x128xf32>
    %190 = vector.extract_strided_slice %47 {offsets = [0, 28], sizes = [8, 1], strides = [1, 1]} : vector<8x32xf32> to vector<8x1xf32>
    %191 = vector.broadcast %190 : vector<8x1xf32> to vector<8x128xf32>
    %192 = arith.mulf %189, %191 : vector<8x128xf32>
    %193 = arith.addf %188, %192 : vector<8x128xf32>
    %194 = vector.extract_strided_slice %12 {offsets = [0, 3840], sizes = [8, 128], strides = [1, 1]} : vector<8x4224xf32> to vector<8x128xf32>
    %195 = vector.extract_strided_slice %47 {offsets = [0, 29], sizes = [8, 1], strides = [1, 1]} : vector<8x32xf32> to vector<8x1xf32>
    %196 = vector.broadcast %195 : vector<8x1xf32> to vector<8x128xf32>
    %197 = arith.mulf %194, %196 : vector<8x128xf32>
    %198 = arith.addf %193, %197 : vector<8x128xf32>
    %199 = vector.extract_strided_slice %12 {offsets = [0, 3968], sizes = [8, 128], strides = [1, 1]} : vector<8x4224xf32> to vector<8x128xf32>
    %200 = vector.extract_strided_slice %47 {offsets = [0, 30], sizes = [8, 1], strides = [1, 1]} : vector<8x32xf32> to vector<8x1xf32>
    %201 = vector.broadcast %200 : vector<8x1xf32> to vector<8x128xf32>
    %202 = arith.mulf %199, %201 : vector<8x128xf32>
    %203 = arith.addf %198, %202 : vector<8x128xf32>
    %204 = vector.extract_strided_slice %12 {offsets = [0, 4096], sizes = [8, 128], strides = [1, 1]} : vector<8x4224xf32> to vector<8x128xf32>
    %205 = vector.extract_strided_slice %47 {offsets = [0, 31], sizes = [8, 1], strides = [1, 1]} : vector<8x32xf32> to vector<8x1xf32>
    %206 = vector.broadcast %205 : vector<8x1xf32> to vector<8x128xf32>
    %207 = arith.mulf %204, %206 : vector<8x128xf32>
    %208 = arith.addf %203, %207 : vector<8x128xf32>
    %209 = arith.addf %13, %208 : vector<8x128xf32>
    %c0_27 = arith.constant 0 : index
    %c0_28 = arith.constant 0 : index
    %210 = vector.load %arg11[%c0_27, %c0_28] : memref<1x128xf32, #tpu.memory_space<vmem>>, vector<1x128xf32>
    %211 = vector.broadcast %210 : vector<1x128xf32> to vector<8x128xf32>
    %212 = arith.mulf %209, %211 : vector<8x128xf32>
    %c0_29 = arith.constant 0 : index
    %c0_30 = arith.constant 0 : index
    %213 = vector.load %arg12[%c0_29, %c0_30] : memref<1x128xf32, #tpu.memory_space<vmem>>, vector<1x128xf32>
    %214 = vector.broadcast %213 : vector<1x128xf32> to vector<8x128xf32>
    %215 = arith.addf %212, %214 : vector<8x128xf32>
    %c0_31 = arith.constant 0 : index
    %c0_32 = arith.constant 0 : index
    %216 = vector.load %arg13[%c0_31, %c0_32] : memref<8x128xf32, #tpu.memory_space<vmem>>, vector<8x128xf32>
    tpu.vector_store %arg13[%c0_31, %c0_32], %215 {strides = array<i32>} : memref<8x128xf32, #tpu.memory_space<vmem>>, vector<8x128xf32>,
    return
  }
  func.func @transform_0(%arg0: i32) -> (i32, i32) {
    %c0_i32 = arith.constant 0 : i32
    %c0_i32_0 = arith.constant 0 : i32
    return %arg0, %c0_i32 : i32, i32
  }
  func.func @transform_1(%arg0: i32) -> (i32, i32) {
    %c0_i32 = arith.constant 0 : i32
    %c0_i32_0 = arith.constant 0 : i32
    %c0_i32_1 = arith.constant 0 : i32
    return %c0_i32, %c0_i32_0 : i32, i32
  }
  func.func @transform_2(%arg0: i32) -> (i32, i32) {
    %c0_i32 = arith.constant 0 : i32
    %c0_i32_0 = arith.constant 0 : i32
    %c0_i32_1 = arith.constant 0 : i32
    return %c0_i32, %c0_i32_0 : i32, i32
  }
  func.func @transform_3(%arg0: i32) -> (i32, i32) {
    %c0_i32 = arith.constant 0 : i32
    %c0_i32_0 = arith.constant 0 : i32
    %c0_i32_1 = arith.constant 0 : i32
    return %c0_i32, %c0_i32_0 : i32, i32
  }
  func.func @transform_4(%arg0: i32) -> (i32, i32) {
    %c0_i32 = arith.constant 0 : i32
    %c0_i32_0 = arith.constant 0 : i32
    %c0_i32_1 = arith.constant 0 : i32
    return %c0_i32, %c0_i32_0 : i32, i32
  }
  func.func @transform_5(%arg0: i32) -> (i32, i32) {
    %c0_i32 = arith.constant 0 : i32
    %c0_i32_0 = arith.constant 0 : i32
    %c0_i32_1 = arith.constant 0 : i32
    return %c0_i32, %c0_i32_0 : i32, i32
  }
  func.func @transform_6(%arg0: i32) -> (i32, i32) {
    %c0_i32 = arith.constant 0 : i32
    %c0_i32_0 = arith.constant 0 : i32
    %c0_i32_1 = arith.constant 0 : i32
    return %c0_i32, %c0_i32_0 : i32, i32
  }
  func.func @transform_7(%arg0: i32) -> (i32, i32) {
    %c0_i32 = arith.constant 0 : i32
    %c0_i32_0 = arith.constant 0 : i32
    %c0_i32_1 = arith.constant 0 : i32
    return %c0_i32, %c0_i32_0 : i32, i32
  }
  func.func @transform_8(%arg0: i32) -> (i32, i32) {
    %c0_i32 = arith.constant 0 : i32
    %c0_i32_0 = arith.constant 0 : i32
    %c0_i32_1 = arith.constant 0 : i32
    return %c0_i32, %c0_i32_0 : i32, i32
  }
  func.func @transform_9(%arg0: i32) -> (i32, i32) {
    %c0_i32 = arith.constant 0 : i32
    %c0_i32_0 = arith.constant 0 : i32
    %c0_i32_1 = arith.constant 0 : i32
    return %c0_i32, %c0_i32_0 : i32, i32
  }
  func.func @transform_10(%arg0: i32) -> (i32, i32) {
    %c0_i32 = arith.constant 0 : i32
    %c0_i32_0 = arith.constant 0 : i32
    %c0_i32_1 = arith.constant 0 : i32
    return %c0_i32, %c0_i32_0 : i32, i32
  }
  func.func @transform_11(%arg0: i32) -> (i32, i32) {
    %c0_i32 = arith.constant 0 : i32
    %c0_i32_0 = arith.constant 0 : i32
    %c0_i32_1 = arith.constant 0 : i32
    return %c0_i32, %c0_i32_0 : i32, i32
  }
  func.func @transform_12(%arg0: i32) -> (i32, i32) {
    %c0_i32 = arith.constant 0 : i32
    %c0_i32_0 = arith.constant 0 : i32
    return %arg0, %c0_i32 : i32, i32
  }
}

</mosaic_0001>

<llo_original>
// kernel: multihead_forward.1
$region0: #{multihead_forward.1}
  #allocation0 [shape = 'u32[]', space=smem, size = 0x4, offset = 0x4, fixed_abs, tag = 'smem constant byte address 0x4 - core index']
  #allocation1 [shape = 'u32[144,128]{1,0:T(1,128)}', space=vmem, size = 0x12000, scoped, tag = 'internal scratch']
  #allocation2 [shape = 'f32[1,1]{1,0:T(1,128)S(6)}', space=smem, size = 0x200, scoped, tag = 'scoped memory for multihead_forward.1']
  #allocation3 [shape = 'f32[1,1]{1,0:T(1,128)S(6)}', space=smem, size = 0x200, scoped, tag = 'scoped memory for multihead_forward.1']
  %s0 = inlined_call_operand.vmem [shape: f32[16,128], index: 0, kind: input, shape index: {}]
  %s1 = inlined_call_operand.vmem [shape: bf16[128,4224], index: 1, kind: input, shape index: {}]
  %s2 = inlined_call_operand.vmem [shape: f32[1,4224], index: 2, kind: input, shape index: {}]
  %s3 = inlined_call_operand.vmem [shape: f32[1,4224], index: 3, kind: input, shape index: {}]
  %s4 = inlined_call_operand.vmem [shape: bf16[128,256], index: 4, kind: input, shape index: {}]
  %s5 = inlined_call_operand.vmem [shape: f32[1,256], index: 5, kind: input, shape index: {}]
  %s6 = inlined_call_operand.vmem [shape: bf16[256,32], index: 6, kind: input, shape index: {}]
  %s7 = inlined_call_operand.vmem [shape: f32[1,32], index: 7, kind: input, shape index: {}]
  %s8 = inlined_call_operand.<no memory space> [shape: f32[1,1], index: 8, kind: input, shape index: {}]
  %s9 = inlined_call_operand.<no memory space> [shape: f32[1,1], index: 9, kind: input, shape index: {}]
  %s10 = inlined_call_operand.vmem [shape: f32[1,128], index: 10, kind: input, shape index: {}]
  %s11 = inlined_call_operand.vmem [shape: f32[1,128], index: 11, kind: input, shape index: {}]
  %s12 = inlined_call_operand.hbm [shape: f32[16,128], index: 12, kind: output, shape index: {}]
  %s13 = sld [smem:[#allocation0]]
  $region81: #{multihead_forward.1} parent=0
    _
  %s15 = ssub.s32 1, %s13
  %s16 = scalar_select 0, %s15, %s13
  %17 = sst [smem:[#allocation2]] %s8
  %18 = sst [smem:[#allocation3]] %s9
  $region1: #{multihead_forward.1} parent=0
    #allocation4 [shape = 'u8[8192]{0}', space=vmem, size = 0x2000, scoped, tag = 'output window, operand 0']
    #allocation5 [shape = 's32[2]{0}', space=sflag, size = 0x8, scoped, tag = 'scoped memory for multihead_forward.1']
    %19 = vsyncpa [#allocation5], 0
    %s20 = scalar_lea.sflag [#allocation5], 1
    %21 = vsyncpa %s20, 0
    loop: start=0, step=1, limit=4
    $region2: #{multihead_forward.1} parent=1 // loop_pre_header
      _
    $region3: #{multihead_forward.1} parent=1 // loop_header
      %s23 = sphi 0, %s27
      %p24 = scmp.ge.s32.totalorder %s23, 4
      %s33 = sphi 0, %s35
      %s36 = sphi 0, %s33
      %s37 = sphi 0, %s36
      %s53 = sphi 0, %s37
      %s57 = sphi 0, %s57
      %s59 = sphi 0, %s57
      %s60 = sphi 0, %s59
      %s74 = sphi 0, %s60
      %s78 = sphi 0, %s78
      %s80 = sphi 0, %s78
      %s81 = sphi 0, %s80
      %s95 = sphi 0, %s81
      %s99 = sphi 0, %s99
      %s101 = sphi 0, %s99
      %s102 = sphi 0, %s101
      %s116 = sphi 0, %s102
      %s120 = sphi 0, %s120
      %s122 = sphi 0, %s120
      %s123 = sphi 0, %s122
      %s137 = sphi 0, %s123
      %s141 = sphi 0, %s141
      %s143 = sphi 0, %s141
      %s144 = sphi 0, %s143
      %s158 = sphi 0, %s144
      %s162 = sphi 0, %s162
      %s164 = sphi 0, %s162
      %s165 = sphi 0, %s164
      %s179 = sphi 0, %s165
      %s183 = sphi 0, %s183
      %s185 = sphi 0, %s183
      %s186 = sphi 0, %s185
      %s200 = sphi 0, %s186
      %s204 = sphi 0, %s204
      %s206 = sphi 0, %s204
      %s207 = sphi 0, %s206
      %s221 = sphi 0, %s207
      %s225 = sphi 0, %s225
      %s227 = sphi 0, %s225
      %s228 = sphi 0, %s227
      %s242 = sphi 0, %s228
      %s246 = sphi 0, %s246
      %s248 = sphi 0, %s246
      %s249 = sphi 0, %s248
      %s263 = sphi 0, %s249
      %s267 = sphi 0, %s267
      %s269 = sphi 0, %s267
      %s270 = sphi 0, %s269
      %s284 = sphi 0, %s270
      %s290 = sphi 0, %s292
      %s293 = sphi 0, %s290
      %s294 = sphi 0, %s293
      %s310 = sphi 0, %s294
    $region4: #{multihead_forward.1} parent=1 // loop_header_branch
      %26 = sbr.rel (%p24) target = $region8
    $region5: #{multihead_forward.1} parent=1 // loop_body
      %s28 = ssub.s32 %s23, 1
      %s29 = ssub.s32 %s23, 2
      %s30 = sadd.s32 %s23, 1
      %s31 = ssub.s32 %s23, %s30
      %p32 = scmp.eq.s32.totalorder %s31, 0
      %s34 = sadd.s32 %s33, 1
      %s35 = scalar_select %p32, %s33, %s34
      %p38 = pneg %p32
      %p39 = scmp.eq.s32.totalorder %s23, 1
      %p40 = por %p38, %p39
      %p41 = scmp.ne.s32.totalorder %s33, %s36
      %p42 = scmp.eq.s32.totalorder %s23, 0
      %p43 = por %p41, %p42
      %p44 = scmp.ne.s32.totalorder %s33, %s36
      %p45 = scmp.eq.s32.totalorder %s28, 1
      %p46 = por %p44, %p45
      %p47 = scmp.ne.s32.totalorder %s36, %s37
      %p48 = scmp.eq.s32.totalorder %s28, 0
      %p49 = por %p47, %p48
      %p50 = scmp.ne.s32.totalorder %s36, %s37
      %p51 = scmp.eq.s32.totalorder %s29, 1
      %p52 = por %p50, %p51
      %p54 = scmp.ne.s32.totalorder %s37, %s53
      %p55 = scmp.eq.s32.totalorder %s29, 0
      %p56 = por %p54, %p55
      %s58 = sadd.s32 %s57, 1
      %p61 = scmp.eq.s32.totalorder %s23, 1
      %p62 = scmp.ne.s32.totalorder %s57, %s59
      %p63 = scmp.eq.s32.totalorder %s23, 0
      %p64 = por %p62, %p63
      %p65 = scmp.ne.s32.totalorder %s57, %s59
      %p66 = scmp.eq.s32.totalorder %s28, 1
      %p67 = por %p65, %p66
      %p68 = scmp.ne.s32.totalorder %s59, %s60
      %p69 = scmp.eq.s32.totalorder %s28, 0
      %p70 = por %p68, %p69
      %p71 = scmp.ne.s32.totalorder %s59, %s60
      %p72 = scmp.eq.s32.totalorder %s29, 1
      %p73 = por %p71, %p72
      %p75 = scmp.ne.s32.totalorder %s60, %s74
      %p76 = scmp.eq.s32.totalorder %s29, 0
      %p77 = por %p75, %p76
      %s79 = sadd.s32 %s78, 1
      %p82 = scmp.eq.s32.totalorder %s23, 1
      %p83 = scmp.ne.s32.totalorder %s78, %s80
      %p84 = scmp.eq.s32.totalorder %s23, 0
      %p85 = por %p83, %p84
      %p86 = scmp.ne.s32.totalorder %s78, %s80
      %p87 = scmp.eq.s32.totalorder %s28, 1
      %p88 = por %p86, %p87
      %p89 = scmp.ne.s32.totalorder %s80, %s81
      %p90 = scmp.eq.s32.totalorder %s28, 0
      %p91 = por %p89, %p90
      %p92 = scmp.ne.s32.totalorder %s80, %s81
      %p93 = scmp.eq.s32.totalorder %s29, 1
      %p94 = por %p92, %p93
      %p96 = scmp.ne.s32.totalorder %s81, %s95
      %p97 = scmp.eq.s32.totalorder %s29, 0
      %p98 = por %p96, %p97
      %s100 = sadd.s32 %s99, 1
      %p103 = scmp.eq.s32.totalorder %s23, 1
      %p104 = scmp.ne.s32.totalorder %s99, %s101
      %p105 = scmp.eq.s32.totalorder %s23, 0
      %p106 = por %p104, %p105
      %p107 = scmp.ne.s32.totalorder %s99, %s101
      %p108 = scmp.eq.s32.totalorder %s28, 1
      %p109 = por %p107, %p108
      %p110 = scmp.ne.s32.totalorder %s101, %s102
      %p111 = scmp.eq.s32.totalorder %s28, 0
      %p112 = por %p110, %p111
      %p113 = scmp.ne.s32.totalorder %s101, %s102
      %p114 = scmp.eq.s32.totalorder %s29, 1
      %p115 = por %p113, %p114
      %p117 = scmp.ne.s32.totalorder %s102, %s116
      %p118 = scmp.eq.s32.totalorder %s29, 0
      %p119 = por %p117, %p118
      %s121 = sadd.s32 %s120, 1
      %p124 = scmp.eq.s32.totalorder %s23, 1
      %p125 = scmp.ne.s32.totalorder %s120, %s122
      %p126 = scmp.eq.s32.totalorder %s23, 0
      %p127 = por %p125, %p126
      %p128 = scmp.ne.s32.totalorder %s120, %s122
      %p129 = scmp.eq.s32.totalorder %s28, 1
      %p130 = por %p128, %p129
      %p131 = scmp.ne.s32.totalorder %s122, %s123
      %p132 = scmp.eq.s32.totalorder %s28, 0
      %p133 = por %p131, %p132
      %p134 = scmp.ne.s32.totalorder %s122, %s123
      %p135 = scmp.eq.s32.totalorder %s29, 1
      %p136 = por %p134, %p135
      %p138 = scmp.ne.s32.totalorder %s123, %s137
      %p139 = scmp.eq.s32.totalorder %s29, 0
      %p140 = por %p138, %p139
      %s142 = sadd.s32 %s141, 1
      %p145 = scmp.eq.s32.totalorder %s23, 1
      %p146 = scmp.ne.s32.totalorder %s141, %s143
      %p147 = scmp.eq.s32.totalorder %s23, 0
      %p148 = por %p146, %p147
      %p149 = scmp.ne.s32.totalorder %s141, %s143
      %p150 = scmp.eq.s32.totalorder %s28, 1
      %p151 = por %p149, %p150
      %p152 = scmp.ne.s32.totalorder %s143, %s144
      %p153 = scmp.eq.s32.totalorder %s28, 0
      %p154 = por %p152, %p153
      %p155 = scmp.ne.s32.totalorder %s143, %s144
      %p156 = scmp.eq.s32.totalorder %s29, 1
      %p157 = por %p155, %p156
      %p159 = scmp.ne.s32.totalorder %s144, %s158
      %p160 = scmp.eq.s32.totalorder %s29, 0
      %p161 = por %p159, %p160
      %s163 = sadd.s32 %s162, 1
      %p166 = scmp.eq.s32.totalorder %s23, 1
      %p167 = scmp.ne.s32.totalorder %s162, %s164
      %p168 = scmp.eq.s32.totalorder %s23, 0
      %p169 = por %p167, %p168
      %p170 = scmp.ne.s32.totalorder %s162, %s164
      %p171 = scmp.eq.s32.totalorder %s28, 1
      %p172 = por %p170, %p171
      %p173 = scmp.ne.s32.totalorder %s164, %s165
      %p174 = scmp.eq.s32.totalorder %s28, 0
      %p175 = por %p173, %p174
      %p176 = scmp.ne.s32.totalorder %s164, %s165
      %p177 = scmp.eq.s32.totalorder %s29, 1
      %p178 = por %p176, %p177
      %p180 = scmp.ne.s32.totalorder %s165, %s179
      %p181 = scmp.eq.s32.totalorder %s29, 0
      %p182 = por %p180, %p181
      %s184 = sadd.s32 %s183, 1
      %p187 = scmp.eq.s32.totalorder %s23, 1
      %p188 = scmp.ne.s32.totalorder %s183, %s185
      %p189 = scmp.eq.s32.totalorder %s23, 0
      %p190 = por %p188, %p189
      %p191 = scmp.ne.s32.totalorder %s183, %s185
      %p192 = scmp.eq.s32.totalorder %s28, 1
      %p193 = por %p191, %p192
      %p194 = scmp.ne.s32.totalorder %s185, %s186
      %p195 = scmp.eq.s32.totalorder %s28, 0
      %p196 = por %p194, %p195
      %p197 = scmp.ne.s32.totalorder %s185, %s186
      %p198 = scmp.eq.s32.totalorder %s29, 1
      %p199 = por %p197, %p198
      %p201 = scmp.ne.s32.totalorder %s186, %s200
      %p202 = scmp.eq.s32.totalorder %s29, 0
      %p203 = por %p201, %p202
      %s205 = sadd.s32 %s204, 1
      %p208 = scmp.eq.s32.totalorder %s23, 1
      %p209 = scmp.ne.s32.totalorder %s204, %s206
      %p210 = scmp.eq.s32.totalorder %s23, 0
      %p211 = por %p209, %p210
      %p212 = scmp.ne.s32.totalorder %s204, %s206
      %p213 = scmp.eq.s32.totalorder %s28, 1
      %p214 = por %p212, %p213
      %p215 = scmp.ne.s32.totalorder %s206, %s207
      %p216 = scmp.eq.s32.totalorder %s28, 0
      %p217 = por %p215, %p216
      %p218 = scmp.ne.s32.totalorder %s206, %s207
      %p219 = scmp.eq.s32.totalorder %s29, 1
      %p220 = por %p218, %p219
      %p222 = scmp.ne.s32.totalorder %s207, %s221
      %p223 = scmp.eq.s32.totalorder %s29, 0
      %p224 = por %p222, %p223
      %s226 = sadd.s32 %s225, 1
      %p229 = scmp.eq.s32.totalorder %s23, 1
      %p230 = scmp.ne.s32.totalorder %s225, %s227
      %p231 = scmp.eq.s32.totalorder %s23, 0
      %p232 = por %p230, %p231
      %p233 = scmp.ne.s32.totalorder %s225, %s227
      %p234 = scmp.eq.s32.totalorder %s28, 1
      %p235 = por %p233, %p234
      %p236 = scmp.ne.s32.totalorder %s227, %s228
      %p237 = scmp.eq.s32.totalorder %s28, 0
      %p238 = por %p236, %p237
      %p239 = scmp.ne.s32.totalorder %s227, %s228
      %p240 = scmp.eq.s32.totalorder %s29, 1
      %p241 = por %p239, %p240
      %p243 = scmp.ne.s32.totalorder %s228, %s242
      %p244 = scmp.eq.s32.totalorder %s29, 0
      %p245 = por %p243, %p244
      %s247 = sadd.s32 %s246, 1
      %p250 = scmp.eq.s32.totalorder %s23, 1
      %p251 = scmp.ne.s32.totalorder %s246, %s248
      %p252 = scmp.eq.s32.totalorder %s23, 0
      %p253 = por %p251, %p252
      %p254 = scmp.ne.s32.totalorder %s246, %s248
      %p255 = scmp.eq.s32.totalorder %s28, 1
      %p256 = por %p254, %p255
      %p257 = scmp.ne.s32.totalorder %s248, %s249
      %p258 = scmp.eq.s32.totalorder %s28, 0
      %p259 = por %p257, %p258
      %p260 = scmp.ne.s32.totalorder %s248, %s249
      %p261 = scmp.eq.s32.totalorder %s29, 1
      %p262 = por %p260, %p261
      %p264 = scmp.ne.s32.totalorder %s249, %s263
      %p265 = scmp.eq.s32.totalorder %s29, 0
      %p266 = por %p264, %p265
      %s268 = sadd.s32 %s267, 1
      %p271 = scmp.eq.s32.totalorder %s23, 1
      %p272 = scmp.ne.s32.totalorder %s267, %s269
      %p273 = scmp.eq.s32.totalorder %s23, 0
      %p274 = por %p272, %p273
      %p275 = scmp.ne.s32.totalorder %s267, %s269
      %p276 = scmp.eq.s32.totalorder %s28, 1
      %p277 = por %p275, %p276
      %p278 = scmp.ne.s32.totalorder %s269, %s270
      %p279 = scmp.eq.s32.totalorder %s28, 0
      %p280 = por %p278, %p279
      %p281 = scmp.ne.s32.totalorder %s269, %s270
      %p282 = scmp.eq.s32.totalorder %s29, 1
      %p283 = por %p281, %p282
      %p285 = scmp.ne.s32.totalorder %s270, %s284
      %p286 = scmp.eq.s32.totalorder %s29, 0
      %p287 = por %p285, %p286
      %s288 = ssub.s32 %s23, %s30
      %p289 = scmp.eq.s32.totalorder %s288, 0
      %s291 = sadd.s32 %s290, 1
      %s292 = scalar_select %p289, %s290, %s291
      %p295 = pneg %p289
      %p296 = scmp.eq.s32.totalorder %s23, 1
      %p297 = por %p295, %p296
      %p298 = scmp.ne.s32.totalorder %s290, %s293
      %p299 = scmp.eq.s32.totalorder %s23, 0
      %p300 = por %p298, %p299
      %p301 = scmp.ne.s32.totalorder %s290, %s293
      %p302 = scmp.eq.s32.totalorder %s28, 1
      %p303 = por %p301, %p302
      %p304 = scmp.ne.s32.totalorder %s293, %s294
      %p305 = scmp.eq.s32.totalorder %s28, 0
      %p306 = por %p304, %p305
      %p307 = scmp.ne.s32.totalorder %s293, %s294
      %p308 = scmp.eq.s32.totalorder %s29, 1
      %p309 = por %p307, %p308
      %p311 = scmp.ne.s32.totalorder %s294, %s310
      %p312 = scmp.eq.s32.totalorder %s29, 0
      %p313 = por %p311, %p312
      %p314 = scmp.le.s32.totalorder 1, %s23
      %p315 = scmp.lt.s32.totalorder %s23, 3
      %p316 = pnand %p314, %p315
      %p317 = pneg %p316
      // Predicated region
      $region9: #{multihead_forward.1} parent=5 // pred_check
        _
      $region10: #{multihead_forward.1} parent=5 // pred_check_branch
        %319 = sbr.rel (%p316) target = $region12
      $region11: #{multihead_forward.1} parent=5 // pred_region
        %s320 = ssub.s32 %s23, 1
        // Predicated region
        $region13: #{multihead_forward.1} parent=11 // pred_check
          %p321 = pneg %p70
        $region14: #{multihead_forward.1} parent=11 // pred_check_branch
          %323 = sbr.rel (%p321) target = $region16
        $region15: #{multihead_forward.1} parent=11 // pred_region
          _
        $region16: #{multihead_forward.1} parent=11 // pred_fallthru
          _
        // Predicated region
        $region17: #{multihead_forward.1} parent=11 // pred_check
          %p324 = pneg %p91
        $region18: #{multihead_forward.1} parent=11 // pred_check_branch
          %326 = sbr.rel (%p324) target = $region20
        $region19: #{multihead_forward.1} parent=11 // pred_region
          _
        $region20: #{multihead_forward.1} parent=11 // pred_fallthru
          _
        // Predicated region
        $region21: #{multihead_forward.1} parent=11 // pred_check
          %p327 = pneg %p112
        $region22: #{multihead_forward.1} parent=11 // pred_check_branch
          %329 = sbr.rel (%p327) target = $region24
        $region23: #{multihead_forward.1} parent=11 // pred_region
          _
        $region24: #{multihead_forward.1} parent=11 // pred_fallthru
          _
        // Predicated region
        $region25: #{multihead_forward.1} parent=11 // pred_check
          %p330 = pneg %p133
        $region26: #{multihead_forward.1} parent=11 // pred_check_branch
          %332 = sbr.rel (%p330) target = $region28
        $region27: #{multihead_forward.1} parent=11 // pred_region
          _
        $region28: #{multihead_forward.1} parent=11 // pred_fallthru
          _
        // Predicated region
        $region29: #{multihead_forward.1} parent=11 // pred_check
          %p333 = pneg %p154
        $region30: #{multihead_forward.1} parent=11 // pred_check_branch
          %335 = sbr.rel (%p333) target = $region32
        $region31: #{multihead_forward.1} parent=11 // pred_region
          _
        $region32: #{multihead_forward.1} parent=11 // pred_fallthru
          _
        // Predicated region
        $region33: #{multihead_forward.1} parent=11 // pred_check
          %p336 = pneg %p175
        $region34: #{multihead_forward.1} parent=11 // pred_check_branch
          %338 = sbr.rel (%p336) target = $region36
        $region35: #{multihead_forward.1} parent=11 // pred_region
          _
        $region36: #{multihead_forward.1} parent=11 // pred_fallthru
          _
        // Predicated region
        $region37: #{multihead_forward.1} parent=11 // pred_check
          %p339 = pneg %p196
        $region38: #{multihead_forward.1} parent=11 // pred_check_branch
          %341 = sbr.rel (%p339) target = $region40
        $region39: #{multihead_forward.1} parent=11 // pred_region
          _
        $region40: #{multihead_forward.1} parent=11 // pred_fallthru
          _
        // Predicated region
        $region41: #{multihead_forward.1} parent=11 // pred_check
          %p342 = pneg %p217
        $region42: #{multihead_forward.1} parent=11 // pred_check_branch
          %344 = sbr.rel (%p342) target = $region44
        $region43: #{multihead_forward.1} parent=11 // pred_region
          _
        $region44: #{multihead_forward.1} parent=11 // pred_fallthru
          _
        // Predicated region
        $region45: #{multihead_forward.1} parent=11 // pred_check
          %p345 = pneg %p238
        $region46: #{multihead_forward.1} parent=11 // pred_check_branch
          %347 = sbr.rel (%p345) target = $region48
        $region47: #{multihead_forward.1} parent=11 // pred_region
          _
        $region48: #{multihead_forward.1} parent=11 // pred_fallthru
          _
        // Predicated region
        $region49: #{multihead_forward.1} parent=11 // pred_check
          %p348 = pneg %p259
        $region50: #{multihead_forward.1} parent=11 // pred_check_branch
          %350 = sbr.rel (%p348) target = $region52
        $region51: #{multihead_forward.1} parent=11 // pred_region
          _
        $region52: #{multihead_forward.1} parent=11 // pred_fallthru
          _
        // Predicated region
        $region53: #{multihead_forward.1} parent=11 // pred_check
          %p351 = pneg %p280
        $region54: #{multihead_forward.1} parent=11 // pred_check_branch
          %353 = sbr.rel (%p351) target = $region56
        $region55: #{multihead_forward.1} parent=11 // pred_region
          _
        $region56: #{multihead_forward.1} parent=11 // pred_fallthru
          _
      $region12: #{multihead_forward.1} parent=5 // pred_fallthru
        _
      %p354 = scmp.lt.s32.totalorder %s23, 2
      // Predicated region
      $region57: #{multihead_forward.1} parent=5 // pred_check
        %p355 = pneg %p354
      $region58: #{multihead_forward.1} parent=5 // pred_check_branch
        %357 = sbr.rel (%p355) target = $region60
      $region59: #{multihead_forward.1} parent=5 // pred_region
        // Predicated region
        $region61: #{multihead_forward.1} parent=59 // pred_check
          %p358 = pneg %p43
        $region62: #{multihead_forward.1} parent=59 // pred_check_branch
          %360 = sbr.rel (%p358) target = $region64
        $region63: #{multihead_forward.1} parent=59 // pred_region
          %p361 = scmp.lt.s32.totalorder %s23, 1
          %s362 = scalar_select %p361, %s23, 1
          %s363 = smul.addr %s362, 8
          %s364 = scalar_lea.vmem %s0, %s363
        $region64: #{multihead_forward.1} parent=59 // pred_fallthru
          _
      $region60: #{multihead_forward.1} parent=5 // pred_fallthru
        _
      %p365 = scmp.le.s32.totalorder 1, %s23
      %p366 = scmp.lt.s32.totalorder %s23, 3
      %p367 = pnand %p365, %p366
      %p368 = pneg %p367
      // Predicated region
      $region65: #{multihead_forward.1} parent=5 // pred_check
        _
      $region66: #{multihead_forward.1} parent=5 // pred_check_branch
        %370 = sbr.rel (%p367) target = $region68
      $region67: #{multihead_forward.1} parent=5 // pred_region
        %s371 = ssub.s32 %s23, 1
        %p372 = scmp.lt.s32.totalorder %s28, 1
        %s373 = scalar_select %p372, %s28, 1
        %s374 = smul.addr %s373, 8
        %s375 = scalar_lea.vmem %s0, %s374
        %p376 = pneg %p49
        %p377 = pneg %p46
        %p378 = pneg %p70
        %p379 = pneg %p67
        %p380 = pneg %p91
        %p381 = pneg %p88
        %p382 = pneg %p112
        %p383 = pneg %p109
        %p384 = pneg %p133
        %p385 = pneg %p130
        %p386 = pneg %p154
        %p387 = pneg %p151
        %p388 = pneg %p175
        %p389 = pneg %p172
        %p390 = pneg %p196
        %p391 = pneg %p193
        %p392 = pneg %p217
        %p393 = pneg %p214
        %p394 = pneg %p238
        %p395 = pneg %p235
        %p396 = pneg %p259
        %p397 = pneg %p256
        %p398 = pneg %p280
        %p399 = pneg %p277
        %p400 = pneg %p306
        %p401 = pneg %p303
        %s402 = sand.u32 %s293, 1
        %s403 = scalar_lea.sflag [#allocation5], %s402
        %s404 = sand.u32 %s293, 1
        %s405 = smul.addr %s404, 8
        %s406 = scalar_lea.vmem [#allocation4], %s405
        %p407 = scmp.lt.s32.totalorder %s28, 1
        %s408 = scalar_select %p407, %s28, 1
        %s409 = smul.addr %s408, 8
        %s410 = scalar_lea.vmem %s0, %s409
        %v412 = vld [vmem:[%s410] sm:$0xff]
        %v413 = vpack.c.bf16 %v412, %v412
        %v414 = vld [vmem:[%s1] sm:$0xff]
        %v415 = vld [vmem:[%s1 + $0x8] sm:$0xff]
        %v416 = vld [vmem:[%s1 + $0x10] sm:$0xff]
        %v417 = vld [vmem:[%s1 + $0x18] sm:$0xff]
        %v418 = vld [vmem:[%s1 + $0x20] sm:$0xff]
        %v419 = vld [vmem:[%s1 + $0x28] sm:$0xff]
        %v420 = vld [vmem:[%s1 + $0x30] sm:$0xff]
        %v421 = vld [vmem:[%s1 + $0x38] sm:$0xff]
        %v422 = vld [vmem:[%s1 + $0x40] sm:$0xff]
        %v423 = vld [vmem:[%s1 + $0x48] sm:$0xff]
        %v424 = vld [vmem:[%s1 + $0x50] sm:$0xff]
        %v425 = vld [vmem:[%s1 + $0x58] sm:$0xff]
        %v426 = vld [vmem:[%s1 + $0x60] sm:$0xff]
        %v427 = vld [vmem:[%s1 + $0x68] sm:$0xff]
        %v428 = vld [vmem:[%s1 + $0x70] sm:$0xff]
        %v429 = vld [vmem:[%s1 + $0x78] sm:$0xff]
        %v430 = vld [vmem:[%s1 + $0x80] sm:$0xf]
        %v431 = vld [vmem:[%s1 + $0x84] sm:$0xff]
        %v432 = vld [vmem:[%s1 + $0x8c] sm:$0xff]
        %v433 = vld [vmem:[%s1 + $0x94] sm:$0xff]
        %v434 = vld [vmem:[%s1 + $0x9c] sm:$0xff]
        %v435 = vld [vmem:[%s1 + $0xa4] sm:$0xff]
        %v436 = vld [vmem:[%s1 + $0xac] sm:$0xff]
        %v437 = vld [vmem:[%s1 + $0xb4] sm:$0xff]
        %v438 = vld [vmem:[%s1 + $0xbc] sm:$0xff]
        %v439 = vld [vmem:[%s1 + $0xc4] sm:$0xff]
        %v440 = vld [vmem:[%s1 + $0xcc] sm:$0xff]
        %v441 = vld [vmem:[%s1 + $0xd4] sm:$0xff]
        %v442 = vld [vmem:[%s1 + $0xdc] sm:$0xff]
        %v443 = vld [vmem:[%s1 + $0xe4] sm:$0xff]
        %v444 = vld [vmem:[%s1 + $0xec] sm:$0xff]
        %v445 = vld [vmem:[%s1 + $0xf4] sm:$0xff]
        %v446 = vld [vmem:[%s1 + $0xfc] sm:$0xff]
        %v447 = vld [vmem:[%s1 + $0x104] sm:$0xf]
        %v448 = vld [vmem:[%s1 + $0x108] sm:$0xff]
        %v449 = vld [vmem:[%s1 + $0x110] sm:$0xff]
        %v450 = vld [vmem:[%s1 + $0x118] sm:$0xff]
        %v451 = vld [vmem:[%s1 + $0x120] sm:$0xff]
        %v452 = vld [vmem:[%s1 + $0x128] sm:$0xff]
        %v453 = vld [vmem:[%s1 + $0x130] sm:$0xff]
        %v454 = vld [vmem:[%s1 + $0x138] sm:$0xff]
        %v455 = vld [vmem:[%s1 + $0x140] sm:$0xff]
        %v456 = vld [vmem:[%s1 + $0x148] sm:$0xff]
        %v457 = vld [vmem:[%s1 + $0x150] sm:$0xff]
        %v458 = vld [vmem:[%s1 + $0x158] sm:$0xff]
        %v459 = vld [vmem:[%s1 + $0x160] sm:$0xff]
        %v460 = vld [vmem:[%s1 + $0x168] sm:$0xff]
        %v461 = vld [vmem:[%s1 + $0x170] sm:$0xff]
        %v462 = vld [vmem:[%s1 + $0x178] sm:$0xff]
        %v463 = vld [vmem:[%s1 + $0x180] sm:$0xff]
        %v464 = vld [vmem:[%s1 + $0x188] sm:$0xf]
        %v465 = vld [vmem:[%s1 + $0x18c] sm:$0xff]
        %v466 = vld [vmem:[%s1 + $0x194] sm:$0xff]
        %v467 = vld [vmem:[%s1 + $0x19c] sm:$0xff]
        %v468 = vld [vmem:[%s1 + $0x1a4] sm:$0xff]
        %v469 = vld [vmem:[%s1 + $0x1ac] sm:$0xff]
        %v470 = vld [vmem:[%s1 + $0x1b4] sm:$0xff]
        %v471 = vld [vmem:[%s1 + $0x1bc] sm:$0xff]
        %v472 = vld [vmem:[%s1 + $0x1c4] sm:$0xff]
        %v473 = vld [vmem:[%s1 + $0x1cc] sm:$0xff]
        %v474 = vld [vmem:[%s1 + $0x1d4] sm:$0xff]
        %v475 = vld [vmem:[%s1 + $0x1dc] sm:$0xff]
        %v476 = vld [vmem:[%s1 + $0x1e4] sm:$0xff]
        %v477 = vld [vmem:[%s1 + $0x1ec] sm:$0xff]
        %v478 = vld [vmem:[%s1 + $0x1f4] sm:$0xff]
        %v479 = vld [vmem:[%s1 + $0x1fc] sm:$0xff]
        %v480 = vld [vmem:[%s1 + $0x204] sm:$0xff]
        %v481 = vld [vmem:[%s1 + $0x20c] sm:$0xf]
        %v482 = vld [vmem:[%s1 + $0x210] sm:$0xff]
        %v483 = vld [vmem:[%s1 + $0x218] sm:$0xff]
        %v484 = vld [vmem:[%s1 + $0x220] sm:$0xff]
        %v485 = vld [vmem:[%s1 + $0x228] sm:$0xff]
        %v486 = vld [vmem:[%s1 + $0x230] sm:$0xff]
        %v487 = vld [vmem:[%s1 + $0x238] sm:$0xff]
        %v488 = vld [vmem:[%s1 + $0x240] sm:$0xff]
        %v489 = vld [vmem:[%s1 + $0x248] sm:$0xff]
        %v490 = vld [vmem:[%s1 + $0x250] sm:$0xff]
        %v491 = vld [vmem:[%s1 + $0x258] sm:$0xff]
        %v492 = vld [vmem:[%s1 + $0x260] sm:$0xff]
        %v493 = vld [vmem:[%s1 + $0x268] sm:$0xff]
        %v494 = vld [vmem:[%s1 + $0x270] sm:$0xff]
        %v495 = vld [vmem:[%s1 + $0x278] sm:$0xff]
        %v496 = vld [vmem:[%s1 + $0x280] sm:$0xff]
        %v497 = vld [vmem:[%s1 + $0x288] sm:$0xff]
        %v498 = vld [vmem:[%s1 + $0x290] sm:$0xf]
        %v499 = vld [vmem:[%s1 + $0x294] sm:$0xff]
        %v500 = vld [vmem:[%s1 + $0x29c] sm:$0xff]
        %v501 = vld [vmem:[%s1 + $0x2a4] sm:$0xff]
        %v502 = vld [vmem:[%s1 + $0x2ac] sm:$0xff]
        %v503 = vld [vmem:[%s1 + $0x2b4] sm:$0xff]
        %v504 = vld [vmem:[%s1 + $0x2bc] sm:$0xff]
        %v505 = vld [vmem:[%s1 + $0x2c4] sm:$0xff]
        %v506 = vld [vmem:[%s1 + $0x2cc] sm:$0xff]
        %v507 = vld [vmem:[%s1 + $0x2d4] sm:$0xff]
        %v508 = vld [vmem:[%s1 + $0x2dc] sm:$0xff]
        %v509 = vld [vmem:[%s1 + $0x2e4] sm:$0xff]
        %v510 = vld [vmem:[%s1 + $0x2ec] sm:$0xff]
        %v511 = vld [vmem:[%s1 + $0x2f4] sm:$0xff]
        %v512 = vld [vmem:[%s1 + $0x2fc] sm:$0xff]
        %v513 = vld [vmem:[%s1 + $0x304] sm:$0xff]
        %v514 = vld [vmem:[%s1 + $0x30c] sm:$0xff]
        %v515 = vld [vmem:[%s1 + $0x314] sm:$0xf]
        %v516 = vld [vmem:[%s1 + $0x318] sm:$0xff]
        %v517 = vld [vmem:[%s1 + $0x320] sm:$0xff]
        %v518 = vld [vmem:[%s1 + $0x328] sm:$0xff]
        %v519 = vld [vmem:[%s1 + $0x330] sm:$0xff]
        %v520 = vld [vmem:[%s1 + $0x338] sm:$0xff]
        %v521 = vld [vmem:[%s1 + $0x340] sm:$0xff]
        %v522 = vld [vmem:[%s1 + $0x348] sm:$0xff]
        %v523 = vld [vmem:[%s1 + $0x350] sm:$0xff]
        %v524 = vld [vmem:[%s1 + $0x358] sm:$0xff]
        %v525 = vld [vmem:[%s1 + $0x360] sm:$0xff]
        %v526 = vld [vmem:[%s1 + $0x368] sm:$0xff]
        %v527 = vld [vmem:[%s1 + $0x370] sm:$0xff]
        %v528 = vld [vmem:[%s1 + $0x378] sm:$0xff]
        %v529 = vld [vmem:[%s1 + $0x380] sm:$0xff]
        %v530 = vld [vmem:[%s1 + $0x388] sm:$0xff]
        %v531 = vld [vmem:[%s1 + $0x390] sm:$0xff]
        %v532 = vld [vmem:[%s1 + $0x398] sm:$0xf]
        %v533 = vld [vmem:[%s1 + $0x39c] sm:$0xff]
        %v534 = vld [vmem:[%s1 + $0x3a4] sm:$0xff]
        %v535 = vld [vmem:[%s1 + $0x3ac] sm:$0xff]
        %v536 = vld [vmem:[%s1 + $0x3b4] sm:$0xff]
        %v537 = vld [vmem:[%s1 + $0x3bc] sm:$0xff]
        %v538 = vld [vmem:[%s1 + $0x3c4] sm:$0xff]
        %v539 = vld [vmem:[%s1 + $0x3cc] sm:$0xff]
        %v540 = vld [vmem:[%s1 + $0x3d4] sm:$0xff]
        %v541 = vld [vmem:[%s1 + $0x3dc] sm:$0xff]
        %v542 = vld [vmem:[%s1 + $0x3e4] sm:$0xff]
        %v543 = vld [vmem:[%s1 + $0x3ec] sm:$0xff]
        %v544 = vld [vmem:[%s1 + $0x3f4] sm:$0xff]
        %v545 = vld [vmem:[%s1 + $0x3fc] sm:$0xff]
        %v546 = vld [vmem:[%s1 + $0x404] sm:$0xff]
        %v547 = vld [vmem:[%s1 + $0x40c] sm:$0xff]
        %v548 = vld [vmem:[%s1 + $0x414] sm:$0xff]
        %v549 = vld [vmem:[%s1 + $0x41c] sm:$0xf]
        %v550 = vld [vmem:[%s1 + $0x420] sm:$0xff]
        %v551 = vld [vmem:[%s1 + $0x428] sm:$0xff]
        %v552 = vld [vmem:[%s1 + $0x430] sm:$0xff]
        %v553 = vld [vmem:[%s1 + $0x438] sm:$0xff]
        %v554 = vld [vmem:[%s1 + $0x440] sm:$0xff]
        %v555 = vld [vmem:[%s1 + $0x448] sm:$0xff]
        %v556 = vld [vmem:[%s1 + $0x450] sm:$0xff]
        %v557 = vld [vmem:[%s1 + $0x458] sm:$0xff]
        %v558 = vld [vmem:[%s1 + $0x460] sm:$0xff]
        %v559 = vld [vmem:[%s1 + $0x468] sm:$0xff]
        %v560 = vld [vmem:[%s1 + $0x470] sm:$0xff]
        %v561 = vld [vmem:[%s1 + $0x478] sm:$0xff]
        %v562 = vld [vmem:[%s1 + $0x480] sm:$0xff]
        %v563 = vld [vmem:[%s1 + $0x488] sm:$0xff]
        %v564 = vld [vmem:[%s1 + $0x490] sm:$0xff]
        %v565 = vld [vmem:[%s1 + $0x498] sm:$0xff]
        %v566 = vld [vmem:[%s1 + $0x4a0] sm:$0xf]
        %v567 = vld [vmem:[%s1 + $0x4a4] sm:$0xff]
        %v568 = vld [vmem:[%s1 + $0x4ac] sm:$0xff]
        %v569 = vld [vmem:[%s1 + $0x4b4] sm:$0xff]
        %v570 = vld [vmem:[%s1 + $0x4bc] sm:$0xff]
        %v571 = vld [vmem:[%s1 + $0x4c4] sm:$0xff]
        %v572 = vld [vmem:[%s1 + $0x4cc] sm:$0xff]
        %v573 = vld [vmem:[%s1 + $0x4d4] sm:$0xff]
        %v574 = vld [vmem:[%s1 + $0x4dc] sm:$0xff]
        %v575 = vld [vmem:[%s1 + $0x4e4] sm:$0xff]
        %v576 = vld [vmem:[%s1 + $0x4ec] sm:$0xff]
        %v577 = vld [vmem:[%s1 + $0x4f4] sm:$0xff]
        %v578 = vld [vmem:[%s1 + $0x4fc] sm:$0xff]
        %v579 = vld [vmem:[%s1 + $0x504] sm:$0xff]
        %v580 = vld [vmem:[%s1 + $0x50c] sm:$0xff]
        %v581 = vld [vmem:[%s1 + $0x514] sm:$0xff]
        %v582 = vld [vmem:[%s1 + $0x51c] sm:$0xff]
        %v583 = vld [vmem:[%s1 + $0x524] sm:$0xf]
        %v584 = vld [vmem:[%s1 + $0x528] sm:$0xff]
        %v585 = vld [vmem:[%s1 + $0x530] sm:$0xff]
        %v586 = vld [vmem:[%s1 + $0x538] sm:$0xff]
        %v587 = vld [vmem:[%s1 + $0x540] sm:$0xff]
        %v588 = vld [vmem:[%s1 + $0x548] sm:$0xff]
        %v589 = vld [vmem:[%s1 + $0x550] sm:$0xff]
        %v590 = vld [vmem:[%s1 + $0x558] sm:$0xff]
        %v591 = vld [vmem:[%s1 + $0x560] sm:$0xff]
        %v592 = vld [vmem:[%s1 + $0x568] sm:$0xff]
        %v593 = vld [vmem:[%s1 + $0x570] sm:$0xff]
        %v594 = vld [vmem:[%s1 + $0x578] sm:$0xff]
        %v595 = vld [vmem:[%s1 + $0x580] sm:$0xff]
        %v596 = vld [vmem:[%s1 + $0x588] sm:$0xff]
        %v597 = vld [vmem:[%s1 + $0x590] sm:$0xff]
        %v598 = vld [vmem:[%s1 + $0x598] sm:$0xff]
        %v599 = vld [vmem:[%s1 + $0x5a0] sm:$0xff]
        %v600 = vld [vmem:[%s1 + $0x5a8] sm:$0xf]
        %v601 = vld [vmem:[%s1 + $0x5ac] sm:$0xff]
        %v602 = vld [vmem:[%s1 + $0x5b4] sm:$0xff]
        %v603 = vld [vmem:[%s1 + $0x5bc] sm:$0xff]
        %v604 = vld [vmem:[%s1 + $0x5c4] sm:$0xff]
        %v605 = vld [vmem:[%s1 + $0x5cc] sm:$0xff]
        %v606 = vld [vmem:[%s1 + $0x5d4] sm:$0xff]
        %v607 = vld [vmem:[%s1 + $0x5dc] sm:$0xff]
        %v608 = vld [vmem:[%s1 + $0x5e4] sm:$0xff]
        %v609 = vld [vmem:[%s1 + $0x5ec] sm:$0xff]
        %v610 = vld [vmem:[%s1 + $0x5f4] sm:$0xff]
        %v611 = vld [vmem:[%s1 + $0x5fc] sm:$0xff]
        %v612 = vld [vmem:[%s1 + $0x604] sm:$0xff]
        %v613 = vld [vmem:[%s1 + $0x60c] sm:$0xff]
        %v614 = vld [vmem:[%s1 + $0x614] sm:$0xff]
        %v615 = vld [vmem:[%s1 + $0x61c] sm:$0xff]
        %v616 = vld [vmem:[%s1 + $0x624] sm:$0xff]
        %v617 = vld [vmem:[%s1 + $0x62c] sm:$0xf]
        %v618 = vld [vmem:[%s1 + $0x630] sm:$0xff]
        %v619 = vld [vmem:[%s1 + $0x638] sm:$0xff]
        %v620 = vld [vmem:[%s1 + $0x640] sm:$0xff]
        %v621 = vld [vmem:[%s1 + $0x648] sm:$0xff]
        %v622 = vld [vmem:[%s1 + $0x650] sm:$0xff]
        %v623 = vld [vmem:[%s1 + $0x658] sm:$0xff]
        %v624 = vld [vmem:[%s1 + $0x660] sm:$0xff]
        %v625 = vld [vmem:[%s1 + $0x668] sm:$0xff]
        %v626 = vld [vmem:[%s1 + $0x670] sm:$0xff]
        %v627 = vld [vmem:[%s1 + $0x678] sm:$0xff]
        %v628 = vld [vmem:[%s1 + $0x680] sm:$0xff]
        %v629 = vld [vmem:[%s1 + $0x688] sm:$0xff]
        %v630 = vld [vmem:[%s1 + $0x690] sm:$0xff]
        %v631 = vld [vmem:[%s1 + $0x698] sm:$0xff]
        %v632 = vld [vmem:[%s1 + $0x6a0] sm:$0xff]
        %v633 = vld [vmem:[%s1 + $0x6a8] sm:$0xff]
        %v634 = vld [vmem:[%s1 + $0x6b0] sm:$0xf]
        %v635 = vld [vmem:[%s1 + $0x6b4] sm:$0xff]
        %v636 = vld [vmem:[%s1 + $0x6bc] sm:$0xff]
        %v637 = vld [vmem:[%s1 + $0x6c4] sm:$0xff]
        %v638 = vld [vmem:[%s1 + $0x6cc] sm:$0xff]
        %v639 = vld [vmem:[%s1 + $0x6d4] sm:$0xff]
        %v640 = vld [vmem:[%s1 + $0x6dc] sm:$0xff]
        %v641 = vld [vmem:[%s1 + $0x6e4] sm:$0xff]
        %v642 = vld [vmem:[%s1 + $0x6ec] sm:$0xff]
        %v643 = vld [vmem:[%s1 + $0x6f4] sm:$0xff]
        %v644 = vld [vmem:[%s1 + $0x6fc] sm:$0xff]
        %v645 = vld [vmem:[%s1 + $0x704] sm:$0xff]
        %v646 = vld [vmem:[%s1 + $0x70c] sm:$0xff]
        %v647 = vld [vmem:[%s1 + $0x714] sm:$0xff]
        %v648 = vld [vmem:[%s1 + $0x71c] sm:$0xff]
        %v649 = vld [vmem:[%s1 + $0x724] sm:$0xff]
        %v650 = vld [vmem:[%s1 + $0x72c] sm:$0xff]
        %v651 = vld [vmem:[%s1 + $0x734] sm:$0xf]
        %v652 = vld [vmem:[%s1 + $0x738] sm:$0xff]
        %v653 = vld [vmem:[%s1 + $0x740] sm:$0xff]
        %v654 = vld [vmem:[%s1 + $0x748] sm:$0xff]
        %v655 = vld [vmem:[%s1 + $0x750] sm:$0xff]
        %v656 = vld [vmem:[%s1 + $0x758] sm:$0xff]
        %v657 = vld [vmem:[%s1 + $0x760] sm:$0xff]
        %v658 = vld [vmem:[%s1 + $0x768] sm:$0xff]
        %v659 = vld [vmem:[%s1 + $0x770] sm:$0xff]
        %v660 = vld [vmem:[%s1 + $0x778] sm:$0xff]
        %v661 = vld [vmem:[%s1 + $0x780] sm:$0xff]
        %v662 = vld [vmem:[%s1 + $0x788] sm:$0xff]
        %v663 = vld [vmem:[%s1 + $0x790] sm:$0xff]
        %v664 = vld [vmem:[%s1 + $0x798] sm:$0xff]
        %v665 = vld [vmem:[%s1 + $0x7a0] sm:$0xff]
        %v666 = vld [vmem:[%s1 + $0x7a8] sm:$0xff]
        %v667 = vld [vmem:[%s1 + $0x7b0] sm:$0xff]
        %v668 = vld [vmem:[%s1 + $0x7b8] sm:$0xf]
        %v669 = vld [vmem:[%s1 + $0x7bc] sm:$0xff]
        %v670 = vld [vmem:[%s1 + $0x7c4] sm:$0xff]
        %v671 = vld [vmem:[%s1 + $0x7cc] sm:$0xff]
        %v672 = vld [vmem:[%s1 + $0x7d4] sm:$0xff]
        %v673 = vld [vmem:[%s1 + $0x7dc] sm:$0xff]
        %v674 = vld [vmem:[%s1 + $0x7e4] sm:$0xff]
        %v675 = vld [vmem:[%s1 + $0x7ec] sm:$0xff]
        %v676 = vld [vmem:[%s1 + $0x7f4] sm:$0xff]
        %v677 = vld [vmem:[%s1 + $0x7fc] sm:$0xff]
        %v678 = vld [vmem:[%s1 + $0x804] sm:$0xff]
        %v679 = vld [vmem:[%s1 + $0x80c] sm:$0xff]
        %v680 = vld [vmem:[%s1 + $0x814] sm:$0xff]
        %v681 = vld [vmem:[%s1 + $0x81c] sm:$0xff]
        %v682 = vld [vmem:[%s1 + $0x824] sm:$0xff]
        %v683 = vld [vmem:[%s1 + $0x82c] sm:$0xff]
        %v684 = vld [vmem:[%s1 + $0x834] sm:$0xff]
        %v685 = vld [vmem:[%s1 + $0x83c] sm:$0xf]
        %v686 = vld [vmem:[%s2] sm:$0xff]
        %v687 = vld [vmem:[%s2 + $0x8] sm:$0xff]
        %v688 = vld [vmem:[%s2 + $0x10] sm:$0xff]
        %v689 = vld [vmem:[%s2 + $0x18] sm:$0xff]
        %v690 = vld [vmem:[%s2 + $0x20] sm:$0x1]
        %v696 = vlaneseq
        %v697 = vshrl.u32 %v696, 7
        %v698 = vsub.s32 0, %v697
        %v699 = vrot.slane %v686, %v698
        %v700 = vlaneseq
        %v701 = vshrl.u32 %v700, 7
        %v702 = vsub.s32 1, %v701
        %v703 = vrot.slane %v686, %v702
        %v704 = vlaneseq
        %v705 = vshrl.u32 %v704, 7
        %v706 = vsub.s32 2, %v705
        %v707 = vrot.slane %v686, %v706
        %v708 = vlaneseq
        %v709 = vshrl.u32 %v708, 7
        %v710 = vsub.s32 3, %v709
        %v711 = vrot.slane %v686, %v710
        %v712 = vlaneseq
        %v713 = vshrl.u32 %v712, 7
        %v714 = vsub.s32 4, %v713
        %v715 = vrot.slane %v686, %v714
        %v716 = vlaneseq
        %v717 = vshrl.u32 %v716, 7
        %v718 = vsub.s32 5, %v717
        %v719 = vrot.slane %v686, %v718
        %v720 = vlaneseq
        %v721 = vshrl.u32 %v720, 7
        %v722 = vsub.s32 6, %v721
        %v723 = vrot.slane %v686, %v722
        %v724 = vlaneseq
        %v725 = vshrl.u32 %v724, 7
        %v726 = vsub.s32 7, %v725
        %v727 = vrot.slane %v686, %v726
        %v728 = vlaneseq
        %v729 = vshrl.u32 %v728, 7
        %v730 = vsub.s32 0, %v729
        %v731 = vrot.slane %v687, %v730
        %v732 = vlaneseq
        %v733 = vshrl.u32 %v732, 7
        %v734 = vsub.s32 1, %v733
        %v735 = vrot.slane %v687, %v734
        %v736 = vlaneseq
        %v737 = vshrl.u32 %v736, 7
        %v738 = vsub.s32 2, %v737
        %v739 = vrot.slane %v687, %v738
        %v740 = vlaneseq
        %v741 = vshrl.u32 %v740, 7
        %v742 = vsub.s32 3, %v741
        %v743 = vrot.slane %v687, %v742
        %v744 = vlaneseq
        %v745 = vshrl.u32 %v744, 7
        %v746 = vsub.s32 4, %v745
        %v747 = vrot.slane %v687, %v746
        %v748 = vlaneseq
        %v749 = vshrl.u32 %v748, 7
        %v750 = vsub.s32 5, %v749
        %v751 = vrot.slane %v687, %v750
        %v752 = vlaneseq
        %v753 = vshrl.u32 %v752, 7
        %v754 = vsub.s32 6, %v753
        %v755 = vrot.slane %v687, %v754
        %v756 = vlaneseq
        %v757 = vshrl.u32 %v756, 7
        %v758 = vsub.s32 7, %v757
        %v759 = vrot.slane %v687, %v758
        %v760 = vlaneseq
        %v761 = vshrl.u32 %v760, 7
        %v762 = vsub.s32 0, %v761
        %v763 = vrot.slane %v688, %v762
        %v764 = vlaneseq
        %v765 = vshrl.u32 %v764, 7
        %v766 = vsub.s32 1, %v765
        %v767 = vrot.slane %v688, %v766
        %v768 = vlaneseq
        %v769 = vshrl.u32 %v768, 7
        %v770 = vsub.s32 2, %v769
        %v771 = vrot.slane %v688, %v770
        %v772 = vlaneseq
        %v773 = vshrl.u32 %v772, 7
        %v774 = vsub.s32 3, %v773
        %v775 = vrot.slane %v688, %v774
        %v776 = vlaneseq
        %v777 = vshrl.u32 %v776, 7
        %v778 = vsub.s32 4, %v777
        %v779 = vrot.slane %v688, %v778
        %v780 = vlaneseq
        %v781 = vshrl.u32 %v780, 7
        %v782 = vsub.s32 5, %v781
        %v783 = vrot.slane %v688, %v782
        %v784 = vlaneseq
        %v785 = vshrl.u32 %v784, 7
        %v786 = vsub.s32 6, %v785
        %v787 = vrot.slane %v688, %v786
        %v788 = vlaneseq
        %v789 = vshrl.u32 %v788, 7
        %v790 = vsub.s32 7, %v789
        %v791 = vrot.slane %v688, %v790
        %v792 = vlaneseq
        %v793 = vshrl.u32 %v792, 7
        %v794 = vsub.s32 0, %v793
        %v795 = vrot.slane %v689, %v794
        %v796 = vlaneseq
        %v797 = vshrl.u32 %v796, 7
        %v798 = vsub.s32 1, %v797
        %v799 = vrot.slane %v689, %v798
        %v800 = vlaneseq
        %v801 = vshrl.u32 %v800, 7
        %v802 = vsub.s32 2, %v801
        %v803 = vrot.slane %v689, %v802
        %v804 = vlaneseq
        %v805 = vshrl.u32 %v804, 7
        %v806 = vsub.s32 3, %v805
        %v807 = vrot.slane %v689, %v806
        %v808 = vlaneseq
        %v809 = vshrl.u32 %v808, 7
        %v810 = vsub.s32 4, %v809
        %v811 = vrot.slane %v689, %v810
        %v812 = vlaneseq
        %v813 = vshrl.u32 %v812, 7
        %v814 = vsub.s32 5, %v813
        %v815 = vrot.slane %v689, %v814
        %v816 = vlaneseq
        %v817 = vshrl.u32 %v816, 7
        %v818 = vsub.s32 6, %v817
        %v819 = vrot.slane %v689, %v818
        %v820 = vlaneseq
        %v821 = vshrl.u32 %v820, 7
        %v822 = vsub.s32 7, %v821
        %v823 = vrot.slane %v689, %v822
        %v824 = vlaneseq
        %v825 = vshrl.u32 %v824, 7
        %v826 = vsub.s32 0, %v825
        %v827 = vrot.slane %v690, %v826
        %v1133 = vunpack.c.l.b16 %v414
        %v1134 = vunpack.c.h.b16 %v414
        %v1135 = vunpack.c.l.b16 %v415
        %v1136 = vunpack.c.h.b16 %v415
        %v1137 = vunpack.c.l.b16 %v416
        %v1138 = vunpack.c.h.b16 %v416
        %v1139 = vunpack.c.l.b16 %v417
        %v1140 = vunpack.c.h.b16 %v417
        %v1141 = vunpack.c.l.b16 %v418
        %v1142 = vunpack.c.h.b16 %v418
        %v1143 = vunpack.c.l.b16 %v419
        %v1144 = vunpack.c.h.b16 %v419
        %v1145 = vunpack.c.l.b16 %v420
        %v1146 = vunpack.c.h.b16 %v420
        %v1147 = vunpack.c.l.b16 %v421
        %v1148 = vunpack.c.h.b16 %v421
        %v1149 = vunpack.c.l.b16 %v422
        %v1150 = vunpack.c.h.b16 %v422
        %v1151 = vunpack.c.l.b16 %v423
        %v1152 = vunpack.c.h.b16 %v423
        %v1153 = vunpack.c.l.b16 %v424
        %v1154 = vunpack.c.h.b16 %v424
        %v1155 = vunpack.c.l.b16 %v425
        %v1156 = vunpack.c.h.b16 %v425
        %v1157 = vunpack.c.l.b16 %v426
        %v1158 = vunpack.c.h.b16 %v426
        %v1159 = vunpack.c.l.b16 %v427
        %v1160 = vunpack.c.h.b16 %v427
        %v1161 = vunpack.c.l.b16 %v428
        %v1162 = vunpack.c.h.b16 %v428
        %v1163 = vunpack.c.l.b16 %v429
        %v1164 = vunpack.c.h.b16 %v429
        %v1165 = vunpack.c.l.b16 %v430
        %v1166 = vunpack.c.l.b16 %v431
        %v1167 = vunpack.c.h.b16 %v431
        %v1168 = vunpack.c.l.b16 %v432
        %v1169 = vunpack.c.h.b16 %v432
        %v1170 = vunpack.c.l.b16 %v433
        %v1171 = vunpack.c.h.b16 %v433
        %v1172 = vunpack.c.l.b16 %v434
        %v1173 = vunpack.c.h.b16 %v434
        %v1174 = vunpack.c.l.b16 %v435
        %v1175 = vunpack.c.h.b16 %v435
        %v1176 = vunpack.c.l.b16 %v436
        %v1177 = vunpack.c.h.b16 %v436
        %v1178 = vunpack.c.l.b16 %v437
        %v1179 = vunpack.c.h.b16 %v437
        %v1180 = vunpack.c.l.b16 %v438
        %v1181 = vunpack.c.h.b16 %v438
        %v1182 = vunpack.c.l.b16 %v439
        %v1183 = vunpack.c.h.b16 %v439
        %v1184 = vunpack.c.l.b16 %v440
        %v1185 = vunpack.c.h.b16 %v440
        %v1186 = vunpack.c.l.b16 %v441
        %v1187 = vunpack.c.h.b16 %v441
        %v1188 = vunpack.c.l.b16 %v442
        %v1189 = vunpack.c.h.b16 %v442
        %v1190 = vunpack.c.l.b16 %v443
        %v1191 = vunpack.c.h.b16 %v443
        %v1192 = vunpack.c.l.b16 %v444
        %v1193 = vunpack.c.h.b16 %v444
        %v1194 = vunpack.c.l.b16 %v445
        %v1195 = vunpack.c.h.b16 %v445
        %v1196 = vunpack.c.l.b16 %v446
        %v1197 = vunpack.c.h.b16 %v446
        %v1198 = vunpack.c.l.b16 %v447
        %v1199 = vunpack.c.l.b16 %v448
        %v1200 = vunpack.c.h.b16 %v448
        %v1201 = vunpack.c.l.b16 %v449
        %v1202 = vunpack.c.h.b16 %v449
        %v1203 = vunpack.c.l.b16 %v450
        %v1204 = vunpack.c.h.b16 %v450
        %v1205 = vunpack.c.l.b16 %v451
        %v1206 = vunpack.c.h.b16 %v451
        %v1207 = vunpack.c.l.b16 %v452
        %v1208 = vunpack.c.h.b16 %v452
        %v1209 = vunpack.c.l.b16 %v453
        %v1210 = vunpack.c.h.b16 %v453
        %v1211 = vunpack.c.l.b16 %v454
        %v1212 = vunpack.c.h.b16 %v454
        %v1213 = vunpack.c.l.b16 %v455
        %v1214 = vunpack.c.h.b16 %v455
        %v1215 = vunpack.c.l.b16 %v456
        %v1216 = vunpack.c.h.b16 %v456
        %v1217 = vunpack.c.l.b16 %v457
        %v1218 = vunpack.c.h.b16 %v457
        %v1219 = vunpack.c.l.b16 %v458
        %v1220 = vunpack.c.h.b16 %v458
        %v1221 = vunpack.c.l.b16 %v459
        %v1222 = vunpack.c.h.b16 %v459
        %v1223 = vunpack.c.l.b16 %v460
        %v1224 = vunpack.c.h.b16 %v460
        %v1225 = vunpack.c.l.b16 %v461
        %v1226 = vunpack.c.h.b16 %v461
        %v1227 = vunpack.c.l.b16 %v462
        %v1228 = vunpack.c.h.b16 %v462
        %v1229 = vunpack.c.l.b16 %v463
        %v1230 = vunpack.c.h.b16 %v463
        %v1231 = vunpack.c.l.b16 %v464
        %v1232 = vunpack.c.l.b16 %v465
        %v1233 = vunpack.c.h.b16 %v465
        %v1234 = vunpack.c.l.b16 %v466
        %v1235 = vunpack.c.h.b16 %v466
        %v1236 = vunpack.c.l.b16 %v467
        %v1237 = vunpack.c.h.b16 %v467
        %v1238 = vunpack.c.l.b16 %v468
        %v1239 = vunpack.c.h.b16 %v468
        %v1240 = vunpack.c.l.b16 %v469
        %v1241 = vunpack.c.h.b16 %v469
        %v1242 = vunpack.c.l.b16 %v470
        %v1243 = vunpack.c.h.b16 %v470
        %v1244 = vunpack.c.l.b16 %v471
        %v1245 = vunpack.c.h.b16 %v471
        %v1246 = vunpack.c.l.b16 %v472
        %v1247 = vunpack.c.h.b16 %v472
        %v1248 = vunpack.c.l.b16 %v473
        %v1249 = vunpack.c.h.b16 %v473
        %v1250 = vunpack.c.l.b16 %v474
        %v1251 = vunpack.c.h.b16 %v474
        %v1252 = vunpack.c.l.b16 %v475
        %v1253 = vunpack.c.h.b16 %v475
        %v1254 = vunpack.c.l.b16 %v476
        %v1255 = vunpack.c.h.b16 %v476
        %v1256 = vunpack.c.l.b16 %v477
        %v1257 = vunpack.c.h.b16 %v477
        %v1258 = vunpack.c.l.b16 %v478
        %v1259 = vunpack.c.h.b16 %v478
        %v1260 = vunpack.c.l.b16 %v479
        %v1261 = vunpack.c.h.b16 %v479
        %v1262 = vunpack.c.l.b16 %v480
        %v1263 = vunpack.c.h.b16 %v480
        %v1264 = vunpack.c.l.b16 %v481
        %v1265 = vunpack.c.l.b16 %v482
        %v1266 = vunpack.c.h.b16 %v482
        %v1267 = vunpack.c.l.b16 %v483
        %v1268 = vunpack.c.h.b16 %v483
        %v1269 = vunpack.c.l.b16 %v484
        %v1270 = vunpack.c.h.b16 %v484
        %v1271 = vunpack.c.l.b16 %v485
        %v1272 = vunpack.c.h.b16 %v485
        %v1273 = vunpack.c.l.b16 %v486
        %v1274 = vunpack.c.h.b16 %v486
        %v1275 = vunpack.c.l.b16 %v487
        %v1276 = vunpack.c.h.b16 %v487
        %v1277 = vunpack.c.l.b16 %v488
        %v1278 = vunpack.c.h.b16 %v488
        %v1279 = vunpack.c.l.b16 %v489
        %v1280 = vunpack.c.h.b16 %v489
        %v1281 = vunpack.c.l.b16 %v490
        %v1282 = vunpack.c.h.b16 %v490
        %v1283 = vunpack.c.l.b16 %v491
        %v1284 = vunpack.c.h.b16 %v491
        %v1285 = vunpack.c.l.b16 %v492
        %v1286 = vunpack.c.h.b16 %v492
        %v1287 = vunpack.c.l.b16 %v493
        %v1288 = vunpack.c.h.b16 %v493
        %v1289 = vunpack.c.l.b16 %v494
        %v1290 = vunpack.c.h.b16 %v494
        %v1291 = vunpack.c.l.b16 %v495
        %v1292 = vunpack.c.h.b16 %v495
        %v1293 = vunpack.c.l.b16 %v496
        %v1294 = vunpack.c.h.b16 %v496
        %v1295 = vunpack.c.l.b16 %v497
        %v1296 = vunpack.c.h.b16 %v497
        %v1297 = vunpack.c.l.b16 %v498
        %v1298 = vunpack.c.l.b16 %v499
        %v1299 = vunpack.c.h.b16 %v499
        %v1300 = vunpack.c.l.b16 %v500
        %v1301 = vunpack.c.h.b16 %v500
        %v1302 = vunpack.c.l.b16 %v501
        %v1303 = vunpack.c.h.b16 %v501
        %v1304 = vunpack.c.l.b16 %v502
        %v1305 = vunpack.c.h.b16 %v502
        %v1306 = vunpack.c.l.b16 %v503
        %v1307 = vunpack.c.h.b16 %v503
        %v1308 = vunpack.c.l.b16 %v504
        %v1309 = vunpack.c.h.b16 %v504
        %v1310 = vunpack.c.l.b16 %v505
        %v1311 = vunpack.c.h.b16 %v505
        %v1312 = vunpack.c.l.b16 %v506
        %v1313 = vunpack.c.h.b16 %v506
        %v1314 = vunpack.c.l.b16 %v507
        %v1315 = vunpack.c.h.b16 %v507
        %v1316 = vunpack.c.l.b16 %v508
        %v1317 = vunpack.c.h.b16 %v508
        %v1318 = vunpack.c.l.b16 %v509
        %v1319 = vunpack.c.h.b16 %v509
        %v1320 = vunpack.c.l.b16 %v510
        %v1321 = vunpack.c.h.b16 %v510
        %v1322 = vunpack.c.l.b16 %v511
        %v1323 = vunpack.c.h.b16 %v511
        %v1324 = vunpack.c.l.b16 %v512
        %v1325 = vunpack.c.h.b16 %v512
        %v1326 = vunpack.c.l.b16 %v513
        %v1327 = vunpack.c.h.b16 %v513
        %v1328 = vunpack.c.l.b16 %v514
        %v1329 = vunpack.c.h.b16 %v514
        %v1330 = vunpack.c.l.b16 %v515
        %v1331 = vunpack.c.l.b16 %v516
        %v1332 = vunpack.c.h.b16 %v516
        %v1333 = vunpack.c.l.b16 %v517
        %v1334 = vunpack.c.h.b16 %v517
        %v1335 = vunpack.c.l.b16 %v518
        %v1336 = vunpack.c.h.b16 %v518
        %v1337 = vunpack.c.l.b16 %v519
        %v1338 = vunpack.c.h.b16 %v519
        %v1339 = vunpack.c.l.b16 %v520
        %v1340 = vunpack.c.h.b16 %v520
        %v1341 = vunpack.c.l.b16 %v521
        %v1342 = vunpack.c.h.b16 %v521
        %v1343 = vunpack.c.l.b16 %v522
        %v1344 = vunpack.c.h.b16 %v522
        %v1345 = vunpack.c.l.b16 %v523
        %v1346 = vunpack.c.h.b16 %v523
        %v1347 = vunpack.c.l.b16 %v524
        %v1348 = vunpack.c.h.b16 %v524
        %v1349 = vunpack.c.l.b16 %v525
        %v1350 = vunpack.c.h.b16 %v525
        %v1351 = vunpack.c.l.b16 %v526
        %v1352 = vunpack.c.h.b16 %v526
        %v1353 = vunpack.c.l.b16 %v527
        %v1354 = vunpack.c.h.b16 %v527
        %v1355 = vunpack.c.l.b16 %v528
        %v1356 = vunpack.c.h.b16 %v528
        %v1357 = vunpack.c.l.b16 %v529
        %v1358 = vunpack.c.h.b16 %v529
        %v1359 = vunpack.c.l.b16 %v530
        %v1360 = vunpack.c.h.b16 %v530
        %v1361 = vunpack.c.l.b16 %v531
        %v1362 = vunpack.c.h.b16 %v531
        %v1363 = vunpack.c.l.b16 %v532
        %v1364 = vunpack.c.l.b16 %v533
        %v1365 = vunpack.c.h.b16 %v533
        %v1366 = vunpack.c.l.b16 %v534
        %v1367 = vunpack.c.h.b16 %v534
        %v1368 = vunpack.c.l.b16 %v535
        %v1369 = vunpack.c.h.b16 %v535
        %v1370 = vunpack.c.l.b16 %v536
        %v1371 = vunpack.c.h.b16 %v536
        %v1372 = vunpack.c.l.b16 %v537
        %v1373 = vunpack.c.h.b16 %v537
        %v1374 = vunpack.c.l.b16 %v538
        %v1375 = vunpack.c.h.b16 %v538
        %v1376 = vunpack.c.l.b16 %v539
        %v1377 = vunpack.c.h.b16 %v539
        %v1378 = vunpack.c.l.b16 %v540
        %v1379 = vunpack.c.h.b16 %v540
        %v1380 = vunpack.c.l.b16 %v541
        %v1381 = vunpack.c.h.b16 %v541
        %v1382 = vunpack.c.l.b16 %v542
        %v1383 = vunpack.c.h.b16 %v542
        %v1384 = vunpack.c.l.b16 %v543
        %v1385 = vunpack.c.h.b16 %v543
        %v1386 = vunpack.c.l.b16 %v544
        %v1387 = vunpack.c.h.b16 %v544
        %v1388 = vunpack.c.l.b16 %v545
        %v1389 = vunpack.c.h.b16 %v545
        %v1390 = vunpack.c.l.b16 %v546
        %v1391 = vunpack.c.h.b16 %v546
        %v1392 = vunpack.c.l.b16 %v547
        %v1393 = vunpack.c.h.b16 %v547
        %v1394 = vunpack.c.l.b16 %v548
        %v1395 = vunpack.c.h.b16 %v548
        %v1396 = vunpack.c.l.b16 %v549
        %v1397 = vunpack.c.l.b16 %v550
        %v1398 = vunpack.c.h.b16 %v550
        %v1399 = vunpack.c.l.b16 %v551
        %v1400 = vunpack.c.h.b16 %v551
        %v1401 = vunpack.c.l.b16 %v552
        %v1402 = vunpack.c.h.b16 %v552
        %v1403 = vunpack.c.l.b16 %v553
        %v1404 = vunpack.c.h.b16 %v553
        %v1405 = vunpack.c.l.b16 %v554
        %v1406 = vunpack.c.h.b16 %v554
        %v1407 = vunpack.c.l.b16 %v555
        %v1408 = vunpack.c.h.b16 %v555
        %v1409 = vunpack.c.l.b16 %v556
        %v1410 = vunpack.c.h.b16 %v556
        %v1411 = vunpack.c.l.b16 %v557
        %v1412 = vunpack.c.h.b16 %v557
        %v1413 = vunpack.c.l.b16 %v558
        %v1414 = vunpack.c.h.b16 %v558
        %v1415 = vunpack.c.l.b16 %v559
        %v1416 = vunpack.c.h.b16 %v559
        %v1417 = vunpack.c.l.b16 %v560
        %v1418 = vunpack.c.h.b16 %v560
        %v1419 = vunpack.c.l.b16 %v561
        %v1420 = vunpack.c.h.b16 %v561
        %v1421 = vunpack.c.l.b16 %v562
        %v1422 = vunpack.c.h.b16 %v562
        %v1423 = vunpack.c.l.b16 %v563
        %v1424 = vunpack.c.h.b16 %v563
        %v1425 = vunpack.c.l.b16 %v564
        %v1426 = vunpack.c.h.b16 %v564
        %v1427 = vunpack.c.l.b16 %v565
        %v1428 = vunpack.c.h.b16 %v565
        %v1429 = vunpack.c.l.b16 %v566
        %v1430 = vunpack.c.l.b16 %v567
        %v1431 = vunpack.c.h.b16 %v567
        %v1432 = vunpack.c.l.b16 %v568
        %v1433 = vunpack.c.h.b16 %v568
        %v1434 = vunpack.c.l.b16 %v569
        %v1435 = vunpack.c.h.b16 %v569
        %v1436 = vunpack.c.l.b16 %v570
        %v1437 = vunpack.c.h.b16 %v570
        %v1438 = vunpack.c.l.b16 %v571
        %v1439 = vunpack.c.h.b16 %v571
        %v1440 = vunpack.c.l.b16 %v572
        %v1441 = vunpack.c.h.b16 %v572
        %v1442 = vunpack.c.l.b16 %v573
        %v1443 = vunpack.c.h.b16 %v573
        %v1444 = vunpack.c.l.b16 %v574
        %v1445 = vunpack.c.h.b16 %v574
        %v1446 = vunpack.c.l.b16 %v575
        %v1447 = vunpack.c.h.b16 %v575
        %v1448 = vunpack.c.l.b16 %v576
        %v1449 = vunpack.c.h.b16 %v576
        %v1450 = vunpack.c.l.b16 %v577
        %v1451 = vunpack.c.h.b16 %v577
        %v1452 = vunpack.c.l.b16 %v578
        %v1453 = vunpack.c.h.b16 %v578
        %v1454 = vunpack.c.l.b16 %v579
        %v1455 = vunpack.c.h.b16 %v579
        %v1456 = vunpack.c.l.b16 %v580
        %v1457 = vunpack.c.h.b16 %v580
        %v1458 = vunpack.c.l.b16 %v581
        %v1459 = vunpack.c.h.b16 %v581
        %v1460 = vunpack.c.l.b16 %v582
        %v1461 = vunpack.c.h.b16 %v582
        %v1462 = vunpack.c.l.b16 %v583
        %v1463 = vunpack.c.l.b16 %v584
        %v1464 = vunpack.c.h.b16 %v584
        %v1465 = vunpack.c.l.b16 %v585
        %v1466 = vunpack.c.h.b16 %v585
        %v1467 = vunpack.c.l.b16 %v586
        %v1468 = vunpack.c.h.b16 %v586
        %v1469 = vunpack.c.l.b16 %v587
        %v1470 = vunpack.c.h.b16 %v587
        %v1471 = vunpack.c.l.b16 %v588
        %v1472 = vunpack.c.h.b16 %v588
        %v1473 = vunpack.c.l.b16 %v589
        %v1474 = vunpack.c.h.b16 %v589
        %v1475 = vunpack.c.l.b16 %v590
        %v1476 = vunpack.c.h.b16 %v590
        %v1477 = vunpack.c.l.b16 %v591
        %v1478 = vunpack.c.h.b16 %v591
        %v1479 = vunpack.c.l.b16 %v592
        %v1480 = vunpack.c.h.b16 %v592
        %v1481 = vunpack.c.l.b16 %v593
        %v1482 = vunpack.c.h.b16 %v593
        %v1483 = vunpack.c.l.b16 %v594
        %v1484 = vunpack.c.h.b16 %v594
        %v1485 = vunpack.c.l.b16 %v595
        %v1486 = vunpack.c.h.b16 %v595
        %v1487 = vunpack.c.l.b16 %v596
        %v1488 = vunpack.c.h.b16 %v596
        %v1489 = vunpack.c.l.b16 %v597
        %v1490 = vunpack.c.h.b16 %v597
        %v1491 = vunpack.c.l.b16 %v598
        %v1492 = vunpack.c.h.b16 %v598
        %v1493 = vunpack.c.l.b16 %v599
        %v1494 = vunpack.c.h.b16 %v599
        %v1495 = vunpack.c.l.b16 %v600
        %v1496 = vunpack.c.l.b16 %v601
        %v1497 = vunpack.c.h.b16 %v601
        %v1498 = vunpack.c.l.b16 %v602
        %v1499 = vunpack.c.h.b16 %v602
        %v1500 = vunpack.c.l.b16 %v603
        %v1501 = vunpack.c.h.b16 %v603
        %v1502 = vunpack.c.l.b16 %v604
        %v1503 = vunpack.c.h.b16 %v604
        %v1504 = vunpack.c.l.b16 %v605
        %v1505 = vunpack.c.h.b16 %v605
        %v1506 = vunpack.c.l.b16 %v606
        %v1507 = vunpack.c.h.b16 %v606
        %v1508 = vunpack.c.l.b16 %v607
        %v1509 = vunpack.c.h.b16 %v607
        %v1510 = vunpack.c.l.b16 %v608
        %v1511 = vunpack.c.h.b16 %v608
        %v1512 = vunpack.c.l.b16 %v609
        %v1513 = vunpack.c.h.b16 %v609
        %v1514 = vunpack.c.l.b16 %v610
        %v1515 = vunpack.c.h.b16 %v610
        %v1516 = vunpack.c.l.b16 %v611
        %v1517 = vunpack.c.h.b16 %v611
        %v1518 = vunpack.c.l.b16 %v612
        %v1519 = vunpack.c.h.b16 %v612
        %v1520 = vunpack.c.l.b16 %v613
        %v1521 = vunpack.c.h.b16 %v613
        %v1522 = vunpack.c.l.b16 %v614
        %v1523 = vunpack.c.h.b16 %v614
        %v1524 = vunpack.c.l.b16 %v615
        %v1525 = vunpack.c.h.b16 %v615
        %v1526 = vunpack.c.l.b16 %v616
        %v1527 = vunpack.c.h.b16 %v616
        %v1528 = vunpack.c.l.b16 %v617
        %v1529 = vunpack.c.l.b16 %v618
        %v1530 = vunpack.c.h.b16 %v618
        %v1531 = vunpack.c.l.b16 %v619
        %v1532 = vunpack.c.h.b16 %v619
        %v1533 = vunpack.c.l.b16 %v620
        %v1534 = vunpack.c.h.b16 %v620
        %v1535 = vunpack.c.l.b16 %v621
        %v1536 = vunpack.c.h.b16 %v621
        %v1537 = vunpack.c.l.b16 %v622
        %v1538 = vunpack.c.h.b16 %v622
        %v1539 = vunpack.c.l.b16 %v623
        %v1540 = vunpack.c.h.b16 %v623
        %v1541 = vunpack.c.l.b16 %v624
        %v1542 = vunpack.c.h.b16 %v624
        %v1543 = vunpack.c.l.b16 %v625
        %v1544 = vunpack.c.h.b16 %v625
        %v1545 = vunpack.c.l.b16 %v626
        %v1546 = vunpack.c.h.b16 %v626
        %v1547 = vunpack.c.l.b16 %v627
        %v1548 = vunpack.c.h.b16 %v627
        %v1549 = vunpack.c.l.b16 %v628
        %v1550 = vunpack.c.h.b16 %v628
        %v1551 = vunpack.c.l.b16 %v629
        %v1552 = vunpack.c.h.b16 %v629
        %v1553 = vunpack.c.l.b16 %v630
        %v1554 = vunpack.c.h.b16 %v630
        %v1555 = vunpack.c.l.b16 %v631
        %v1556 = vunpack.c.h.b16 %v631
        %v1557 = vunpack.c.l.b16 %v632
        %v1558 = vunpack.c.h.b16 %v632
        %v1559 = vunpack.c.l.b16 %v633
        %v1560 = vunpack.c.h.b16 %v633
        %v1561 = vunpack.c.l.b16 %v634
        %v1562 = vunpack.c.l.b16 %v635
        %v1563 = vunpack.c.h.b16 %v635
        %v1564 = vunpack.c.l.b16 %v636
        %v1565 = vunpack.c.h.b16 %v636
        %v1566 = vunpack.c.l.b16 %v637
        %v1567 = vunpack.c.h.b16 %v637
        %v1568 = vunpack.c.l.b16 %v638
        %v1569 = vunpack.c.h.b16 %v638
        %v1570 = vunpack.c.l.b16 %v639
        %v1571 = vunpack.c.h.b16 %v639
        %v1572 = vunpack.c.l.b16 %v640
        %v1573 = vunpack.c.h.b16 %v640
        %v1574 = vunpack.c.l.b16 %v641
        %v1575 = vunpack.c.h.b16 %v641
        %v1576 = vunpack.c.l.b16 %v642
        %v1577 = vunpack.c.h.b16 %v642
        %v1578 = vunpack.c.l.b16 %v643
        %v1579 = vunpack.c.h.b16 %v643
        %v1580 = vunpack.c.l.b16 %v644
        %v1581 = vunpack.c.h.b16 %v644
        %v1582 = vunpack.c.l.b16 %v645
        %v1583 = vunpack.c.h.b16 %v645
        %v1584 = vunpack.c.l.b16 %v646
        %v1585 = vunpack.c.h.b16 %v646
        %v1586 = vunpack.c.l.b16 %v647
        %v1587 = vunpack.c.h.b16 %v647
        %v1588 = vunpack.c.l.b16 %v648
        %v1589 = vunpack.c.h.b16 %v648
        %v1590 = vunpack.c.l.b16 %v649
        %v1591 = vunpack.c.h.b16 %v649
        %v1592 = vunpack.c.l.b16 %v650
        %v1593 = vunpack.c.h.b16 %v650
        %v1594 = vunpack.c.l.b16 %v651
        %v1595 = vunpack.c.l.b16 %v652
        %v1596 = vunpack.c.h.b16 %v652
        %v1597 = vunpack.c.l.b16 %v653
        %v1598 = vunpack.c.h.b16 %v653
        %v1599 = vunpack.c.l.b16 %v654
        %v1600 = vunpack.c.h.b16 %v654
        %v1601 = vunpack.c.l.b16 %v655
        %v1602 = vunpack.c.h.b16 %v655
        %v1603 = vunpack.c.l.b16 %v656
        %v1604 = vunpack.c.h.b16 %v656
        %v1605 = vunpack.c.l.b16 %v657
        %v1606 = vunpack.c.h.b16 %v657
        %v1607 = vunpack.c.l.b16 %v658
        %v1608 = vunpack.c.h.b16 %v658
        %v1609 = vunpack.c.l.b16 %v659
        %v1610 = vunpack.c.h.b16 %v659
        %v1611 = vunpack.c.l.b16 %v660
        %v1612 = vunpack.c.h.b16 %v660
        %v1613 = vunpack.c.l.b16 %v661
        %v1614 = vunpack.c.h.b16 %v661
        %v1615 = vunpack.c.l.b16 %v662
        %v1616 = vunpack.c.h.b16 %v662
        %v1617 = vunpack.c.l.b16 %v663
        %v1618 = vunpack.c.h.b16 %v663
        %v1619 = vunpack.c.l.b16 %v664
        %v1620 = vunpack.c.h.b16 %v664
        %v1621 = vunpack.c.l.b16 %v665
        %v1622 = vunpack.c.h.b16 %v665
        %v1623 = vunpack.c.l.b16 %v666
        %v1624 = vunpack.c.h.b16 %v666
        %v1625 = vunpack.c.l.b16 %v667
        %v1626 = vunpack.c.h.b16 %v667
        %v1627 = vunpack.c.l.b16 %v668
        %v1628 = vunpack.c.l.b16 %v669
        %v1629 = vunpack.c.h.b16 %v669
        %v1630 = vunpack.c.l.b16 %v670
        %v1631 = vunpack.c.h.b16 %v670
        %v1632 = vunpack.c.l.b16 %v671
        %v1633 = vunpack.c.h.b16 %v671
        %v1634 = vunpack.c.l.b16 %v672
        %v1635 = vunpack.c.h.b16 %v672
        %v1636 = vunpack.c.l.b16 %v673
        %v1637 = vunpack.c.h.b16 %v673
        %v1638 = vunpack.c.l.b16 %v674
        %v1639 = vunpack.c.h.b16 %v674
        %v1640 = vunpack.c.l.b16 %v675
        %v1641 = vunpack.c.h.b16 %v675
        %v1642 = vunpack.c.l.b16 %v676
        %v1643 = vunpack.c.h.b16 %v676
        %v1644 = vunpack.c.l.b16 %v677
        %v1645 = vunpack.c.h.b16 %v677
        %v1646 = vunpack.c.l.b16 %v678
        %v1647 = vunpack.c.h.b16 %v678
        %v1648 = vunpack.c.l.b16 %v679
        %v1649 = vunpack.c.h.b16 %v679
        %v1650 = vunpack.c.l.b16 %v680
        %v1651 = vunpack.c.h.b16 %v680
        %v1652 = vunpack.c.l.b16 %v681
        %v1653 = vunpack.c.h.b16 %v681
        %v1654 = vunpack.c.l.b16 %v682
        %v1655 = vunpack.c.h.b16 %v682
        %v1656 = vunpack.c.l.b16 %v683
        %v1657 = vunpack.c.h.b16 %v683
        %v1658 = vunpack.c.l.b16 %v684
        %v1659 = vunpack.c.h.b16 %v684
        %v1660 = vunpack.c.l.b16 %v685
        %v1661 = vpack.c.b16 %v1166, %v1133
        %v1662 = vpack.c.b16 %v1167, %v1134
        %v1663 = vpack.c.b16 %v1168, %v1135
        %v1664 = vpack.c.b16 %v1169, %v1136
        %v1665 = vpack.c.b16 %v1170, %v1137
        %v1666 = vpack.c.b16 %v1171, %v1138
        %v1667 = vpack.c.b16 %v1172, %v1139
        %v1668 = vpack.c.b16 %v1173, %v1140
        %v1669 = vpack.c.b16 %v1174, %v1141
        %v1670 = vpack.c.b16 %v1175, %v1142
        %v1671 = vpack.c.b16 %v1176, %v1143
        %v1672 = vpack.c.b16 %v1177, %v1144
        %v1673 = vpack.c.b16 %v1178, %v1145
        %v1674 = vpack.c.b16 %v1179, %v1146
        %v1675 = vpack.c.b16 %v1180, %v1147
        %v1676 = vpack.c.b16 %v1181, %v1148
        %v1677 = vpack.c.b16 %v1182, %v1149
        %v1678 = vpack.c.b16 %v1183, %v1150
        %v1679 = vpack.c.b16 %v1184, %v1151
        %v1680 = vpack.c.b16 %v1185, %v1152
        %v1681 = vpack.c.b16 %v1186, %v1153
        %v1682 = vpack.c.b16 %v1187, %v1154
        %v1683 = vpack.c.b16 %v1188, %v1155
        %v1684 = vpack.c.b16 %v1189, %v1156
        %v1685 = vpack.c.b16 %v1190, %v1157
        %v1686 = vpack.c.b16 %v1191, %v1158
        %v1687 = vpack.c.b16 %v1192, %v1159
        %v1688 = vpack.c.b16 %v1193, %v1160
        %v1689 = vpack.c.b16 %v1194, %v1161
        %v1690 = vpack.c.b16 %v1195, %v1162
        %v1691 = vpack.c.b16 %v1196, %v1163
        %v1692 = vpack.c.b16 %v1197, %v1164
        %v1693 = vpack.c.b16 %v1198, %v1165
        %v1694 = vpack.c.b16 %v1232, %v1199
        %v1695 = vpack.c.b16 %v1233, %v1200
        %v1696 = vpack.c.b16 %v1234, %v1201
        %v1697 = vpack.c.b16 %v1235, %v1202
        %v1698 = vpack.c.b16 %v1236, %v1203
        %v1699 = vpack.c.b16 %v1237, %v1204
        %v1700 = vpack.c.b16 %v1238, %v1205
        %v1701 = vpack.c.b16 %v1239, %v1206
        %v1702 = vpack.c.b16 %v1240, %v1207
        %v1703 = vpack.c.b16 %v1241, %v1208
        %v1704 = vpack.c.b16 %v1242, %v1209
        %v1705 = vpack.c.b16 %v1243, %v1210
        %v1706 = vpack.c.b16 %v1244, %v1211
        %v1707 = vpack.c.b16 %v1245, %v1212
        %v1708 = vpack.c.b16 %v1246, %v1213
        %v1709 = vpack.c.b16 %v1247, %v1214
        %v1710 = vpack.c.b16 %v1248, %v1215
        %v1711 = vpack.c.b16 %v1249, %v1216
        %v1712 = vpack.c.b16 %v1250, %v1217
        %v1713 = vpack.c.b16 %v1251, %v1218
        %v1714 = vpack.c.b16 %v1252, %v1219
        %v1715 = vpack.c.b16 %v1253, %v1220
        %v1716 = vpack.c.b16 %v1254, %v1221
        %v1717 = vpack.c.b16 %v1255, %v1222
        %v1718 = vpack.c.b16 %v1256, %v1223
        %v1719 = vpack.c.b16 %v1257, %v1224
        %v1720 = vpack.c.b16 %v1258, %v1225
        %v1721 = vpack.c.b16 %v1259, %v1226
        %v1722 = vpack.c.b16 %v1260, %v1227
        %v1723 = vpack.c.b16 %v1261, %v1228
        %v1724 = vpack.c.b16 %v1262, %v1229
        %v1725 = vpack.c.b16 %v1263, %v1230
        %v1726 = vpack.c.b16 %v1264, %v1231
        %v1727 = vpack.c.b16 %v1298, %v1265
        %v1728 = vpack.c.b16 %v1299, %v1266
        %v1729 = vpack.c.b16 %v1300, %v1267
        %v1730 = vpack.c.b16 %v1301, %v1268
        %v1731 = vpack.c.b16 %v1302, %v1269
        %v1732 = vpack.c.b16 %v1303, %v1270
        %v1733 = vpack.c.b16 %v1304, %v1271
        %v1734 = vpack.c.b16 %v1305, %v1272
        %v1735 = vpack.c.b16 %v1306, %v1273
        %v1736 = vpack.c.b16 %v1307, %v1274
        %v1737 = vpack.c.b16 %v1308, %v1275
        %v1738 = vpack.c.b16 %v1309, %v1276
        %v1739 = vpack.c.b16 %v1310, %v1277
        %v1740 = vpack.c.b16 %v1311, %v1278
        %v1741 = vpack.c.b16 %v1312, %v1279
        %v1742 = vpack.c.b16 %v1313, %v1280
        %v1743 = vpack.c.b16 %v1314, %v1281
        %v1744 = vpack.c.b16 %v1315, %v1282
        %v1745 = vpack.c.b16 %v1316, %v1283
        %v1746 = vpack.c.b16 %v1317, %v1284
        %v1747 = vpack.c.b16 %v1318, %v1285
        %v1748 = vpack.c.b16 %v1319, %v1286
        %v1749 = vpack.c.b16 %v1320, %v1287
        %v1750 = vpack.c.b16 %v1321, %v1288
        %v1751 = vpack.c.b16 %v1322, %v1289
        %v1752 = vpack.c.b16 %v1323, %v1290
        %v1753 = vpack.c.b16 %v1324, %v1291
        %v1754 = vpack.c.b16 %v1325, %v1292
        %v1755 = vpack.c.b16 %v1326, %v1293
        %v1756 = vpack.c.b16 %v1327, %v1294
        %v1757 = vpack.c.b16 %v1328, %v1295
        %v1758 = vpack.c.b16 %v1329, %v1296
        %v1759 = vpack.c.b16 %v1330, %v1297
        %v1760 = vpack.c.b16 %v1364, %v1331
        %v1761 = vpack.c.b16 %v1365, %v1332
        %v1762 = vpack.c.b16 %v1366, %v1333
        %v1763 = vpack.c.b16 %v1367, %v1334
        %v1764 = vpack.c.b16 %v1368, %v1335
        %v1765 = vpack.c.b16 %v1369, %v1336
        %v1766 = vpack.c.b16 %v1370, %v1337
        %v1767 = vpack.c.b16 %v1371, %v1338
        %v1768 = vpack.c.b16 %v1372, %v1339
        %v1769 = vpack.c.b16 %v1373, %v1340
        %v1770 = vpack.c.b16 %v1374, %v1341
        %v1771 = vpack.c.b16 %v1375, %v1342
        %v1772 = vpack.c.b16 %v1376, %v1343
        %v1773 = vpack.c.b16 %v1377, %v1344
        %v1774 = vpack.c.b16 %v1378, %v1345
        %v1775 = vpack.c.b16 %v1379, %v1346
        %v1776 = vpack.c.b16 %v1380, %v1347
        %v1777 = vpack.c.b16 %v1381, %v1348
        %v1778 = vpack.c.b16 %v1382, %v1349
        %v1779 = vpack.c.b16 %v1383, %v1350
        %v1780 = vpack.c.b16 %v1384, %v1351
        %v1781 = vpack.c.b16 %v1385, %v1352
        %v1782 = vpack.c.b16 %v1386, %v1353
        %v1783 = vpack.c.b16 %v1387, %v1354
        %v1784 = vpack.c.b16 %v1388, %v1355
        %v1785 = vpack.c.b16 %v1389, %v1356
        %v1786 = vpack.c.b16 %v1390, %v1357
        %v1787 = vpack.c.b16 %v1391, %v1358
        %v1788 = vpack.c.b16 %v1392, %v1359
        %v1789 = vpack.c.b16 %v1393, %v1360
        %v1790 = vpack.c.b16 %v1394, %v1361
        %v1791 = vpack.c.b16 %v1395, %v1362
        %v1792 = vpack.c.b16 %v1396, %v1363
        %v1793 = vpack.c.b16 %v1430, %v1397
        %v1794 = vpack.c.b16 %v1431, %v1398
        %v1795 = vpack.c.b16 %v1432, %v1399
        %v1796 = vpack.c.b16 %v1433, %v1400
        %v1797 = vpack.c.b16 %v1434, %v1401
        %v1798 = vpack.c.b16 %v1435, %v1402
        %v1799 = vpack.c.b16 %v1436, %v1403
        %v1800 = vpack.c.b16 %v1437, %v1404
        %v1801 = vpack.c.b16 %v1438, %v1405
        %v1802 = vpack.c.b16 %v1439, %v1406
        %v1803 = vpack.c.b16 %v1440, %v1407
        %v1804 = vpack.c.b16 %v1441, %v1408
        %v1805 = vpack.c.b16 %v1442, %v1409
        %v1806 = vpack.c.b16 %v1443, %v1410
        %v1807 = vpack.c.b16 %v1444, %v1411
        %v1808 = vpack.c.b16 %v1445, %v1412
        %v1809 = vpack.c.b16 %v1446, %v1413
        %v1810 = vpack.c.b16 %v1447, %v1414
        %v1811 = vpack.c.b16 %v1448, %v1415
        %v1812 = vpack.c.b16 %v1449, %v1416
        %v1813 = vpack.c.b16 %v1450, %v1417
        %v1814 = vpack.c.b16 %v1451, %v1418
        %v1815 = vpack.c.b16 %v1452, %v1419
        %v1816 = vpack.c.b16 %v1453, %v1420
        %v1817 = vpack.c.b16 %v1454, %v1421
        %v1818 = vpack.c.b16 %v1455, %v1422
        %v1819 = vpack.c.b16 %v1456, %v1423
        %v1820 = vpack.c.b16 %v1457, %v1424
        %v1821 = vpack.c.b16 %v1458, %v1425
        %v1822 = vpack.c.b16 %v1459, %v1426
        %v1823 = vpack.c.b16 %v1460, %v1427
        %v1824 = vpack.c.b16 %v1461, %v1428
        %v1825 = vpack.c.b16 %v1462, %v1429
        %v1826 = vpack.c.b16 %v1496, %v1463
        %v1827 = vpack.c.b16 %v1497, %v1464
        %v1828 = vpack.c.b16 %v1498, %v1465
        %v1829 = vpack.c.b16 %v1499, %v1466
        %v1830 = vpack.c.b16 %v1500, %v1467
        %v1831 = vpack.c.b16 %v1501, %v1468
        %v1832 = vpack.c.b16 %v1502, %v1469
        %v1833 = vpack.c.b16 %v1503, %v1470
        %v1834 = vpack.c.b16 %v1504, %v1471
        %v1835 = vpack.c.b16 %v1505, %v1472
        %v1836 = vpack.c.b16 %v1506, %v1473
        %v1837 = vpack.c.b16 %v1507, %v1474
        %v1838 = vpack.c.b16 %v1508, %v1475
        %v1839 = vpack.c.b16 %v1509, %v1476
        %v1840 = vpack.c.b16 %v1510, %v1477
        %v1841 = vpack.c.b16 %v1511, %v1478
        %v1842 = vpack.c.b16 %v1512, %v1479
        %v1843 = vpack.c.b16 %v1513, %v1480
        %v1844 = vpack.c.b16 %v1514, %v1481
        %v1845 = vpack.c.b16 %v1515, %v1482
        %v1846 = vpack.c.b16 %v1516, %v1483
        %v1847 = vpack.c.b16 %v1517, %v1484
        %v1848 = vpack.c.b16 %v1518, %v1485
        %v1849 = vpack.c.b16 %v1519, %v1486
        %v1850 = vpack.c.b16 %v1520, %v1487
        %v1851 = vpack.c.b16 %v1521, %v1488
        %v1852 = vpack.c.b16 %v1522, %v1489
        %v1853 = vpack.c.b16 %v1523, %v1490
        %v1854 = vpack.c.b16 %v1524, %v1491
        %v1855 = vpack.c.b16 %v1525, %v1492
        %v1856 = vpack.c.b16 %v1526, %v1493
        %v1857 = vpack.c.b16 %v1527, %v1494
        %v1858 = vpack.c.b16 %v1528, %v1495
        %v1859 = vpack.c.b16 %v1562, %v1529
        %v1860 = vpack.c.b16 %v1563, %v1530
        %v1861 = vpack.c.b16 %v1564, %v1531
        %v1862 = vpack.c.b16 %v1565, %v1532
        %v1863 = vpack.c.b16 %v1566, %v1533
        %v1864 = vpack.c.b16 %v1567, %v1534
        %v1865 = vpack.c.b16 %v1568, %v1535
        %v1866 = vpack.c.b16 %v1569, %v1536
        %v1867 = vpack.c.b16 %v1570, %v1537
        %v1868 = vpack.c.b16 %v1571, %v1538
        %v1869 = vpack.c.b16 %v1572, %v1539
        %v1870 = vpack.c.b16 %v1573, %v1540
        %v1871 = vpack.c.b16 %v1574, %v1541
        %v1872 = vpack.c.b16 %v1575, %v1542
        %v1873 = vpack.c.b16 %v1576, %v1543
        %v1874 = vpack.c.b16 %v1577, %v1544
        %v1875 = vpack.c.b16 %v1578, %v1545
        %v1876 = vpack.c.b16 %v1579, %v1546
        %v1877 = vpack.c.b16 %v1580, %v1547
        %v1878 = vpack.c.b16 %v1581, %v1548
        %v1879 = vpack.c.b16 %v1582, %v1549
        %v1880 = vpack.c.b16 %v1583, %v1550
        %v1881 = vpack.c.b16 %v1584, %v1551
        %v1882 = vpack.c.b16 %v1585, %v1552
        %v1883 = vpack.c.b16 %v1586, %v1553
        %v1884 = vpack.c.b16 %v1587, %v1554
        %v1885 = vpack.c.b16 %v1588, %v1555
        %v1886 = vpack.c.b16 %v1589, %v1556
        %v1887 = vpack.c.b16 %v1590, %v1557
        %v1888 = vpack.c.b16 %v1591, %v1558
        %v1889 = vpack.c.b16 %v1592, %v1559
        %v1890 = vpack.c.b16 %v1593, %v1560
        %v1891 = vpack.c.b16 %v1594, %v1561
        %v1892 = vpack.c.b16 %v1628, %v1595
        %v1893 = vpack.c.b16 %v1629, %v1596
        %v1894 = vpack.c.b16 %v1630, %v1597
        %v1895 = vpack.c.b16 %v1631, %v1598
        %v1896 = vpack.c.b16 %v1632, %v1599
        %v1897 = vpack.c.b16 %v1633, %v1600
        %v1898 = vpack.c.b16 %v1634, %v1601
        %v1899 = vpack.c.b16 %v1635, %v1602
        %v1900 = vpack.c.b16 %v1636, %v1603
        %v1901 = vpack.c.b16 %v1637, %v1604
        %v1902 = vpack.c.b16 %v1638, %v1605
        %v1903 = vpack.c.b16 %v1639, %v1606
        %v1904 = vpack.c.b16 %v1640, %v1607
        %v1905 = vpack.c.b16 %v1641, %v1608
        %v1906 = vpack.c.b16 %v1642, %v1609
        %v1907 = vpack.c.b16 %v1643, %v1610
        %v1908 = vpack.c.b16 %v1644, %v1611
        %v1909 = vpack.c.b16 %v1645, %v1612
        %v1910 = vpack.c.b16 %v1646, %v1613
        %v1911 = vpack.c.b16 %v1647, %v1614
        %v1912 = vpack.c.b16 %v1648, %v1615
        %v1913 = vpack.c.b16 %v1649, %v1616
        %v1914 = vpack.c.b16 %v1650, %v1617
        %v1915 = vpack.c.b16 %v1651, %v1618
        %v1916 = vpack.c.b16 %v1652, %v1619
        %v1917 = vpack.c.b16 %v1653, %v1620
        %v1918 = vpack.c.b16 %v1654, %v1621
        %v1919 = vpack.c.b16 %v1655, %v1622
        %v1920 = vpack.c.b16 %v1656, %v1623
        %v1921 = vpack.c.b16 %v1657, %v1624
        %v1922 = vpack.c.b16 %v1658, %v1625
        %v1923 = vpack.c.b16 %v1659, %v1626
        %v1924 = vpack.c.b16 %v1660, %v1627
        %2189 = vmatprep.subr.bf16.mxu0 %v1662
        %2190 = vmatpush1.bf16.msra.mxu0 %v1661
        %2191 = vmatprep.subr.bf16.mxu0 %v1695
        %2192 = vmatpush1.bf16.msra.mxu0 %v1694
        %2193 = vmatprep.subr.bf16.mxu0 %v1728
        %2194 = vmatpush1.bf16.msra.mxu0 %v1727
        %2195 = vmatprep.subr.bf16.mxu0 %v1761
        %2196 = vmatpush1.bf16.msra.mxu0 %v1760
        %2197 = vmatprep.subr.bf16.mxu0 %v1794
        %2198 = vmatpush1.bf16.msra.mxu0 %v1793
        %2199 = vmatprep.subr.bf16.mxu0 %v1827
        %2200 = vmatpush1.bf16.msra.mxu0 %v1826
        %2201 = vmatprep.subr.bf16.mxu0 %v1860
        %2202 = vmatpush1.bf16.msra.mxu0 %v1859
        %2203 = vmatprep.subr.bf16.mxu0 %v1893
        %2204 = vmatpush1.bf16.msra.mxu0 %v1892
        %2205 = vmatprep.subr.bf16.mxu0 0
        %2206 = vmatpush1.bf16.msra.mxu0 0
        %2207 = vmatprep.subr.bf16.mxu0 0
        %2208 = vmatpush1.bf16.msra.mxu0 0
        %2209 = vmatprep.subr.bf16.mxu0 0
        %2210 = vmatpush1.bf16.msra.mxu0 0
        %2211 = vmatprep.subr.bf16.mxu0 0
        %2212 = vmatpush1.bf16.msra.mxu0 0
        %2213 = vmatprep.subr.bf16.mxu0 0
        %2214 = vmatpush1.bf16.msra.mxu0 0
        %2215 = vmatprep.subr.bf16.mxu0 0
        %2216 = vmatpush1.bf16.msra.mxu0 0
        %2217 = vmatprep.subr.bf16.mxu0 0
        %2218 = vmatpush1.bf16.msra.mxu0 0
        %2219 = vmatprep.subr.bf16.mxu0 0
        %2220 = vmatpush1.bf16.msra.mxu0 0
        %2221 = vmatprep.mubr.bf16.mxu0 0
        %2222 = vmatmul.mubr.bf16.gmra.mrb[0].mxu0 %v413
        %v2223 = vpop.f32.mrb[0].mxu0
        %v2224 = vadd.f32 %v699, %v2223
        %v2225 = vpop.f32.mrb[0].mxu0
        %v2226 = vadd.f32 %v703, %v2225
        %v2227 = vpop.f32.mrb[0].mxu0
        %v2228 = vpop.f32.mrb[0].mxu0
        %2229 = vdwg.mxu0
        %2230 = vmatprep.subr.bf16.mxu0 %v1664
        %2231 = vmatpush1.bf16.msra.mxu0 %v1663
        %2232 = vmatprep.subr.bf16.mxu0 %v1697
        %2233 = vmatpush1.bf16.msra.mxu0 %v1696
        %2234 = vmatprep.subr.bf16.mxu0 %v1730
        %2235 = vmatpush1.bf16.msra.mxu0 %v1729
        %2236 = vmatprep.subr.bf16.mxu0 %v1763
        %2237 = vmatpush1.bf16.msra.mxu0 %v1762
        %2238 = vmatprep.subr.bf16.mxu0 %v1796
        %2239 = vmatpush1.bf16.msra.mxu0 %v1795
        %2240 = vmatprep.subr.bf16.mxu0 %v1829
        %2241 = vmatpush1.bf16.msra.mxu0 %v1828
        %2242 = vmatprep.subr.bf16.mxu0 %v1862
        %2243 = vmatpush1.bf16.msra.mxu0 %v1861
        %2244 = vmatprep.subr.bf16.mxu0 %v1895
        %2245 = vmatpush1.bf16.msra.mxu0 %v1894
        %2246 = vmatprep.subr.bf16.mxu0 0
        %2247 = vmatpush1.bf16.msra.mxu0 0
        %2248 = vmatprep.subr.bf16.mxu0 0
        %2249 = vmatpush1.bf16.msra.mxu0 0
        %2250 = vmatprep.subr.bf16.mxu0 0
        %2251 = vmatpush1.bf16.msra.mxu0 0
        %2252 = vmatprep.subr.bf16.mxu0 0
        %2253 = vmatpush1.bf16.msra.mxu0 0
        %2254 = vmatprep.subr.bf16.mxu0 0
        %2255 = vmatpush1.bf16.msra.mxu0 0
        %2256 = vmatprep.subr.bf16.mxu0 0
        %2257 = vmatpush1.bf16.msra.mxu0 0
        %2258 = vmatprep.subr.bf16.mxu0 0
        %2259 = vmatpush1.bf16.msra.mxu0 0
        %2260 = vmatprep.subr.bf16.mxu0 0
        %2261 = vmatpush1.bf16.msra.mxu0 0
        %2262 = vmatprep.mubr.bf16.mxu0 0
        %2263 = vmatmul.mubr.bf16.gmra.mrb[0].mxu0 %v413
        %v2264 = vpop.f32.mrb[0].mxu0
        %v2265 = vadd.f32 %v707, %v2264
        %v2266 = vpop.f32.mrb[0].mxu0
        %v2267 = vadd.f32 %v711, %v2266
        %v2268 = vpop.f32.mrb[0].mxu0
        %v2269 = vpop.f32.mrb[0].mxu0
        %2270 = vdwg.mxu0
        %2271 = vmatprep.subr.bf16.mxu0 %v1666
        %2272 = vmatpush1.bf16.msra.mxu0 %v1665
        %2273 = vmatprep.subr.bf16.mxu0 %v1699
        %2274 = vmatpush1.bf16.msra.mxu0 %v1698
        %2275 = vmatprep.subr.bf16.mxu0 %v1732
        %2276 = vmatpush1.bf16.msra.mxu0 %v1731
        %2277 = vmatprep.subr.bf16.mxu0 %v1765
        %2278 = vmatpush1.bf16.msra.mxu0 %v1764
        %2279 = vmatprep.subr.bf16.mxu0 %v1798
        %2280 = vmatpush1.bf16.msra.mxu0 %v1797
        %2281 = vmatprep.subr.bf16.mxu0 %v1831
        %2282 = vmatpush1.bf16.msra.mxu0 %v1830
        %2283 = vmatprep.subr.bf16.mxu0 %v1864
        %2284 = vmatpush1.bf16.msra.mxu0 %v1863
        %2285 = vmatprep.subr.bf16.mxu0 %v1897
        %2286 = vmatpush1.bf16.msra.mxu0 %v1896
        %2287 = vmatprep.subr.bf16.mxu0 0
        %2288 = vmatpush1.bf16.msra.mxu0 0
        %2289 = vmatprep.subr.bf16.mxu0 0
        %2290 = vmatpush1.bf16.msra.mxu0 0
        %2291 = vmatprep.subr.bf16.mxu0 0
        %2292 = vmatpush1.bf16.msra.mxu0 0
        %2293 = vmatprep.subr.bf16.mxu0 0
        %2294 = vmatpush1.bf16.msra.mxu0 0
        %2295 = vmatprep.subr.bf16.mxu0 0
        %2296 = vmatpush1.bf16.msra.mxu0 0
        %2297 = vmatprep.subr.bf16.mxu0 0
        %2298 = vmatpush1.bf16.msra.mxu0 0
        %2299 = vmatprep.subr.bf16.mxu0 0
        %2300 = vmatpush1.bf16.msra.mxu0 0
        %2301 = vmatprep.subr.bf16.mxu0 0
        %2302 = vmatpush1.bf16.msra.mxu0 0
        %2303 = vmatprep.mubr.bf16.mxu0 0
        %2304 = vmatmul.mubr.bf16.gmra.mrb[0].mxu0 %v413
        %v2305 = vpop.f32.mrb[0].mxu0
        %v2306 = vadd.f32 %v715, %v2305
        %v2307 = vpop.f32.mrb[0].mxu0
        %v2308 = vadd.f32 %v719, %v2307
        %v2309 = vpop.f32.mrb[0].mxu0
        %v2310 = vpop.f32.mrb[0].mxu0
        %2311 = vdwg.mxu0
        %2312 = vmatprep.subr.bf16.mxu0 %v1668
        %2313 = vmatpush1.bf16.msra.mxu0 %v1667
        %2314 = vmatprep.subr.bf16.mxu0 %v1701
        %2315 = vmatpush1.bf16.msra.mxu0 %v1700
        %2316 = vmatprep.subr.bf16.mxu0 %v1734
        %2317 = vmatpush1.bf16.msra.mxu0 %v1733
        %2318 = vmatprep.subr.bf16.mxu0 %v1767
        %2319 = vmatpush1.bf16.msra.mxu0 %v1766
        %2320 = vmatprep.subr.bf16.mxu0 %v1800
        %2321 = vmatpush1.bf16.msra.mxu0 %v1799
        %2322 = vmatprep.subr.bf16.mxu0 %v1833
        %2323 = vmatpush1.bf16.msra.mxu0 %v1832
        %2324 = vmatprep.subr.bf16.mxu0 %v1866
        %2325 = vmatpush1.bf16.msra.mxu0 %v1865
        %2326 = vmatprep.subr.bf16.mxu0 %v1899
        %2327 = vmatpush1.bf16.msra.mxu0 %v1898
        %2328 = vmatprep.subr.bf16.mxu0 0
        %2329 = vmatpush1.bf16.msra.mxu0 0
        %2330 = vmatprep.subr.bf16.mxu0 0
        %2331 = vmatpush1.bf16.msra.mxu0 0
        %2332 = vmatprep.subr.bf16.mxu0 0
        %2333 = vmatpush1.bf16.msra.mxu0 0
        %2334 = vmatprep.subr.bf16.mxu0 0
        %2335 = vmatpush1.bf16.msra.mxu0 0
        %2336 = vmatprep.subr.bf16.mxu0 0
        %2337 = vmatpush1.bf16.msra.mxu0 0
        %2338 = vmatprep.subr.bf16.mxu0 0
        %2339 = vmatpush1.bf16.msra.mxu0 0
        %2340 = vmatprep.subr.bf16.mxu0 0
        %2341 = vmatpush1.bf16.msra.mxu0 0
        %2342 = vmatprep.subr.bf16.mxu0 0
        %2343 = vmatpush1.bf16.msra.mxu0 0
        %2344 = vmatprep.mubr.bf16.mxu0 0
        %2345 = vmatmul.mubr.bf16.gmra.mrb[0].mxu0 %v413
        %v2346 = vpop.f32.mrb[0].mxu0
        %v2347 = vadd.f32 %v723, %v2346
        %v2348 = vpop.f32.mrb[0].mxu0
        %v2349 = vadd.f32 %v727, %v2348
        %v2350 = vpop.f32.mrb[0].mxu0
        %v2351 = vpop.f32.mrb[0].mxu0
        %2352 = vdwg.mxu0
        %2353 = vmatprep.subr.bf16.mxu0 %v1670
        %2354 = vmatpush1.bf16.msra.mxu0 %v1669
        %2355 = vmatprep.subr.bf16.mxu0 %v1703
        %2356 = vmatpush1.bf16.msra.mxu0 %v1702
        %2357 = vmatprep.subr.bf16.mxu0 %v1736
        %2358 = vmatpush1.bf16.msra.mxu0 %v1735
        %2359 = vmatprep.subr.bf16.mxu0 %v1769
        %2360 = vmatpush1.bf16.msra.mxu0 %v1768
        %2361 = vmatprep.subr.bf16.mxu0 %v1802
        %2362 = vmatpush1.bf16.msra.mxu0 %v1801
        %2363 = vmatprep.subr.bf16.mxu0 %v1835
        %2364 = vmatpush1.bf16.msra.mxu0 %v1834
        %2365 = vmatprep.subr.bf16.mxu0 %v1868
        %2366 = vmatpush1.bf16.msra.mxu0 %v1867
        %2367 = vmatprep.subr.bf16.mxu0 %v1901
        %2368 = vmatpush1.bf16.msra.mxu0 %v1900
        %2369 = vmatprep.subr.bf16.mxu0 0
        %2370 = vmatpush1.bf16.msra.mxu0 0
        %2371 = vmatprep.subr.bf16.mxu0 0
        %2372 = vmatpush1.bf16.msra.mxu0 0
        %2373 = vmatprep.subr.bf16.mxu0 0
        %2374 = vmatpush1.bf16.msra.mxu0 0
        %2375 = vmatprep.subr.bf16.mxu0 0
        %2376 = vmatpush1.bf16.msra.mxu0 0
        %2377 = vmatprep.subr.bf16.mxu0 0
        %2378 = vmatpush1.bf16.msra.mxu0 0
        %2379 = vmatprep.subr.bf16.mxu0 0
        %2380 = vmatpush1.bf16.msra.mxu0 0
        %2381 = vmatprep.subr.bf16.mxu0 0
        %2382 = vmatpush1.bf16.msra.mxu0 0
        %2383 = vmatprep.subr.bf16.mxu0 0
        %2384 = vmatpush1.bf16.msra.mxu0 0
        %2385 = vmatprep.mubr.bf16.mxu0 0
        %2386 = vmatmul.mubr.bf16.gmra.mrb[0].mxu0 %v413
        %v2387 = vpop.f32.mrb[0].mxu0
        %v2388 = vadd.f32 %v731, %v2387
        %v2389 = vpop.f32.mrb[0].mxu0
        %v2390 = vadd.f32 %v735, %v2389
        %v2391 = vpop.f32.mrb[0].mxu0
        %v2392 = vpop.f32.mrb[0].mxu0
        %2393 = vdwg.mxu0
        %2394 = vmatprep.subr.bf16.mxu0 %v1672
        %2395 = vmatpush1.bf16.msra.mxu0 %v1671
        %2396 = vmatprep.subr.bf16.mxu0 %v1705
        %2397 = vmatpush1.bf16.msra.mxu0 %v1704
        %2398 = vmatprep.subr.bf16.mxu0 %v1738
        %2399 = vmatpush1.bf16.msra.mxu0 %v1737
        %2400 = vmatprep.subr.bf16.mxu0 %v1771
        %2401 = vmatpush1.bf16.msra.mxu0 %v1770
        %2402 = vmatprep.subr.bf16.mxu0 %v1804
        %2403 = vmatpush1.bf16.msra.mxu0 %v1803
        %2404 = vmatprep.subr.bf16.mxu0 %v1837
        %2405 = vmatpush1.bf16.msra.mxu0 %v1836
        %2406 = vmatprep.subr.bf16.mxu0 %v1870
        %2407 = vmatpush1.bf16.msra.mxu0 %v1869
        %2408 = vmatprep.subr.bf16.mxu0 %v1903
        %2409 = vmatpush1.bf16.msra.mxu0 %v1902
        %2410 = vmatprep.subr.bf16.mxu0 0
        %2411 = vmatpush1.bf16.msra.mxu0 0
        %2412 = vmatprep.subr.bf16.mxu0 0
        %2413 = vmatpush1.bf16.msra.mxu0 0
        %2414 = vmatprep.subr.bf16.mxu0 0
        %2415 = vmatpush1.bf16.msra.mxu0 0
        %2416 = vmatprep.subr.bf16.mxu0 0
        %2417 = vmatpush1.bf16.msra.mxu0 0
        %2418 = vmatprep.subr.bf16.mxu0 0
        %2419 = vmatpush1.bf16.msra.mxu0 0
        %2420 = vmatprep.subr.bf16.mxu0 0
        %2421 = vmatpush1.bf16.msra.mxu0 0
        %2422 = vmatprep.subr.bf16.mxu0 0
        %2423 = vmatpush1.bf16.msra.mxu0 0
        %2424 = vmatprep.subr.bf16.mxu0 0
        %2425 = vmatpush1.bf16.msra.mxu0 0
        %2426 = vmatprep.mubr.bf16.mxu0 0
        %2427 = vmatmul.mubr.bf16.gmra.mrb[0].mxu0 %v413
        %v2428 = vpop.f32.mrb[0].mxu0
        %v2429 = vadd.f32 %v739, %v2428
        %v2430 = vpop.f32.mrb[0].mxu0
        %v2431 = vadd.f32 %v743, %v2430
        %v2432 = vpop.f32.mrb[0].mxu0
        %v2433 = vpop.f32.mrb[0].mxu0
        %2434 = vdwg.mxu0
        %2435 = vmatprep.subr.bf16.mxu0 %v1674
        %2436 = vmatpush1.bf16.msra.mxu0 %v1673
        %2437 = vmatprep.subr.bf16.mxu0 %v1707
        %2438 = vmatpush1.bf16.msra.mxu0 %v1706
        %2439 = vmatprep.subr.bf16.mxu0 %v1740
        %2440 = vmatpush1.bf16.msra.mxu0 %v1739
        %2441 = vmatprep.subr.bf16.mxu0 %v1773
        %2442 = vmatpush1.bf16.msra.mxu0 %v1772
        %2443 = vmatprep.subr.bf16.mxu0 %v1806
        %2444 = vmatpush1.bf16.msra.mxu0 %v1805
        %2445 = vmatprep.subr.bf16.mxu0 %v1839
        %2446 = vmatpush1.bf16.msra.mxu0 %v1838
        %2447 = vmatprep.subr.bf16.mxu0 %v1872
        %2448 = vmatpush1.bf16.msra.mxu0 %v1871
        %2449 = vmatprep.subr.bf16.mxu0 %v1905
        %2450 = vmatpush1.bf16.msra.mxu0 %v1904
        %2451 = vmatprep.subr.bf16.mxu0 0
        %2452 = vmatpush1.bf16.msra.mxu0 0
        %2453 = vmatprep.subr.bf16.mxu0 0
        %2454 = vmatpush1.bf16.msra.mxu0 0
        %2455 = vmatprep.subr.bf16.mxu0 0
        %2456 = vmatpush1.bf16.msra.mxu0 0
        %2457 = vmatprep.subr.bf16.mxu0 0
        %2458 = vmatpush1.bf16.msra.mxu0 0
        %2459 = vmatprep.subr.bf16.mxu0 0
        %2460 = vmatpush1.bf16.msra.mxu0 0
        %2461 = vmatprep.subr.bf16.mxu0 0
        %2462 = vmatpush1.bf16.msra.mxu0 0
        %2463 = vmatprep.subr.bf16.mxu0 0
        %2464 = vmatpush1.bf16.msra.mxu0 0
        %2465 = vmatprep.subr.bf16.mxu0 0
        %2466 = vmatpush1.bf16.msra.mxu0 0
        %2467 = vmatprep.mubr.bf16.mxu0 0
        %2468 = vmatmul.mubr.bf16.gmra.mrb[0].mxu0 %v413
        %v2469 = vpop.f32.mrb[0].mxu0
        %v2470 = vadd.f32 %v747, %v2469
        %v2471 = vpop.f32.mrb[0].mxu0
        %v2472 = vadd.f32 %v751, %v2471
        %v2473 = vpop.f32.mrb[0].mxu0
        %v2474 = vpop.f32.mrb[0].mxu0
        %2475 = vdwg.mxu0
        %2476 = vmatprep.subr.bf16.mxu0 %v1676
        %2477 = vmatpush1.bf16.msra.mxu0 %v1675
        %2478 = vmatprep.subr.bf16.mxu0 %v1709
        %2479 = vmatpush1.bf16.msra.mxu0 %v1708
        %2480 = vmatprep.subr.bf16.mxu0 %v1742
        %2481 = vmatpush1.bf16.msra.mxu0 %v1741
        %2482 = vmatprep.subr.bf16.mxu0 %v1775
        %2483 = vmatpush1.bf16.msra.mxu0 %v1774
        %2484 = vmatprep.subr.bf16.mxu0 %v1808
        %2485 = vmatpush1.bf16.msra.mxu0 %v1807
        %2486 = vmatprep.subr.bf16.mxu0 %v1841
        %2487 = vmatpush1.bf16.msra.mxu0 %v1840
        %2488 = vmatprep.subr.bf16.mxu0 %v1874
        %2489 = vmatpush1.bf16.msra.mxu0 %v1873
        %2490 = vmatprep.subr.bf16.mxu0 %v1907
        %2491 = vmatpush1.bf16.msra.mxu0 %v1906
        %2492 = vmatprep.subr.bf16.mxu0 0
        %2493 = vmatpush1.bf16.msra.mxu0 0
        %2494 = vmatprep.subr.bf16.mxu0 0
        %2495 = vmatpush1.bf16.msra.mxu0 0
        %2496 = vmatprep.subr.bf16.mxu0 0
        %2497 = vmatpush1.bf16.msra.mxu0 0
        %2498 = vmatprep.subr.bf16.mxu0 0
        %2499 = vmatpush1.bf16.msra.mxu0 0
        %2500 = vmatprep.subr.bf16.mxu0 0
        %2501 = vmatpush1.bf16.msra.mxu0 0
        %2502 = vmatprep.subr.bf16.mxu0 0
        %2503 = vmatpush1.bf16.msra.mxu0 0
        %2504 = vmatprep.subr.bf16.mxu0 0
        %2505 = vmatpush1.bf16.msra.mxu0 0
        %2506 = vmatprep.subr.bf16.mxu0 0
        %2507 = vmatpush1.bf16.msra.mxu0 0
        %2508 = vmatprep.mubr.bf16.mxu0 0
        %2509 = vmatmul.mubr.bf16.gmra.mrb[0].mxu0 %v413
        %v2510 = vpop.f32.mrb[0].mxu0
        %v2511 = vadd.f32 %v755, %v2510
        %v2512 = vpop.f32.mrb[0].mxu0
        %v2513 = vadd.f32 %v759, %v2512
        %v2514 = vpop.f32.mrb[0].mxu0
        %v2515 = vpop.f32.mrb[0].mxu0
        %2516 = vdwg.mxu0
        %2517 = vmatprep.subr.bf16.mxu0 %v1678
        %2518 = vmatpush1.bf16.msra.mxu0 %v1677
        %2519 = vmatprep.subr.bf16.mxu0 %v1711
        %2520 = vmatpush1.bf16.msra.mxu0 %v1710
        %2521 = vmatprep.subr.bf16.mxu0 %v1744
        %2522 = vmatpush1.bf16.msra.mxu0 %v1743
        %2523 = vmatprep.subr.bf16.mxu0 %v1777
        %2524 = vmatpush1.bf16.msra.mxu0 %v1776
        %2525 = vmatprep.subr.bf16.mxu0 %v1810
        %2526 = vmatpush1.bf16.msra.mxu0 %v1809
        %2527 = vmatprep.subr.bf16.mxu0 %v1843
        %2528 = vmatpush1.bf16.msra.mxu0 %v1842
        %2529 = vmatprep.subr.bf16.mxu0 %v1876
        %2530 = vmatpush1.bf16.msra.mxu0 %v1875
        %2531 = vmatprep.subr.bf16.mxu0 %v1909
        %2532 = vmatpush1.bf16.msra.mxu0 %v1908
        %2533 = vmatprep.subr.bf16.mxu0 0
        %2534 = vmatpush1.bf16.msra.mxu0 0
        %2535 = vmatprep.subr.bf16.mxu0 0
        %2536 = vmatpush1.bf16.msra.mxu0 0
        %2537 = vmatprep.subr.bf16.mxu0 0
        %2538 = vmatpush1.bf16.msra.mxu0 0
        %2539 = vmatprep.subr.bf16.mxu0 0
        %2540 = vmatpush1.bf16.msra.mxu0 0
        %2541 = vmatprep.subr.bf16.mxu0 0
        %2542 = vmatpush1.bf16.msra.mxu0 0
        %2543 = vmatprep.subr.bf16.mxu0 0
        %2544 = vmatpush1.bf16.msra.mxu0 0
        %2545 = vmatprep.subr.bf16.mxu0 0
        %2546 = vmatpush1.bf16.msra.mxu0 0
        %2547 = vmatprep.subr.bf16.mxu0 0
        %2548 = vmatpush1.bf16.msra.mxu0 0
        %2549 = vmatprep.mubr.bf16.mxu0 0
        %2550 = vmatmul.mubr.bf16.gmra.mrb[0].mxu0 %v413
        %v2551 = vpop.f32.mrb[0].mxu0
        %v2552 = vadd.f32 %v763, %v2551
        %v2553 = vpop.f32.mrb[0].mxu0
        %v2554 = vadd.f32 %v767, %v2553
        %v2555 = vpop.f32.mrb[0].mxu0
        %v2556 = vpop.f32.mrb[0].mxu0
        %2557 = vdwg.mxu0
        %2558 = vmatprep.subr.bf16.mxu0 %v1680
        %2559 = vmatpush1.bf16.msra.mxu0 %v1679
        %2560 = vmatprep.subr.bf16.mxu0 %v1713
        %2561 = vmatpush1.bf16.msra.mxu0 %v1712
        %2562 = vmatprep.subr.bf16.mxu0 %v1746
        %2563 = vmatpush1.bf16.msra.mxu0 %v1745
        %2564 = vmatprep.subr.bf16.mxu0 %v1779
        %2565 = vmatpush1.bf16.msra.mxu0 %v1778
        %2566 = vmatprep.subr.bf16.mxu0 %v1812
        %2567 = vmatpush1.bf16.msra.mxu0 %v1811
        %2568 = vmatprep.subr.bf16.mxu0 %v1845
        %2569 = vmatpush1.bf16.msra.mxu0 %v1844
        %2570 = vmatprep.subr.bf16.mxu0 %v1878
        %2571 = vmatpush1.bf16.msra.mxu0 %v1877
        %2572 = vmatprep.subr.bf16.mxu0 %v1911
        %2573 = vmatpush1.bf16.msra.mxu0 %v1910
        %2574 = vmatprep.subr.bf16.mxu0 0
        %2575 = vmatpush1.bf16.msra.mxu0 0
        %2576 = vmatprep.subr.bf16.mxu0 0
        %2577 = vmatpush1.bf16.msra.mxu0 0
        %2578 = vmatprep.subr.bf16.mxu0 0
        %2579 = vmatpush1.bf16.msra.mxu0 0
        %2580 = vmatprep.subr.bf16.mxu0 0
        %2581 = vmatpush1.bf16.msra.mxu0 0
        %2582 = vmatprep.subr.bf16.mxu0 0
        %2583 = vmatpush1.bf16.msra.mxu0 0
        %2584 = vmatprep.subr.bf16.mxu0 0
        %2585 = vmatpush1.bf16.msra.mxu0 0
        %2586 = vmatprep.subr.bf16.mxu0 0
        %2587 = vmatpush1.bf16.msra.mxu0 0
        %2588 = vmatprep.subr.bf16.mxu0 0
        %2589 = vmatpush1.bf16.msra.mxu0 0
        %2590 = vmatprep.mubr.bf16.mxu0 0
        %2591 = vmatmul.mubr.bf16.gmra.mrb[0].mxu0 %v413
        %v2592 = vpop.f32.mrb[0].mxu0
        %v2593 = vadd.f32 %v771, %v2592
        %v2594 = vpop.f32.mrb[0].mxu0
        %v2595 = vadd.f32 %v775, %v2594
        %v2596 = vpop.f32.mrb[0].mxu0
        %v2597 = vpop.f32.mrb[0].mxu0
        %2598 = vdwg.mxu0
        %2599 = vmatprep.subr.bf16.mxu0 %v1682
        %2600 = vmatpush1.bf16.msra.mxu0 %v1681
        %2601 = vmatprep.subr.bf16.mxu0 %v1715
        %2602 = vmatpush1.bf16.msra.mxu0 %v1714
        %2603 = vmatprep.subr.bf16.mxu0 %v1748
        %2604 = vmatpush1.bf16.msra.mxu0 %v1747
        %2605 = vmatprep.subr.bf16.mxu0 %v1781
        %2606 = vmatpush1.bf16.msra.mxu0 %v1780
        %2607 = vmatprep.subr.bf16.mxu0 %v1814
        %2608 = vmatpush1.bf16.msra.mxu0 %v1813
        %2609 = vmatprep.subr.bf16.mxu0 %v1847
        %2610 = vmatpush1.bf16.msra.mxu0 %v1846
        %2611 = vmatprep.subr.bf16.mxu0 %v1880
        %2612 = vmatpush1.bf16.msra.mxu0 %v1879
        %2613 = vmatprep.subr.bf16.mxu0 %v1913
        %2614 = vmatpush1.bf16.msra.mxu0 %v1912
        %2615 = vmatprep.subr.bf16.mxu0 0
        %2616 = vmatpush1.bf16.msra.mxu0 0
        %2617 = vmatprep.subr.bf16.mxu0 0
        %2618 = vmatpush1.bf16.msra.mxu0 0
        %2619 = vmatprep.subr.bf16.mxu0 0
        %2620 = vmatpush1.bf16.msra.mxu0 0
        %2621 = vmatprep.subr.bf16.mxu0 0
        %2622 = vmatpush1.bf16.msra.mxu0 0
        %2623 = vmatprep.subr.bf16.mxu0 0
        %2624 = vmatpush1.bf16.msra.mxu0 0
        %2625 = vmatprep.subr.bf16.mxu0 0
        %2626 = vmatpush1.bf16.msra.mxu0 0
        %2627 = vmatprep.subr.bf16.mxu0 0
        %2628 = vmatpush1.bf16.msra.mxu0 0
        %2629 = vmatprep.subr.bf16.mxu0 0
        %2630 = vmatpush1.bf16.msra.mxu0 0
        %2631 = vmatprep.mubr.bf16.mxu0 0
        %2632 = vmatmul.mubr.bf16.gmra.mrb[0].mxu0 %v413
        %v2633 = vpop.f32.mrb[0].mxu0
        %v2634 = vadd.f32 %v779, %v2633
        %v2635 = vpop.f32.mrb[0].mxu0
        %v2636 = vadd.f32 %v783, %v2635
        %v2637 = vpop.f32.mrb[0].mxu0
        %v2638 = vpop.f32.mrb[0].mxu0
        %2639 = vdwg.mxu0
        %2640 = vmatprep.subr.bf16.mxu0 %v1684
        %2641 = vmatpush1.bf16.msra.mxu0 %v1683
        %2642 = vmatprep.subr.bf16.mxu0 %v1717
        %2643 = vmatpush1.bf16.msra.mxu0 %v1716
        %2644 = vmatprep.subr.bf16.mxu0 %v1750
        %2645 = vmatpush1.bf16.msra.mxu0 %v1749
        %2646 = vmatprep.subr.bf16.mxu0 %v1783
        %2647 = vmatpush1.bf16.msra.mxu0 %v1782
        %2648 = vmatprep.subr.bf16.mxu0 %v1816
        %2649 = vmatpush1.bf16.msra.mxu0 %v1815
        %2650 = vmatprep.subr.bf16.mxu0 %v1849
        %2651 = vmatpush1.bf16.msra.mxu0 %v1848
        %2652 = vmatprep.subr.bf16.mxu0 %v1882
        %2653 = vmatpush1.bf16.msra.mxu0 %v1881
        %2654 = vmatprep.subr.bf16.mxu0 %v1915
        %2655 = vmatpush1.bf16.msra.mxu0 %v1914
        %2656 = vmatprep.subr.bf16.mxu0 0
        %2657 = vmatpush1.bf16.msra.mxu0 0
        %2658 = vmatprep.subr.bf16.mxu0 0
        %2659 = vmatpush1.bf16.msra.mxu0 0
        %2660 = vmatprep.subr.bf16.mxu0 0
        %2661 = vmatpush1.bf16.msra.mxu0 0
        %2662 = vmatprep.subr.bf16.mxu0 0
        %2663 = vmatpush1.bf16.msra.mxu0 0
        %2664 = vmatprep.subr.bf16.mxu0 0
        %2665 = vmatpush1.bf16.msra.mxu0 0
        %2666 = vmatprep.subr.bf16.mxu0 0
        %2667 = vmatpush1.bf16.msra.mxu0 0
        %2668 = vmatprep.subr.bf16.mxu0 0
        %2669 = vmatpush1.bf16.msra.mxu0 0
        %2670 = vmatprep.subr.bf16.mxu0 0
        %2671 = vmatpush1.bf16.msra.mxu0 0
        %2672 = vmatprep.mubr.bf16.mxu0 0
        %2673 = vmatmul.mubr.bf16.gmra.mrb[0].mxu0 %v413
        %v2674 = vpop.f32.mrb[0].mxu0
        %v2675 = vadd.f32 %v787, %v2674
        %v2676 = vpop.f32.mrb[0].mxu0
        %v2677 = vadd.f32 %v791, %v2676
        %v2678 = vpop.f32.mrb[0].mxu0
        %v2679 = vpop.f32.mrb[0].mxu0
        %2680 = vdwg.mxu0
        %2681 = vmatprep.subr.bf16.mxu0 %v1686
        %2682 = vmatpush1.bf16.msra.mxu0 %v1685
        %2683 = vmatprep.subr.bf16.mxu0 %v1719
        %2684 = vmatpush1.bf16.msra.mxu0 %v1718
        %2685 = vmatprep.subr.bf16.mxu0 %v1752
        %2686 = vmatpush1.bf16.msra.mxu0 %v1751
        %2687 = vmatprep.subr.bf16.mxu0 %v1785
        %2688 = vmatpush1.bf16.msra.mxu0 %v1784
        %2689 = vmatprep.subr.bf16.mxu0 %v1818
        %2690 = vmatpush1.bf16.msra.mxu0 %v1817
        %2691 = vmatprep.subr.bf16.mxu0 %v1851
        %2692 = vmatpush1.bf16.msra.mxu0 %v1850
        %2693 = vmatprep.subr.bf16.mxu0 %v1884
        %2694 = vmatpush1.bf16.msra.mxu0 %v1883
        %2695 = vmatprep.subr.bf16.mxu0 %v1917
        %2696 = vmatpush1.bf16.msra.mxu0 %v1916
        %2697 = vmatprep.subr.bf16.mxu0 0
        %2698 = vmatpush1.bf16.msra.mxu0 0
        %2699 = vmatprep.subr.bf16.mxu0 0
        %2700 = vmatpush1.bf16.msra.mxu0 0
        %2701 = vmatprep.subr.bf16.mxu0 0
        %2702 = vmatpush1.bf16.msra.mxu0 0
        %2703 = vmatprep.subr.bf16.mxu0 0
        %2704 = vmatpush1.bf16.msra.mxu0 0
        %2705 = vmatprep.subr.bf16.mxu0 0
        %2706 = vmatpush1.bf16.msra.mxu0 0
        %2707 = vmatprep.subr.bf16.mxu0 0
        %2708 = vmatpush1.bf16.msra.mxu0 0
        %2709 = vmatprep.subr.bf16.mxu0 0
        %2710 = vmatpush1.bf16.msra.mxu0 0
        %2711 = vmatprep.subr.bf16.mxu0 0
        %2712 = vmatpush1.bf16.msra.mxu0 0
        %2713 = vmatprep.mubr.bf16.mxu0 0
        %2714 = vmatmul.mubr.bf16.gmra.mrb[0].mxu0 %v413
        %v2715 = vpop.f32.mrb[0].mxu0
        %v2716 = vadd.f32 %v795, %v2715
        %v2717 = vpop.f32.mrb[0].mxu0
        %v2718 = vadd.f32 %v799, %v2717
        %v2719 = vpop.f32.mrb[0].mxu0
        %v2720 = vpop.f32.mrb[0].mxu0
        %2721 = vdwg.mxu0
        %2722 = vmatprep.subr.bf16.mxu0 %v1688
        %2723 = vmatpush1.bf16.msra.mxu0 %v1687
        %2724 = vmatprep.subr.bf16.mxu0 %v1721
        %2725 = vmatpush1.bf16.msra.mxu0 %v1720
        %2726 = vmatprep.subr.bf16.mxu0 %v1754
        %2727 = vmatpush1.bf16.msra.mxu0 %v1753
        %2728 = vmatprep.subr.bf16.mxu0 %v1787
        %2729 = vmatpush1.bf16.msra.mxu0 %v1786
        %2730 = vmatprep.subr.bf16.mxu0 %v1820
        %2731 = vmatpush1.bf16.msra.mxu0 %v1819
        %2732 = vmatprep.subr.bf16.mxu0 %v1853
        %2733 = vmatpush1.bf16.msra.mxu0 %v1852
        %2734 = vmatprep.subr.bf16.mxu0 %v1886
        %2735 = vmatpush1.bf16.msra.mxu0 %v1885
        %2736 = vmatprep.subr.bf16.mxu0 %v1919
        %2737 = vmatpush1.bf16.msra.mxu0 %v1918
        %2738 = vmatprep.subr.bf16.mxu0 0
        %2739 = vmatpush1.bf16.msra.mxu0 0
        %2740 = vmatprep.subr.bf16.mxu0 0
        %2741 = vmatpush1.bf16.msra.mxu0 0
        %2742 = vmatprep.subr.bf16.mxu0 0
        %2743 = vmatpush1.bf16.msra.mxu0 0
        %2744 = vmatprep.subr.bf16.mxu0 0
        %2745 = vmatpush1.bf16.msra.mxu0 0
        %2746 = vmatprep.subr.bf16.mxu0 0
        %2747 = vmatpush1.bf16.msra.mxu0 0
        %2748 = vmatprep.subr.bf16.mxu0 0
        %2749 = vmatpush1.bf16.msra.mxu0 0
        %2750 = vmatprep.subr.bf16.mxu0 0
        %2751 = vmatpush1.bf16.msra.mxu0 0
        %2752 = vmatprep.subr.bf16.mxu0 0
        %2753 = vmatpush1.bf16.msra.mxu0 0
        %2754 = vmatprep.mubr.bf16.mxu0 0
        %2755 = vmatmul.mubr.bf16.gmra.mrb[0].mxu0 %v413
        %v2756 = vpop.f32.mrb[0].mxu0
        %v2757 = vadd.f32 %v803, %v2756
        %v2758 = vpop.f32.mrb[0].mxu0
        %v2759 = vadd.f32 %v807, %v2758
        %v2760 = vpop.f32.mrb[0].mxu0
        %v2761 = vpop.f32.mrb[0].mxu0
        %2762 = vdwg.mxu0
        %2763 = vmatprep.subr.bf16.mxu0 %v1690
        %2764 = vmatpush1.bf16.msra.mxu0 %v1689
        %2765 = vmatprep.subr.bf16.mxu0 %v1723
        %2766 = vmatpush1.bf16.msra.mxu0 %v1722
        %2767 = vmatprep.subr.bf16.mxu0 %v1756
        %2768 = vmatpush1.bf16.msra.mxu0 %v1755
        %2769 = vmatprep.subr.bf16.mxu0 %v1789
        %2770 = vmatpush1.bf16.msra.mxu0 %v1788
        %2771 = vmatprep.subr.bf16.mxu0 %v1822
        %2772 = vmatpush1.bf16.msra.mxu0 %v1821
        %2773 = vmatprep.subr.bf16.mxu0 %v1855
        %2774 = vmatpush1.bf16.msra.mxu0 %v1854
        %2775 = vmatprep.subr.bf16.mxu0 %v1888
        %2776 = vmatpush1.bf16.msra.mxu0 %v1887
        %2777 = vmatprep.subr.bf16.mxu0 %v1921
        %2778 = vmatpush1.bf16.msra.mxu0 %v1920
        %2779 = vmatprep.subr.bf16.mxu0 0
        %2780 = vmatpush1.bf16.msra.mxu0 0
        %2781 = vmatprep.subr.bf16.mxu0 0
        %2782 = vmatpush1.bf16.msra.mxu0 0
        %2783 = vmatprep.subr.bf16.mxu0 0
        %2784 = vmatpush1.bf16.msra.mxu0 0
        %2785 = vmatprep.subr.bf16.mxu0 0
        %2786 = vmatpush1.bf16.msra.mxu0 0
        %2787 = vmatprep.subr.bf16.mxu0 0
        %2788 = vmatpush1.bf16.msra.mxu0 0
        %2789 = vmatprep.subr.bf16.mxu0 0
        %2790 = vmatpush1.bf16.msra.mxu0 0
        %2791 = vmatprep.subr.bf16.mxu0 0
        %2792 = vmatpush1.bf16.msra.mxu0 0
        %2793 = vmatprep.subr.bf16.mxu0 0
        %2794 = vmatpush1.bf16.msra.mxu0 0
        %2795 = vmatprep.mubr.bf16.mxu0 0
        %2796 = vmatmul.mubr.bf16.gmra.mrb[0].mxu0 %v413
        %v2797 = vpop.f32.mrb[0].mxu0
        %v2798 = vadd.f32 %v811, %v2797
        %v2799 = vpop.f32.mrb[0].mxu0
        %v2800 = vadd.f32 %v815, %v2799
        %v2801 = vpop.f32.mrb[0].mxu0
        %v2802 = vpop.f32.mrb[0].mxu0
        %2803 = vdwg.mxu0
        %2804 = vmatprep.subr.bf16.mxu0 %v1692
        %2805 = vmatpush1.bf16.msra.mxu0 %v1691
        %2806 = vmatprep.subr.bf16.mxu0 %v1725
        %2807 = vmatpush1.bf16.msra.mxu0 %v1724
        %2808 = vmatprep.subr.bf16.mxu0 %v1758
        %2809 = vmatpush1.bf16.msra.mxu0 %v1757
        %2810 = vmatprep.subr.bf16.mxu0 %v1791
        %2811 = vmatpush1.bf16.msra.mxu0 %v1790
        %2812 = vmatprep.subr.bf16.mxu0 %v1824
        %2813 = vmatpush1.bf16.msra.mxu0 %v1823
        %2814 = vmatprep.subr.bf16.mxu0 %v1857
        %2815 = vmatpush1.bf16.msra.mxu0 %v1856
        %2816 = vmatprep.subr.bf16.mxu0 %v1890
        %2817 = vmatpush1.bf16.msra.mxu0 %v1889
        %2818 = vmatprep.subr.bf16.mxu0 %v1923
        %2819 = vmatpush1.bf16.msra.mxu0 %v1922
        %2820 = vmatprep.subr.bf16.mxu0 0
        %2821 = vmatpush1.bf16.msra.mxu0 0
        %2822 = vmatprep.subr.bf16.mxu0 0
        %2823 = vmatpush1.bf16.msra.mxu0 0
        %2824 = vmatprep.subr.bf16.mxu0 0
        %2825 = vmatpush1.bf16.msra.mxu0 0
        %2826 = vmatprep.subr.bf16.mxu0 0
        %2827 = vmatpush1.bf16.msra.mxu0 0
        %2828 = vmatprep.subr.bf16.mxu0 0
        %2829 = vmatpush1.bf16.msra.mxu0 0
        %2830 = vmatprep.subr.bf16.mxu0 0
        %2831 = vmatpush1.bf16.msra.mxu0 0
        %2832 = vmatprep.subr.bf16.mxu0 0
        %2833 = vmatpush1.bf16.msra.mxu0 0
        %2834 = vmatprep.subr.bf16.mxu0 0
        %2835 = vmatpush1.bf16.msra.mxu0 0
        %2836 = vmatprep.mubr.bf16.mxu0 0
        %2837 = vmatmul.mubr.bf16.gmra.mrb[0].mxu0 %v413
        %v2838 = vpop.f32.mrb[0].mxu0
        %v2839 = vadd.f32 %v819, %v2838
        %v2840 = vpop.f32.mrb[0].mxu0
        %v2841 = vadd.f32 %v823, %v2840
        %v2842 = vpop.f32.mrb[0].mxu0
        %v2843 = vpop.f32.mrb[0].mxu0
        %2844 = vdwg.mxu0
        %2845 = vmatprep.subr.bf16.mxu0 0
        %2846 = vmatpush1.bf16.msra.mxu0 %v1693
        %2847 = vmatprep.subr.bf16.mxu0 0
        %2848 = vmatpush1.bf16.msra.mxu0 %v1726
        %2849 = vmatprep.subr.bf16.mxu0 0
        %2850 = vmatpush1.bf16.msra.mxu0 %v1759
        %2851 = vmatprep.subr.bf16.mxu0 0
        %2852 = vmatpush1.bf16.msra.mxu0 %v1792
        %2853 = vmatprep.subr.bf16.mxu0 0
        %2854 = vmatpush1.bf16.msra.mxu0 %v1825
        %2855 = vmatprep.subr.bf16.mxu0 0
        %2856 = vmatpush1.bf16.msra.mxu0 %v1858
        %2857 = vmatprep.subr.bf16.mxu0 0
        %2858 = vmatpush1.bf16.msra.mxu0 %v1891
        %2859 = vmatprep.subr.bf16.mxu0 0
        %2860 = vmatpush1.bf16.msra.mxu0 %v1924
        %2861 = vmatprep.subr.bf16.mxu0 0
        %2862 = vmatpush1.bf16.msra.mxu0 0
        %2863 = vmatprep.subr.bf16.mxu0 0
        %2864 = vmatpush1.bf16.msra.mxu0 0
        %2865 = vmatprep.subr.bf16.mxu0 0
        %2866 = vmatpush1.bf16.msra.mxu0 0
        %2867 = vmatprep.subr.bf16.mxu0 0
        %2868 = vmatpush1.bf16.msra.mxu0 0
        %2869 = vmatprep.subr.bf16.mxu0 0
        %2870 = vmatpush1.bf16.msra.mxu0 0
        %2871 = vmatprep.subr.bf16.mxu0 0
        %2872 = vmatpush1.bf16.msra.mxu0 0
        %2873 = vmatprep.subr.bf16.mxu0 0
        %2874 = vmatpush1.bf16.msra.mxu0 0
        %2875 = vmatprep.subr.bf16.mxu0 0
        %2876 = vmatpush1.bf16.msra.mxu0 0
        %2877 = vmatprep.mubr.bf16.mxu0 0
        %2878 = vmatmul.mubr.bf16.gmra.mrb[0].mxu0 %v413
        %v2879 = vpop.f32.mrb[0].mxu0
        %v2880 = vadd.f32 %v827, %v2879
        %v2881 = vpop.f32.mrb[0].mxu0
        %v2882 = vpop.f32.mrb[0].mxu0
        %v2883 = vpop.f32.mrb[0].mxu0
        %2884 = vdwg.mxu0
        %vm2885 = vcmp.ge.f32.partialorder %v2224, 0.0
        %vm2886 = vcmp.ge.f32.partialorder %v2226, 0.0
        %vm2887 = vcmp.ge.f32.partialorder %v2265, 0.0
        %vm2888 = vcmp.ge.f32.partialorder %v2267, 0.0
        %vm2889 = vcmp.ge.f32.partialorder %v2306, 0.0
        %vm2890 = vcmp.ge.f32.partialorder %v2308, 0.0
        %vm2891 = vcmp.ge.f32.partialorder %v2347, 0.0
        %vm2892 = vcmp.ge.f32.partialorder %v2349, 0.0
        %vm2893 = vcmp.ge.f32.partialorder %v2388, 0.0
        %vm2894 = vcmp.ge.f32.partialorder %v2390, 0.0
        %vm2895 = vcmp.ge.f32.partialorder %v2429, 0.0
        %vm2896 = vcmp.ge.f32.partialorder %v2431, 0.0
        %vm2897 = vcmp.ge.f32.partialorder %v2470, 0.0
        %vm2898 = vcmp.ge.f32.partialorder %v2472, 0.0
        %vm2899 = vcmp.ge.f32.partialorder %v2511, 0.0
        %vm2900 = vcmp.ge.f32.partialorder %v2513, 0.0
        %vm2901 = vcmp.ge.f32.partialorder %v2552, 0.0
        %vm2902 = vcmp.ge.f32.partialorder %v2554, 0.0
        %vm2903 = vcmp.ge.f32.partialorder %v2593, 0.0
        %vm2904 = vcmp.ge.f32.partialorder %v2595, 0.0
        %vm2905 = vcmp.ge.f32.partialorder %v2634, 0.0
        %vm2906 = vcmp.ge.f32.partialorder %v2636, 0.0
        %vm2907 = vcmp.ge.f32.partialorder %v2675, 0.0
        %vm2908 = vcmp.ge.f32.partialorder %v2677, 0.0
        %vm2909 = vcmp.ge.f32.partialorder %v2716, 0.0
        %vm2910 = vcmp.ge.f32.partialorder %v2718, 0.0
        %vm2911 = vcmp.ge.f32.partialorder %v2757, 0.0
        %vm2912 = vcmp.ge.f32.partialorder %v2759, 0.0
        %vm2913 = vcmp.ge.f32.partialorder %v2798, 0.0
        %vm2914 = vcmp.ge.f32.partialorder %v2800, 0.0
        %vm2915 = vcmp.ge.f32.partialorder %v2839, 0.0
        %vm2916 = vcmp.ge.f32.partialorder %v2841, 0.0
        %vm2917 = vcmp.ge.f32.partialorder %v2880, 0.0
        %v2918 = vld [vmem:[%s3] sm:$0xff]
        %v2919 = vld [vmem:[%s3 + $0x8] sm:$0xff]
        %v2920 = vld [vmem:[%s3 + $0x10] sm:$0xff]
        %v2921 = vld [vmem:[%s3 + $0x18] sm:$0xff]
        %v2922 = vld [vmem:[%s3 + $0x20] sm:$0x1]
        %v2928 = vlaneseq
        %v2929 = vshrl.u32 %v2928, 7
        %v2930 = vsub.s32 0, %v2929
        %v2931 = vrot.slane %v2918, %v2930
        %v2932 = vlaneseq
        %v2933 = vshrl.u32 %v2932, 7
        %v2934 = vsub.s32 1, %v2933
        %v2935 = vrot.slane %v2918, %v2934
        %v2936 = vlaneseq
        %v2937 = vshrl.u32 %v2936, 7
        %v2938 = vsub.s32 2, %v2937
        %v2939 = vrot.slane %v2918, %v2938
        %v2940 = vlaneseq
        %v2941 = vshrl.u32 %v2940, 7
        %v2942 = vsub.s32 3, %v2941
        %v2943 = vrot.slane %v2918, %v2942
        %v2944 = vlaneseq
        %v2945 = vshrl.u32 %v2944, 7
        %v2946 = vsub.s32 4, %v2945
        %v2947 = vrot.slane %v2918, %v2946
        %v2948 = vlaneseq
        %v2949 = vshrl.u32 %v2948, 7
        %v2950 = vsub.s32 5, %v2949
        %v2951 = vrot.slane %v2918, %v2950
        %v2952 = vlaneseq
        %v2953 = vshrl.u32 %v2952, 7
        %v2954 = vsub.s32 6, %v2953
        %v2955 = vrot.slane %v2918, %v2954
        %v2956 = vlaneseq
        %v2957 = vshrl.u32 %v2956, 7
        %v2958 = vsub.s32 7, %v2957
        %v2959 = vrot.slane %v2918, %v2958
        %v2960 = vlaneseq
        %v2961 = vshrl.u32 %v2960, 7
        %v2962 = vsub.s32 0, %v2961
        %v2963 = vrot.slane %v2919, %v2962
        %v2964 = vlaneseq
        %v2965 = vshrl.u32 %v2964, 7
        %v2966 = vsub.s32 1, %v2965
        %v2967 = vrot.slane %v2919, %v2966
        %v2968 = vlaneseq
        %v2969 = vshrl.u32 %v2968, 7
        %v2970 = vsub.s32 2, %v2969
        %v2971 = vrot.slane %v2919, %v2970
        %v2972 = vlaneseq
        %v2973 = vshrl.u32 %v2972, 7
        %v2974 = vsub.s32 3, %v2973
        %v2975 = vrot.slane %v2919, %v2974
        %v2976 = vlaneseq
        %v2977 = vshrl.u32 %v2976, 7
        %v2978 = vsub.s32 4, %v2977
        %v2979 = vrot.slane %v2919, %v2978
        %v2980 = vlaneseq
        %v2981 = vshrl.u32 %v2980, 7
        %v2982 = vsub.s32 5, %v2981
        %v2983 = vrot.slane %v2919, %v2982
        %v2984 = vlaneseq
        %v2985 = vshrl.u32 %v2984, 7
        %v2986 = vsub.s32 6, %v2985
        %v2987 = vrot.slane %v2919, %v2986
        %v2988 = vlaneseq
        %v2989 = vshrl.u32 %v2988, 7
        %v2990 = vsub.s32 7, %v2989
        %v2991 = vrot.slane %v2919, %v2990
        %v2992 = vlaneseq
        %v2993 = vshrl.u32 %v2992, 7
        %v2994 = vsub.s32 0, %v2993
        %v2995 = vrot.slane %v2920, %v2994
        %v2996 = vlaneseq
        %v2997 = vshrl.u32 %v2996, 7
        %v2998 = vsub.s32 1, %v2997
        %v2999 = vrot.slane %v2920, %v2998
        %v3000 = vlaneseq
        %v3001 = vshrl.u32 %v3000, 7
        %v3002 = vsub.s32 2, %v3001
        %v3003 = vrot.slane %v2920, %v3002
        %v3004 = vlaneseq
        %v3005 = vshrl.u32 %v3004, 7
        %v3006 = vsub.s32 3, %v3005
        %v3007 = vrot.slane %v2920, %v3006
        %v3008 = vlaneseq
        %v3009 = vshrl.u32 %v3008, 7
        %v3010 = vsub.s32 4, %v3009
        %v3011 = vrot.slane %v2920, %v3010
        %v3012 = vlaneseq
        %v3013 = vshrl.u32 %v3012, 7
        %v3014 = vsub.s32 5, %v3013
        %v3015 = vrot.slane %v2920, %v3014
        %v3016 = vlaneseq
        %v3017 = vshrl.u32 %v3016, 7
        %v3018 = vsub.s32 6, %v3017
        %v3019 = vrot.slane %v2920, %v3018
        %v3020 = vlaneseq
        %v3021 = vshrl.u32 %v3020, 7
        %v3022 = vsub.s32 7, %v3021
        %v3023 = vrot.slane %v2920, %v3022
        %v3024 = vlaneseq
        %v3025 = vshrl.u32 %v3024, 7
        %v3026 = vsub.s32 0, %v3025
        %v3027 = vrot.slane %v2921, %v3026
        %v3028 = vlaneseq
        %v3029 = vshrl.u32 %v3028, 7
        %v3030 = vsub.s32 1, %v3029
        %v3031 = vrot.slane %v2921, %v3030
        %v3032 = vlaneseq
        %v3033 = vshrl.u32 %v3032, 7
        %v3034 = vsub.s32 2, %v3033
        %v3035 = vrot.slane %v2921, %v3034
        %v3036 = vlaneseq
        %v3037 = vshrl.u32 %v3036, 7
        %v3038 = vsub.s32 3, %v3037
        %v3039 = vrot.slane %v2921, %v3038
        %v3040 = vlaneseq
        %v3041 = vshrl.u32 %v3040, 7
        %v3042 = vsub.s32 4, %v3041
        %v3043 = vrot.slane %v2921, %v3042
        %v3044 = vlaneseq
        %v3045 = vshrl.u32 %v3044, 7
        %v3046 = vsub.s32 5, %v3045
        %v3047 = vrot.slane %v2921, %v3046
        %v3048 = vlaneseq
        %v3049 = vshrl.u32 %v3048, 7
        %v3050 = vsub.s32 6, %v3049
        %v3051 = vrot.slane %v2921, %v3050
        %v3052 = vlaneseq
        %v3053 = vshrl.u32 %v3052, 7
        %v3054 = vsub.s32 7, %v3053
        %v3055 = vrot.slane %v2921, %v3054
        %v3056 = vlaneseq
        %v3057 = vshrl.u32 %v3056, 7
        %v3058 = vsub.s32 0, %v3057
        %v3059 = vrot.slane %v2922, %v3058
        %v3093 = vmul.f32 %v2224, %v2931
        %v3094 = vmul.f32 %v2226, %v2935
        %v3095 = vmul.f32 %v2265, %v2939
        %v3096 = vmul.f32 %v2267, %v2943
        %v3097 = vmul.f32 %v2306, %v2947
        %v3098 = vmul.f32 %v2308, %v2951
        %v3099 = vmul.f32 %v2347, %v2955
        %v3100 = vmul.f32 %v2349, %v2959
        %v3101 = vmul.f32 %v2388, %v2963
        %v3102 = vmul.f32 %v2390, %v2967
        %v3103 = vmul.f32 %v2429, %v2971
        %v3104 = vmul.f32 %v2431, %v2975
        %v3105 = vmul.f32 %v2470, %v2979
        %v3106 = vmul.f32 %v2472, %v2983
        %v3107 = vmul.f32 %v2511, %v2987
        %v3108 = vmul.f32 %v2513, %v2991
        %v3109 = vmul.f32 %v2552, %v2995
        %v3110 = vmul.f32 %v2554, %v2999
        %v3111 = vmul.f32 %v2593, %v3003
        %v3112 = vmul.f32 %v2595, %v3007
        %v3113 = vmul.f32 %v2634, %v3011
        %v3114 = vmul.f32 %v2636, %v3015
        %v3115 = vmul.f32 %v2675, %v3019
        %v3116 = vmul.f32 %v2677, %v3023
        %v3117 = vmul.f32 %v2716, %v3027
        %v3118 = vmul.f32 %v2718, %v3031
        %v3119 = vmul.f32 %v2757, %v3035
        %v3120 = vmul.f32 %v2759, %v3039
        %v3121 = vmul.f32 %v2798, %v3043
        %v3122 = vmul.f32 %v2800, %v3047
        %v3123 = vmul.f32 %v2839, %v3051
        %v3124 = vmul.f32 %v2841, %v3055
        %v3125 = vmul.f32 %v2880, %v3059
        %v3126 = vsel %vm2885, %v2224, %v3093
        %v3127 = vsel %vm2886, %v2226, %v3094
        %v3128 = vsel %vm2887, %v2265, %v3095
        %v3129 = vsel %vm2888, %v2267, %v3096
        %v3130 = vsel %vm2889, %v2306, %v3097
        %v3131 = vsel %vm2890, %v2308, %v3098
        %v3132 = vsel %vm2891, %v2347, %v3099
        %v3133 = vsel %vm2892, %v2349, %v3100
        %v3134 = vsel %vm2893, %v2388, %v3101
        %v3135 = vsel %vm2894, %v2390, %v3102
        %v3136 = vsel %vm2895, %v2429, %v3103
        %v3137 = vsel %vm2896, %v2431, %v3104
        %v3138 = vsel %vm2897, %v2470, %v3105
        %v3139 = vsel %vm2898, %v2472, %v3106
        %v3140 = vsel %vm2899, %v2511, %v3107
        %v3141 = vsel %vm2900, %v2513, %v3108
        %v3142 = vsel %vm2901, %v2552, %v3109
        %v3143 = vsel %vm2902, %v2554, %v3110
        %v3144 = vsel %vm2903, %v2593, %v3111
        %v3145 = vsel %vm2904, %v2595, %v3112
        %v3146 = vsel %vm2905, %v2634, %v3113
        %v3147 = vsel %vm2906, %v2636, %v3114
        %v3148 = vsel %vm2907, %v2675, %v3115
        %v3149 = vsel %vm2908, %v2677, %v3116
        %v3150 = vsel %vm2909, %v2716, %v3117
        %v3151 = vsel %vm2910, %v2718, %v3118
        %v3152 = vsel %vm2911, %v2757, %v3119
        %v3153 = vsel %vm2912, %v2759, %v3120
        %v3154 = vsel %vm2913, %v2798, %v3121
        %v3155 = vsel %vm2914, %v2800, %v3122
        %v3156 = vsel %vm2915, %v2839, %v3123
        %v3157 = vsel %vm2916, %v2841, %v3124
        %v3158 = vsel %vm2917, %v2880, %v3125
        %s3159 = sld [smem:[#allocation2]]
        %s3160 = sld [smem:[#allocation3]]
        %v3161 = vpack.c.bf16 %v3126, %v3126
        %v3162 = vld [vmem:[%s4] sm:$0xff]
        %v3163 = vld [vmem:[%s4 + $0x8] sm:$0xff]
        %v3164 = vld [vmem:[%s4 + $0x10] sm:$0xff]
        %v3165 = vld [vmem:[%s4 + $0x18] sm:$0xff]
        %v3166 = vld [vmem:[%s4 + $0x20] sm:$0xff]
        %v3167 = vld [vmem:[%s4 + $0x28] sm:$0xff]
        %v3168 = vld [vmem:[%s4 + $0x30] sm:$0xff]
        %v3169 = vld [vmem:[%s4 + $0x38] sm:$0xff]
        %v3170 = vld [vmem:[%s4 + $0x40] sm:$0xff]
        %v3171 = vld [vmem:[%s4 + $0x48] sm:$0xff]
        %v3172 = vld [vmem:[%s4 + $0x50] sm:$0xff]
        %v3173 = vld [vmem:[%s4 + $0x58] sm:$0xff]
        %v3174 = vld [vmem:[%s4 + $0x60] sm:$0xff]
        %v3175 = vld [vmem:[%s4 + $0x68] sm:$0xff]
        %v3176 = vld [vmem:[%s4 + $0x70] sm:$0xff]
        %v3177 = vld [vmem:[%s4 + $0x78] sm:$0xff]
        %v3178 = vld [vmem:[%s5] sm:$0x3]
        %v3180 = vlaneseq
        %v3181 = vshrl.u32 %v3180, 7
        %v3182 = vsub.s32 0, %v3181
        %v3183 = vrot.slane %v3178, %v3182
        %v3184 = vlaneseq
        %v3185 = vshrl.u32 %v3184, 7
        %v3186 = vsub.s32 1, %v3185
        %v3187 = vrot.slane %v3178, %v3186
        %v3206 = vunpack.c.l.b16 %v3162
        %v3207 = vunpack.c.h.b16 %v3162
        %v3208 = vunpack.c.l.b16 %v3163
        %v3209 = vunpack.c.h.b16 %v3163
        %v3210 = vunpack.c.l.b16 %v3164
        %v3211 = vunpack.c.h.b16 %v3164
        %v3212 = vunpack.c.l.b16 %v3165
        %v3213 = vunpack.c.h.b16 %v3165
        %v3214 = vunpack.c.l.b16 %v3166
        %v3215 = vunpack.c.h.b16 %v3166
        %v3216 = vunpack.c.l.b16 %v3167
        %v3217 = vunpack.c.h.b16 %v3167
        %v3218 = vunpack.c.l.b16 %v3168
        %v3219 = vunpack.c.h.b16 %v3168
        %v3220 = vunpack.c.l.b16 %v3169
        %v3221 = vunpack.c.h.b16 %v3169
        %v3222 = vunpack.c.l.b16 %v3170
        %v3223 = vunpack.c.h.b16 %v3170
        %v3224 = vunpack.c.l.b16 %v3171
        %v3225 = vunpack.c.h.b16 %v3171
        %v3226 = vunpack.c.l.b16 %v3172
        %v3227 = vunpack.c.h.b16 %v3172
        %v3228 = vunpack.c.l.b16 %v3173
        %v3229 = vunpack.c.h.b16 %v3173
        %v3230 = vunpack.c.l.b16 %v3174
        %v3231 = vunpack.c.h.b16 %v3174
        %v3232 = vunpack.c.l.b16 %v3175
        %v3233 = vunpack.c.h.b16 %v3175
        %v3234 = vunpack.c.l.b16 %v3176
        %v3235 = vunpack.c.h.b16 %v3176
        %v3236 = vunpack.c.l.b16 %v3177
        %v3237 = vunpack.c.h.b16 %v3177
        %v3238 = vpack.c.b16 %v3208, %v3206
        %v3239 = vpack.c.b16 %v3209, %v3207
        %v3240 = vpack.c.b16 %v3212, %v3210
        %v3241 = vpack.c.b16 %v3213, %v3211
        %v3242 = vpack.c.b16 %v3216, %v3214
        %v3243 = vpack.c.b16 %v3217, %v3215
        %v3244 = vpack.c.b16 %v3220, %v3218
        %v3245 = vpack.c.b16 %v3221, %v3219
        %v3246 = vpack.c.b16 %v3224, %v3222
        %v3247 = vpack.c.b16 %v3225, %v3223
        %v3248 = vpack.c.b16 %v3228, %v3226
        %v3249 = vpack.c.b16 %v3229, %v3227
        %v3250 = vpack.c.b16 %v3232, %v3230
        %v3251 = vpack.c.b16 %v3233, %v3231
        %v3252 = vpack.c.b16 %v3236, %v3234
        %v3253 = vpack.c.b16 %v3237, %v3235
        %3270 = vmatprep.subr.bf16.mxu0 %v3239
        %3271 = vmatpush1.bf16.msra.mxu0 %v3238
        %3272 = vmatprep.subr.bf16.mxu0 %v3241
        %3273 = vmatpush1.bf16.msra.mxu0 %v3240
        %3274 = vmatprep.subr.bf16.mxu0 %v3243
        %3275 = vmatpush1.bf16.msra.mxu0 %v3242
        %3276 = vmatprep.subr.bf16.mxu0 %v3245
        %3277 = vmatpush1.bf16.msra.mxu0 %v3244
        %3278 = vmatprep.subr.bf16.mxu0 %v3247
        %3279 = vmatpush1.bf16.msra.mxu0 %v3246
        %3280 = vmatprep.subr.bf16.mxu0 %v3249
        %3281 = vmatpush1.bf16.msra.mxu0 %v3248
        %3282 = vmatprep.subr.bf16.mxu0 %v3251
        %3283 = vmatpush1.bf16.msra.mxu0 %v3250
        %3284 = vmatprep.subr.bf16.mxu0 %v3253
        %3285 = vmatpush1.bf16.msra.mxu0 %v3252
        %3286 = vmatprep.subr.bf16.mxu0 0
        %3287 = vmatpush1.bf16.msra.mxu0 0
        %3288 = vmatprep.subr.bf16.mxu0 0
        %3289 = vmatpush1.bf16.msra.mxu0 0
        %3290 = vmatprep.subr.bf16.mxu0 0
        %3291 = vmatpush1.bf16.msra.mxu0 0
        %3292 = vmatprep.subr.bf16.mxu0 0
        %3293 = vmatpush1.bf16.msra.mxu0 0
        %3294 = vmatprep.subr.bf16.mxu0 0
        %3295 = vmatpush1.bf16.msra.mxu0 0
        %3296 = vmatprep.subr.bf16.mxu0 0
        %3297 = vmatpush1.bf16.msra.mxu0 0
        %3298 = vmatprep.subr.bf16.mxu0 0
        %3299 = vmatpush1.bf16.msra.mxu0 0
        %3300 = vmatprep.subr.bf16.mxu0 0
        %3301 = vmatpush1.bf16.msra.mxu0 0
        %3302 = vmatprep.mubr.bf16.mxu0 0
        %3303 = vmatmul.mubr.bf16.gmra.mrb[0].mxu0 %v3161
        %v3304 = vpop.f32.mrb[0].mxu0
        %v3305 = vadd.f32 %v3183, %v3304
        %v3306 = vpop.f32.mrb[0].mxu0
        %v3307 = vadd.f32 %v3187, %v3306
        %v3308 = vpop.f32.mrb[0].mxu0
        %v3309 = vpop.f32.mrb[0].mxu0
        %3310 = vdwg.mxu0
        %vm3311 = vcmp.ge.f32.partialorder %v3305, 0.0
        %vm3312 = vcmp.ge.f32.partialorder %v3307, 0.0
        %v3313 = vstv %s3159
        %v3314 = vmul.f32 %v3305, %v3313
        %v3315 = vmul.f32 %v3307, %v3313
        %v3316 = vsel %vm3311, %v3305, %v3314
        %v3317 = vsel %vm3312, %v3307, %v3315
        %v3318 = vpack.c.bf16 %v3316, %v3316
        %v3319 = vpack.c.bf16 %v3317, %v3317
        %v3320 = vld [vmem:[%s6] sm:$0xf]
        %v3321 = vld [vmem:[%s6 + $0x4] sm:$0xf]
        %v3322 = vld [vmem:[%s6 + $0x8] sm:$0xf]
        %v3323 = vld [vmem:[%s6 + $0xc] sm:$0xf]
        %v3324 = vld [vmem:[%s6 + $0x10] sm:$0xf]
        %v3325 = vld [vmem:[%s6 + $0x14] sm:$0xf]
        %v3326 = vld [vmem:[%s6 + $0x18] sm:$0xf]
        %v3327 = vld [vmem:[%s6 + $0x1c] sm:$0xf]
        %v3328 = vld [vmem:[%s6 + $0x20] sm:$0xf]
        %v3329 = vld [vmem:[%s6 + $0x24] sm:$0xf]
        %v3330 = vld [vmem:[%s6 + $0x28] sm:$0xf]
        %v3331 = vld [vmem:[%s6 + $0x2c] sm:$0xf]
        %v3332 = vld [vmem:[%s6 + $0x30] sm:$0xf]
        %v3333 = vld [vmem:[%s6 + $0x34] sm:$0xf]
        %v3334 = vld [vmem:[%s6 + $0x38] sm:$0xf]
        %v3335 = vld [vmem:[%s6 + $0x3c] sm:$0xf]
        %v3336 = vld [vmem:[%s6 + $0x40] sm:$0xf]
        %v3337 = vld [vmem:[%s6 + $0x44] sm:$0xf]
        %v3338 = vld [vmem:[%s6 + $0x48] sm:$0xf]
        %v3339 = vld [vmem:[%s6 + $0x4c] sm:$0xf]
        %v3340 = vld [vmem:[%s6 + $0x50] sm:$0xf]
        %v3341 = vld [vmem:[%s6 + $0x54] sm:$0xf]
        %v3342 = vld [vmem:[%s6 + $0x58] sm:$0xf]
        %v3343 = vld [vmem:[%s6 + $0x5c] sm:$0xf]
        %v3344 = vld [vmem:[%s6 + $0x60] sm:$0xf]
        %v3345 = vld [vmem:[%s6 + $0x64] sm:$0xf]
        %v3346 = vld [vmem:[%s6 + $0x68] sm:$0xf]
        %v3347 = vld [vmem:[%s6 + $0x6c] sm:$0xf]
        %v3348 = vld [vmem:[%s6 + $0x70] sm:$0xf]
        %v3349 = vld [vmem:[%s6 + $0x74] sm:$0xf]
        %v3350 = vld [vmem:[%s6 + $0x78] sm:$0xf]
        %v3351 = vld [vmem:[%s6 + $0x7c] sm:$0xf]
        %v3352 = vld [vmem:[%s7] sm:$0x1]
        %v3354 = vlaneseq
        %v3355 = vshrl.u32 %v3354, 7
        %v3356 = vsub.s32 0, %v3355
        %v3357 = vrot.slane %v3352, %v3356
        %v3391 = vunpack.c.l.b16 %v3320
        %v3392 = vunpack.c.l.b16 %v3321
        %v3393 = vunpack.c.l.b16 %v3322
        %v3394 = vunpack.c.l.b16 %v3323
        %v3395 = vunpack.c.l.b16 %v3324
        %v3396 = vunpack.c.l.b16 %v3325
        %v3397 = vunpack.c.l.b16 %v3326
        %v3398 = vunpack.c.l.b16 %v3327
        %v3399 = vunpack.c.l.b16 %v3328
        %v3400 = vunpack.c.l.b16 %v3329
        %v3401 = vunpack.c.l.b16 %v3330
        %v3402 = vunpack.c.l.b16 %v3331
        %v3403 = vunpack.c.l.b16 %v3332
        %v3404 = vunpack.c.l.b16 %v3333
        %v3405 = vunpack.c.l.b16 %v3334
        %v3406 = vunpack.c.l.b16 %v3335
        %v3407 = vunpack.c.l.b16 %v3336
        %v3408 = vunpack.c.l.b16 %v3337
        %v3409 = vunpack.c.l.b16 %v3338
        %v3410 = vunpack.c.l.b16 %v3339
        %v3411 = vunpack.c.l.b16 %v3340
        %v3412 = vunpack.c.l.b16 %v3341
        %v3413 = vunpack.c.l.b16 %v3342
        %v3414 = vunpack.c.l.b16 %v3343
        %v3415 = vunpack.c.l.b16 %v3344
        %v3416 = vunpack.c.l.b16 %v3345
        %v3417 = vunpack.c.l.b16 %v3346
        %v3418 = vunpack.c.l.b16 %v3347
        %v3419 = vunpack.c.l.b16 %v3348
        %v3420 = vunpack.c.l.b16 %v3349
        %v3421 = vunpack.c.l.b16 %v3350
        %v3422 = vunpack.c.l.b16 %v3351
        %v3423 = vpack.c.b16 %v3392, %v3391
        %v3424 = vpack.c.b16 %v3394, %v3393
        %v3425 = vpack.c.b16 %v3396, %v3395
        %v3426 = vpack.c.b16 %v3398, %v3397
        %v3427 = vpack.c.b16 %v3400, %v3399
        %v3428 = vpack.c.b16 %v3402, %v3401
        %v3429 = vpack.c.b16 %v3404, %v3403
        %v3430 = vpack.c.b16 %v3406, %v3405
        %v3431 = vpack.c.b16 %v3408, %v3407
        %v3432 = vpack.c.b16 %v3410, %v3409
        %v3433 = vpack.c.b16 %v3412, %v3411
        %v3434 = vpack.c.b16 %v3414, %v3413
        %v3435 = vpack.c.b16 %v3416, %v3415
        %v3436 = vpack.c.b16 %v3418, %v3417
        %v3437 = vpack.c.b16 %v3420, %v3419
        %v3438 = vpack.c.b16 %v3422, %v3421
        %3455 = vmatprep.subr.bf16.mxu0 0
        %3456 = vmatpush1.bf16.msra.mxu0 %v3423
        %3457 = vmatprep.subr.bf16.mxu0 0
        %3458 = vmatpush1.bf16.msra.mxu0 %v3424
        %3459 = vmatprep.subr.bf16.mxu0 0
        %3460 = vmatpush1.bf16.msra.mxu0 %v3425
        %3461 = vmatprep.subr.bf16.mxu0 0
        %3462 = vmatpush1.bf16.msra.mxu0 %v3426
        %3463 = vmatprep.subr.bf16.mxu0 0
        %3464 = vmatpush1.bf16.msra.mxu0 %v3427
        %3465 = vmatprep.subr.bf16.mxu0 0
        %3466 = vmatpush1.bf16.msra.mxu0 %v3428
        %3467 = vmatprep.subr.bf16.mxu0 0
        %3468 = vmatpush1.bf16.msra.mxu0 %v3429
        %3469 = vmatprep.subr.bf16.mxu0 0
        %3470 = vmatpush1.bf16.msra.mxu0 %v3430
        %3471 = vmatprep.subr.bf16.mxu0 0
        %3472 = vmatpush1.bf16.msra.mxu0 %v3431
        %3473 = vmatprep.subr.bf16.mxu0 0
        %3474 = vmatpush1.bf16.msra.mxu0 %v3432
        %3475 = vmatprep.subr.bf16.mxu0 0
        %3476 = vmatpush1.bf16.msra.mxu0 %v3433
        %3477 = vmatprep.subr.bf16.mxu0 0
        %3478 = vmatpush1.bf16.msra.mxu0 %v3434
        %3479 = vmatprep.subr.bf16.mxu0 0
        %3480 = vmatpush1.bf16.msra.mxu0 %v3435
        %3481 = vmatprep.subr.bf16.mxu0 0
        %3482 = vmatpush1.bf16.msra.mxu0 %v3436
        %3483 = vmatprep.subr.bf16.mxu0 0
        %3484 = vmatpush1.bf16.msra.mxu0 %v3437
        %3485 = vmatprep.subr.bf16.mxu0 0
        %3486 = vmatpush1.bf16.msra.mxu0 %v3438
        %3487 = vmatprep.mubr.bf16.mxu0 %v3319
        %3488 = vmatmul.mubr.bf16.gmra.mrb[0].mxu0 %v3318
        %v3489 = vpop.f32.mrb[0].mxu0
        %v3490 = vadd.f32 %v3357, %v3489
        %v3491 = vpop.f32.mrb[0].mxu0
        %v3492 = vpop.f32.mrb[0].mxu0
        %v3493 = vpop.f32.mrb[0].mxu0
        %3494 = vdwg.mxu0
        %vm3495 = vcmp.ge.f32.partialorder %v3490, 0.0
        %v3496 = vstv %s3160
        %v3497 = vmul.f32 %v3490, %v3496
        %v3498 = vsel %vm3495, %v3490, %v3497
        %vm3499 = vcmask 261120
        %v3500 = vsel %vm3499, %v3498, -inf
        %3501 = vmax.xlane.f32.xlu0 %v3500
        %v3502 = vpop.xlane.xlu0 %3501
        %v3503 = vsub.f32 %v3498, %v3502
        %v3504 = vmul.f32 %v3503, 1.442695
        %v3505 = vpow.pop %v3504
        %v3506 = vsel %vm3499, %v3505, 0.0
        %3507 = vadd.xlane.f32.xlu0 %v3506
        %v3508 = vpop.xlane.xlu0 %3507
        %v3509 = vrcp.pop %v3508
        %v3510 = vmul.f32 %v3505, %v3509
        %3512 = vset.pattern.permute.xlu0 0
        %3513 = vperm.xlu0 %3512, %v3510
        %v3514 = vpop.permute.xlu0 %3513
        %v3516 = vmul.f32 %v3127, %v3514
        %v3517 = vadd.f32 %v3516, 0.0
        %3518 = vset.pattern.permute.xlu0 1
        %3519 = vperm.xlu0 %3518, %v3510
        %v3520 = vpop.permute.xlu0 %3519
        %v3522 = vmul.f32 %v3128, %v3520
        %v3523 = vadd.f32 %v3517, %v3522
        %3524 = vset.pattern.permute.xlu0 2
        %3525 = vperm.xlu0 %3524, %v3510
        %v3526 = vpop.permute.xlu0 %3525
        %v3528 = vmul.f32 %v3129, %v3526
        %v3529 = vadd.f32 %v3523, %v3528
        %3530 = vset.pattern.permute.xlu0 3
        %3531 = vperm.xlu0 %3530, %v3510
        %v3532 = vpop.permute.xlu0 %3531
        %v3534 = vmul.f32 %v3130, %v3532
        %v3535 = vadd.f32 %v3529, %v3534
        %3536 = vset.pattern.permute.xlu0 4
        %3537 = vperm.xlu0 %3536, %v3510
        %v3538 = vpop.permute.xlu0 %3537
        %v3540 = vmul.f32 %v3131, %v3538
        %v3541 = vadd.f32 %v3535, %v3540
        %3542 = vset.pattern.permute.xlu0 5
        %3543 = vperm.xlu0 %3542, %v3510
        %v3544 = vpop.permute.xlu0 %3543
        %v3546 = vmul.f32 %v3132, %v3544
        %v3547 = vadd.f32 %v3541, %v3546
        %3548 = vset.pattern.permute.xlu0 6
        %3549 = vperm.xlu0 %3548, %v3510
        %v3550 = vpop.permute.xlu0 %3549
        %v3552 = vmul.f32 %v3133, %v3550
        %v3553 = vadd.f32 %v3547, %v3552
        %3554 = vset.pattern.permute.xlu0 7
        %3555 = vperm.xlu0 %3554, %v3510
        %v3556 = vpop.permute.xlu0 %3555
        %v3558 = vmul.f32 %v3134, %v3556
        %v3559 = vadd.f32 %v3553, %v3558
        %3560 = vset.pattern.permute.xlu0 8
        %3561 = vperm.xlu0 %3560, %v3510
        %v3562 = vpop.permute.xlu0 %3561
        %v3564 = vmul.f32 %v3135, %v3562
        %v3565 = vadd.f32 %v3559, %v3564
        %3566 = vset.pattern.permute.xlu0 9
        %3567 = vperm.xlu0 %3566, %v3510
        %v3568 = vpop.permute.xlu0 %3567
        %v3570 = vmul.f32 %v3136, %v3568
        %v3571 = vadd.f32 %v3565, %v3570
        %3572 = vset.pattern.permute.xlu0 10
        %3573 = vperm.xlu0 %3572, %v3510
        %v3574 = vpop.permute.xlu0 %3573
        %v3576 = vmul.f32 %v3137, %v3574
        %v3577 = vadd.f32 %v3571, %v3576
        %3578 = vset.pattern.permute.xlu0 11
        %3579 = vperm.xlu0 %3578, %v3510
        %v3580 = vpop.permute.xlu0 %3579
        %v3582 = vmul.f32 %v3138, %v3580
        %v3583 = vadd.f32 %v3577, %v3582
        %3584 = vset.pattern.permute.xlu0 12
        %3585 = vperm.xlu0 %3584, %v3510
        %v3586 = vpop.permute.xlu0 %3585
        %v3588 = vmul.f32 %v3139, %v3586
        %v3589 = vadd.f32 %v3583, %v3588
        %3590 = vset.pattern.permute.xlu0 13
        %3591 = vperm.xlu0 %3590, %v3510
        %v3592 = vpop.permute.xlu0 %3591
        %v3594 = vmul.f32 %v3140, %v3592
        %v3595 = vadd.f32 %v3589, %v3594
        %3596 = vset.pattern.permute.xlu0 14
        %3597 = vperm.xlu0 %3596, %v3510
        %v3598 = vpop.permute.xlu0 %3597
        %v3600 = vmul.f32 %v3141, %v3598
        %v3601 = vadd.f32 %v3595, %v3600
        %3602 = vset.pattern.permute.xlu0 15
        %3603 = vperm.xlu0 %3602, %v3510
        %v3604 = vpop.permute.xlu0 %3603
        %v3606 = vmul.f32 %v3142, %v3604
        %v3607 = vadd.f32 %v3601, %v3606
        %3608 = vset.pattern.permute.xlu0 16
        %3609 = vperm.xlu0 %3608, %v3510
        %v3610 = vpop.permute.xlu0 %3609
        %v3612 = vmul.f32 %v3143, %v3610
        %v3613 = vadd.f32 %v3607, %v3612
        %3614 = vset.pattern.permute.xlu0 17
        %3615 = vperm.xlu0 %3614, %v3510
        %v3616 = vpop.permute.xlu0 %3615
        %v3618 = vmul.f32 %v3144, %v3616
        %v3619 = vadd.f32 %v3613, %v3618
        %3620 = vset.pattern.permute.xlu0 18
        %3621 = vperm.xlu0 %3620, %v3510
        %v3622 = vpop.permute.xlu0 %3621
        %v3624 = vmul.f32 %v3145, %v3622
        %v3625 = vadd.f32 %v3619, %v3624
        %3626 = vset.pattern.permute.xlu0 19
        %3627 = vperm.xlu0 %3626, %v3510
        %v3628 = vpop.permute.xlu0 %3627
        %v3630 = vmul.f32 %v3146, %v3628
        %v3631 = vadd.f32 %v3625, %v3630
        %3632 = vset.pattern.permute.xlu0 20
        %3633 = vperm.xlu0 %3632, %v3510
        %v3634 = vpop.permute.xlu0 %3633
        %v3636 = vmul.f32 %v3147, %v3634
        %v3637 = vadd.f32 %v3631, %v3636
        %3638 = vset.pattern.permute.xlu0 21
        %3639 = vperm.xlu0 %3638, %v3510
        %v3640 = vpop.permute.xlu0 %3639
        %v3642 = vmul.f32 %v3148, %v3640
        %v3643 = vadd.f32 %v3637, %v3642
        %3644 = vset.pattern.permute.xlu0 22
        %3645 = vperm.xlu0 %3644, %v3510
        %v3646 = vpop.permute.xlu0 %3645
        %v3648 = vmul.f32 %v3149, %v3646
        %v3649 = vadd.f32 %v3643, %v3648
        %3650 = vset.pattern.permute.xlu0 23
        %3651 = vperm.xlu0 %3650, %v3510
        %v3652 = vpop.permute.xlu0 %3651
        %v3654 = vmul.f32 %v3150, %v3652
        %v3655 = vadd.f32 %v3649, %v3654
        %3656 = vset.pattern.permute.xlu0 24
        %3657 = vperm.xlu0 %3656, %v3510
        %v3658 = vpop.permute.xlu0 %3657
        %v3660 = vmul.f32 %v3151, %v3658
        %v3661 = vadd.f32 %v3655, %v3660
        %3662 = vset.pattern.permute.xlu0 25
        %3663 = vperm.xlu0 %3662, %v3510
        %v3664 = vpop.permute.xlu0 %3663
        %v3666 = vmul.f32 %v3152, %v3664
        %v3667 = vadd.f32 %v3661, %v3666
        %3668 = vset.pattern.permute.xlu0 26
        %3669 = vperm.xlu0 %3668, %v3510
        %v3670 = vpop.permute.xlu0 %3669
        %v3672 = vmul.f32 %v3153, %v3670
        %v3673 = vadd.f32 %v3667, %v3672
        %3674 = vset.pattern.permute.xlu0 27
        %3675 = vperm.xlu0 %3674, %v3510
        %v3676 = vpop.permute.xlu0 %3675
        %v3678 = vmul.f32 %v3154, %v3676
        %v3679 = vadd.f32 %v3673, %v3678
        %3680 = vset.pattern.permute.xlu0 28
        %3681 = vperm.xlu0 %3680, %v3510
        %v3682 = vpop.permute.xlu0 %3681
        %v3684 = vmul.f32 %v3155, %v3682
        %v3685 = vadd.f32 %v3679, %v3684
        %3686 = vset.pattern.permute.xlu0 29
        %3687 = vperm.xlu0 %3686, %v3510
        %v3688 = vpop.permute.xlu0 %3687
        %v3690 = vmul.f32 %v3156, %v3688
        %v3691 = vadd.f32 %v3685, %v3690
        %3692 = vset.pattern.permute.xlu0 30
        %3693 = vperm.xlu0 %3692, %v3510
        %v3694 = vpop.permute.xlu0 %3693
        %v3696 = vmul.f32 %v3157, %v3694
        %v3697 = vadd.f32 %v3691, %v3696
        %3698 = vset.pattern.permute.xlu0 31
        %3699 = vperm.xlu0 %3698, %v3510
        %v3700 = vpop.permute.xlu0 %3699
        %v3702 = vmul.f32 %v3158, %v3700
        %v3703 = vadd.f32 %v3697, %v3702
        %v3704 = vadd.f32 %v3126, %v3703
        %v3705 = vld [vmem:[%s10] sm:$0x1]
        %v3707 = vlaneseq
        %v3708 = vshrl.u32 %v3707, 7
        %v3709 = vsub.s32 0, %v3708
        %v3710 = vrot.slane %v3705, %v3709
        %v3712 = vmul.f32 %v3704, %v3710
        %v3713 = vld [vmem:[%s11] sm:$0x1]
        %v3715 = vlaneseq
        %v3716 = vshrl.u32 %v3715, 7
        %v3717 = vsub.s32 0, %v3716
        %v3718 = vrot.slane %v3713, %v3717
        %v3720 = vadd.f32 %v3712, %v3718
        %3721 = vst [vmem:[%s406] sm:$0xff] %v3720
        %s3722 = sand.u32 %s293, 1
        %s3723 = scalar_lea.sflag [#allocation5], %s3722
        %s3724 = sand.u32 %s293, 1
        %s3725 = smul.addr %s3724, 8
        %s3726 = scalar_lea.vmem [#allocation4], %s3725
        // Predicated region
        $region69: #{multihead_forward.1} parent=67 // pred_check
          %p3727 = pneg %p303
        $region70: #{multihead_forward.1} parent=67 // pred_check_branch
          %3729 = sbr.rel (%p3727) target = $region72
        $region71: #{multihead_forward.1} parent=67 // pred_region
          %s3731 = ssub.s32 128, 128
          %3732 = vsyncadd %s3723, %s3731
          %s3733 = smul.addr %s28, 128
          %s3734 = scalar_lea.hbm %s12, %s3733
          %s3736 = sshll.u32 %s3726, 4
          %s3737 = int_to_ptr.vmem [resolvable:$true] %s3736
          %3739 = dma.vmem_to_hbm [thread:$0]  %s3737, 128, %s3734, %s3723
        $region72: #{multihead_forward.1} parent=67 // pred_fallthru
          _
      $region68: #{multihead_forward.1} parent=5 // pred_fallthru
        _
      %p3740 = scmp.le.s32.totalorder 2, %s23
      // Predicated region
      $region73: #{multihead_forward.1} parent=5 // pred_check
        %p3741 = pneg %p3740
      $region74: #{multihead_forward.1} parent=5 // pred_check_branch
        %3743 = sbr.rel (%p3741) target = $region76
      $region75: #{multihead_forward.1} parent=5 // pred_region
        %s3744 = ssub.s32 %s23, 2
        // Predicated region
        $region77: #{multihead_forward.1} parent=75 // pred_check
          %p3745 = pneg %p309
        $region78: #{multihead_forward.1} parent=75 // pred_check_branch
          %3747 = sbr.rel (%p3745) target = $region80
        $region79: #{multihead_forward.1} parent=75 // pred_region
          %s3748 = sand.u32 %s294, 1
          %s3749 = scalar_lea.sflag [#allocation5], %s3748
          %s3750 = sand.u32 %s294, 1
          %s3751 = smul.addr %s3750, 8
          %s3752 = scalar_lea.vmem [#allocation4], %s3751
          %3753 = dma.done %s3749, 128
        $region80: #{multihead_forward.1} parent=75 // pred_fallthru
          _
      $region76: #{multihead_forward.1} parent=5 // pred_fallthru
        _
    $region6: #{multihead_forward.1} parent=1 // loop_footer
      %s27 = sadd.s32 1, %s23
    $region7: #{multihead_forward.1} parent=1 // loop_footer_branch
      %22 = sbr.rel target = $region3
    $region8: #{multihead_forward.1} parent=1 // loop_exit
      _
    %3754 = vsyncpa [#allocation5], 1
    %s3755 = scalar_lea.sflag [#allocation5], 1
    %3756 = vsyncpa %s3755, 1

</llo_original>
